<compile_context>
chip_gen: v7x
topology: tpu7x:2x2x1
jax: 0.10.0
libtpu: 0.0.40
codegen_flags: <defaults>
</compile_context>

<pallas_src>
import functools
import math

import jax
import jax.numpy as jnp
from jax import lax
from jax.experimental import pallas as pl
from jax.experimental.pallas import tpu as pltpu


def lstm_net_kernel(pts_ref, ts_ref, Wp_ref, Wt_ref, b_ref, U_ref, Wc_ref,
                    bc_ref, out_ref, xw_sc, hid_sc, *, Bp, T, H):
    """All refs VMEM-resident; single invocation (no grid).

    pts_ref : (T*Bp, Fp)   time-major feature rows (batch padded to Bp=8)
    ts_ref  : (T*Bp, 1)    time-major time column
    Wp_ref  : (Fp, 4H)     input weights for the feature columns
    Wt_ref  : (1, 4H)      input weight row for the time column
    b_ref   : (1, 4H)      LSTM bias
    U_ref   : (H, 4H)      recurrent weights (gate order [i, f, o, g])
    Wc_ref  : (H, NCp)     classifier weights, lane-padded to 128
    bc_ref  : (1, NCp)     classifier bias,    lane-padded to 128
    out_ref : (T*Bp, NCp)
    """
    # ---- bulk input projection for ALL timesteps (one MXU push) ----------
    # concat(points, time) @ W  ==  points @ W[:F] + time * W[F]   (broadcast)
    xw_sc[...] = (jnp.dot(pts_ref[...], Wp_ref[...],
                          preferred_element_type=jnp.float32)
                  + ts_ref[...] * Wt_ref[...]
                  + b_ref[...])                                    # (T*Bp, 4H)

    h0 = jnp.zeros((Bp, H), jnp.float32)
    c0 = jnp.zeros((Bp, H), jnp.float32)

    def step(t, carry):
        h, c = carry
        row = pl.multiple_of(t * Bp, Bp)        # full (8,128)-tile slices
        # recurrent hot path: only h @ U + the precomputed (xW + b) row
        gates = (xw_sc[pl.ds(row, Bp), :]
                 + jnp.dot(h, U_ref[...],
                           preferred_element_type=jnp.float32))    # (Bp, 4H)
        # gate columns are pre-permuted to [i, f, o, g]:
        # one sigmoid over a contiguous 3H slab, one tanh over the last H.
        sig = jax.nn.sigmoid(gates[:, :3 * H])
        i_t = sig[:, 0 * H:1 * H]
        f_t = sig[:, 1 * H:2 * H]
        o_t = sig[:, 2 * H:3 * H]
        g_t = jnp.tanh(gates[:, 3 * H:4 * H])
        c_new = f_t * c + i_t * g_t
        h_new = o_t * jnp.tanh(c_new)
        hid_sc[pl.ds(row, Bp), :] = h_new
        return (h_new, c_new)

    lax.fori_loop(0, T, step, (h0, c0), unroll=True)

    # ---- classifier for all timesteps at once (out of the serial loop) ----
    logits = (jnp.dot(hid_sc[...], Wc_ref[...],
                      preferred_element_type=jnp.float32)
              + bc_ref[...])                                       # (T*Bp, NCp)
    out_ref[...] = jax.nn.sigmoid(logits).astype(out_ref.dtype)


def net_forward(points, times, params):
    """points: (B, T, F) f32, times: (B, T) f32 -> classes (B, T, NC) f32."""
    W, U, b, Wc, bc = params
    B, T, F = points.shape
    H = U.shape[0]
    NC = Wc.shape[1]
    Bp = 8                                   # f32 sublane minimum
    NCp = 128                                # lane-dense classifier output
    Fp = ((F + 7) // 8) * 8                  # sublane-aligned feature count

    # --- trace-time param prep (free at runtime) ---------------------------
    # gate-column permutation [i, f, g, o] -> [i, f, o, g]
    def perm(M):
        return jnp.concatenate([M[..., :2 * H], M[..., 3 * H:4 * H],
                                M[..., 2 * H:3 * H]], axis=-1)

    Wg = perm(W)                             # (F+1, 4H)
    Ug = perm(U)                             # (H, 4H)
    bg = perm(b).reshape(1, 4 * H)
    Wp = jnp.zeros((Fp, 4 * H), jnp.float32).at[:F, :].set(Wg[:F, :])
    Wt = Wg[F:F + 1, :]                      # time-column weight row (1, 4H)

    Wc_pad = jnp.zeros((H, NCp), jnp.float32).at[:, :NC].set(Wc)
    bc_pad = jnp.zeros((1, NCp), jnp.float32).at[0, :NC].set(bc)

    # --- input prep: pad batch to Bp, flatten to time-major rows -----------
    pts_p = jnp.zeros((Bp, T, Fp), jnp.float32).at[:B, :, :F].set(points)
    ts_p = jnp.zeros((Bp, T), jnp.float32).at[:B, :].set(times)
    pts_tm = jnp.transpose(pts_p, (1, 0, 2)).reshape(T * Bp, Fp)
    ts_tm = jnp.transpose(ts_p, (1, 0)).reshape(T * Bp, 1)

    kernel = functools.partial(lstm_net_kernel, Bp=Bp, T=T, H=H)

    cls_flat = pl.pallas_call(
        kernel,
        out_shape=jax.ShapeDtypeStruct((T * Bp, NCp), jnp.float32),
        in_specs=[pl.BlockSpec(memory_space=pltpu.MemorySpace.VMEM)] * 8,
        out_specs=pl.BlockSpec(memory_space=pltpu.MemorySpace.VMEM),
        scratch_shapes=[pltpu.VMEM((T * Bp, 4 * H), jnp.float32),  # x@W + b
                        pltpu.VMEM((T * Bp, H), jnp.float32)],     # hidden_seq
    )(pts_tm, ts_tm, Wp, Wt, bg, Ug, Wc_pad, bc_pad)

    cls = jnp.transpose(cls_flat.reshape(T, Bp, NCp), (1, 0, 2))   # (Bp, T, NCp)
    return cls[:B, :, :NC]                                         # (B, T, NC)


def net_forward_ref(points, times, params):
    """Pure-JAX reference of Net.forward (use_lstm=True)."""
    W, U, b, Wc, bc = params
    x = jnp.concatenate([points, times[..., None]], axis=-1)
    B, T, _ = x.shape
    HS = U.shape[0]

    def step(carry, x_t):
        h_t, c_t = carry
        gates = x_t @ W + h_t @ U + b
        i_t = jax.nn.sigmoid(gates[:, :HS])
        f_t = jax.nn.sigmoid(gates[:, HS:2 * HS])
        g_t = jnp.tanh(gates[:, 2 * HS:3 * HS])
        o_t = jax.nn.sigmoid(gates[:, 3 * HS:])
        c_t = f_t * c_t + i_t * g_t
        h_t = o_t * jnp.tanh(c_t)
        return (h_t, c_t), h_t

    h0 = jnp.zeros((B, HS), jnp.float32)
    c0 = jnp.zeros((B, HS), jnp.float32)
    _, hidden_seq = jax.lax.scan(step, (h0, c0), jnp.transpose(x, (1, 0, 2)))
    hidden_seq = jnp.transpose(hidden_seq, (1, 0, 2))              # (B, T, HS)
    return jax.nn.sigmoid(hidden_seq @ Wc + bc)


def init_params(key, inp_dim, hidden_dim, num_classes):
    """Deterministic param init mirroring the PyTorch __init__ shapes."""
    Fin = inp_dim + 1                        # CustomLSTM(inp_dim + 1, hidden_dim)
    stdv = 1.0 / math.sqrt(hidden_dim)
    kW, kU, kb, kWc, kbc = jax.random.split(key, 5)
    W = jax.random.uniform(kW, (Fin, hidden_dim * 4), jnp.float32, -stdv, stdv)
    U = jax.random.uniform(kU, (hidden_dim, hidden_dim * 4), jnp.float32, -stdv, stdv)
    b = jax.random.uniform(kb, (hidden_dim * 4,), jnp.float32, -stdv, stdv)
    stdc = 1.0 / math.sqrt(hidden_dim)       # torch.nn.Linear default init bound
    Wc = jax.random.uniform(kWc, (hidden_dim, num_classes), jnp.float32, -stdc, stdc)
    bc = jax.random.uniform(kbc, (num_classes,), jnp.float32, -stdc, stdc)
    return W, U, b, Wc, bc


if __name__ == "__main__":
    # Small shapes consistent with the module: batch=2, seq=8, feature dim=23
    # (LSTM input = 24), hidden=128 (module default), default task -> 2 classes.
    B, T, F = 2, 8, 23
    HIDDEN = 128
    NUM_CLASSES = 2

    key = jax.random.PRNGKey(0)
    k_pts, k_ts, k_param = jax.random.split(key, 3)
    points = jax.random.normal(k_pts, (B, T, F), jnp.float32)
    times = jax.random.uniform(k_ts, (B, T), jnp.float32, 0.0, 10.0)
    params = init_params(k_param, F, HIDDEN, NUM_CLASSES)

    out = jax.block_until_ready(net_forward(points, times, params))
    ref = jax.block_until_ready(net_forward_ref(points, times, params))

    assert out.shape == (B, T, NUM_CLASSES), out.shape
    err = jnp.max(jnp.abs(out - ref))
    assert jnp.allclose(out, ref, atol=1e-4, rtol=1e-4), f"max abs err {err}"
    print("KERNEL_OK")
</pallas_src>

<mosaic_0001>
module attributes {stable_mosaic.version = 11 : i64} {
  func.func @lstm_net_kernel(%arg0: memref<64x24xf32, #tpu.memory_space<vmem>>, %arg1: memref<64x1xf32, #tpu.memory_space<vmem>>, %arg2: memref<24x512xf32, #tpu.memory_space<vmem>>, %arg3: memref<1x512xf32, #tpu.memory_space<vmem>>, %arg4: memref<1x512xf32, #tpu.memory_space<vmem>>, %arg5: memref<128x512xf32, #tpu.memory_space<vmem>>, %arg6: memref<128x128xf32, #tpu.memory_space<vmem>>, %arg7: memref<1x128xf32, #tpu.memory_space<vmem>>, %arg8: memref<64x128xf32, #tpu.memory_space<vmem>>, %arg9: memref<64x512xf32, #tpu.memory_space<vmem>>, %arg10: memref<64x128xf32, #tpu.memory_space<vmem>>) attributes {dimension_semantics = [], scalar_prefetch = 0 : i64, scratch_operands = 2 : i64, tpu.core_type = #tpu.core_type<tc>} {
    %c0 = arith.constant 0 : index
    %c0_0 = arith.constant 0 : index
    %0 = vector.load %arg0[%c0, %c0_0] : memref<64x24xf32, #tpu.memory_space<vmem>>, vector<64x24xf32>
    %c0_1 = arith.constant 0 : index
    %c0_2 = arith.constant 0 : index
    %1 = vector.load %arg2[%c0_1, %c0_2] : memref<24x512xf32, #tpu.memory_space<vmem>>, vector<24x512xf32>
    %cst = arith.constant dense<0.000000e+00> : vector<64x512xf32>
    %2 = tpu.matmul %0, %1, %cst {dimension_numbers = #tpu.dot_dimension_numbers<[1], [0], [0], [1], [0, 0, 1, 1], [], []>} : vector<64x24xf32>, vector<24x512xf32>, vector<64x512xf32> -> vector<64x512xf32>
    %c0_3 = arith.constant 0 : index
    %c0_4 = arith.constant 0 : index
    %3 = vector.load %arg1[%c0_3, %c0_4] : memref<64x1xf32, #tpu.memory_space<vmem>>, vector<64x1xf32>
    %c0_5 = arith.constant 0 : index
    %c0_6 = arith.constant 0 : index
    %4 = vector.load %arg3[%c0_5, %c0_6] : memref<1x512xf32, #tpu.memory_space<vmem>>, vector<1x512xf32>
    %5 = vector.broadcast %3 : vector<64x1xf32> to vector<64x512xf32>
    %6 = vector.broadcast %4 : vector<1x512xf32> to vector<64x512xf32>
    %7 = arith.mulf %5, %6 : vector<64x512xf32>
    %8 = arith.addf %2, %7 : vector<64x512xf32>
    %c0_7 = arith.constant 0 : index
    %c0_8 = arith.constant 0 : index
    %9 = vector.load %arg4[%c0_7, %c0_8] : memref<1x512xf32, #tpu.memory_space<vmem>>, vector<1x512xf32>
    %10 = vector.broadcast %9 : vector<1x512xf32> to vector<64x512xf32>
    %11 = arith.addf %8, %10 : vector<64x512xf32>
    %c0_9 = arith.constant 0 : index
    %c0_10 = arith.constant 0 : index
    %12 = vector.load %arg9[%c0_9, %c0_10] : memref<64x512xf32, #tpu.memory_space<vmem>>, vector<64x512xf32>
    tpu.vector_store %arg9[%c0_9, %c0_10], %11 {strides = array<i32>} : memref<64x512xf32, #tpu.memory_space<vmem>>, vector<64x512xf32>,
    %cst_11 = arith.constant 0.000000e+00 : f32
    %13 = vector.broadcast %cst_11 : f32 to vector<8x128xf32>
    %cst_12 = arith.constant 0.000000e+00 : f32
    %14 = vector.broadcast %cst_12 : f32 to vector<8x128xf32>
    %c0_i32 = arith.constant 0 : i32
    %c8_i32 = arith.constant 8 : i32
    %15 = arith.muli %c0_i32, %c8_i32 : i32
    %16 = tpu.assume_multiple %15, 8 : i32
    %17 = arith.index_cast %16 : i32 to index
    %c0_13 = arith.constant 0 : index
    %18 = vector.load %arg9[%17, %c0_13] : memref<64x512xf32, #tpu.memory_space<vmem>>, vector<8x512xf32>
    %c0_14 = arith.constant 0 : index
    %c0_15 = arith.constant 0 : index
    %19 = vector.load %arg5[%c0_14, %c0_15] : memref<128x512xf32, #tpu.memory_space<vmem>>, vector<128x512xf32>
    %cst_16 = arith.constant dense<0.000000e+00> : vector<8x512xf32>
    %20 = tpu.matmul %13, %19, %cst_16 {dimension_numbers = #tpu.dot_dimension_numbers<[1], [0], [0], [1], [0, 0, 1, 1], [], []>} : vector<8x128xf32>, vector<128x512xf32>, vector<8x512xf32> -> vector<8x512xf32>
    %21 = arith.addf %18, %20 : vector<8x512xf32>
    %22 = vector.extract_strided_slice %21 {offsets = [0, 0], sizes = [8, 384], strides = [1, 1]} : vector<8x512xf32> to vector<8x384xf32>
    %23 = arith.negf %22 : vector<8x384xf32>
    %24 = math.exp %23 : vector<8x384xf32>
    %cst_17 = arith.constant 1.000000e+00 : f32
    %25 = vector.broadcast %cst_17 : f32 to vector<8x384xf32>
    %26 = arith.addf %25, %24 : vector<8x384xf32>
    %27 = arith.divf %25, %26 : vector<8x384xf32>
    %28 = vector.extract_strided_slice %27 {offsets = [0, 0], sizes = [8, 128], strides = [1, 1]} : vector<8x384xf32> to vector<8x128xf32>
    %29 = vector.extract_strided_slice %27 {offsets = [0, 128], sizes = [8, 128], strides = [1, 1]} : vector<8x384xf32> to vector<8x128xf32>
    %30 = vector.extract_strided_slice %27 {offsets = [0, 256], sizes = [8, 128], strides = [1, 1]} : vector<8x384xf32> to vector<8x128xf32>
    %31 = vector.extract_strided_slice %21 {offsets = [0, 384], sizes = [8, 128], strides = [1, 1]} : vector<8x512xf32> to vector<8x128xf32>
    %32 = math.tanh %31 : vector<8x128xf32>
    %33 = arith.mulf %29, %14 : vector<8x128xf32>
    %34 = arith.mulf %28, %32 : vector<8x128xf32>
    %35 = arith.addf %33, %34 : vector<8x128xf32>
    %36 = math.tanh %35 : vector<8x128xf32>
    %37 = arith.mulf %30, %36 : vector<8x128xf32>
    %38 = arith.index_cast %16 : i32 to index
    %c0_18 = arith.constant 0 : index
    %39 = vector.load %arg10[%38, %c0_18] : memref<64x128xf32, #tpu.memory_space<vmem>>, vector<8x128xf32>
    tpu.vector_store %arg10[%38, %c0_18], %37 {strides = array<i32>} : memref<64x128xf32, #tpu.memory_space<vmem>>, vector<8x128xf32>,
    %c1_i32 = arith.constant 1 : i32
    %c8_i32_19 = arith.constant 8 : i32
    %40 = arith.muli %c1_i32, %c8_i32_19 : i32
    %41 = tpu.assume_multiple %40, 8 : i32
    %42 = arith.index_cast %41 : i32 to index
    %c0_20 = arith.constant 0 : index
    %43 = vector.load %arg9[%42, %c0_20] : memref<64x512xf32, #tpu.memory_space<vmem>>, vector<8x512xf32>
    %c0_21 = arith.constant 0 : index
    %c0_22 = arith.constant 0 : index
    %44 = vector.load %arg5[%c0_21, %c0_22] : memref<128x512xf32, #tpu.memory_space<vmem>>, vector<128x512xf32>
    %cst_23 = arith.constant dense<0.000000e+00> : vector<8x512xf32>
    %45 = tpu.matmul %37, %44, %cst_23 {dimension_numbers = #tpu.dot_dimension_numbers<[1], [0], [0], [1], [0, 0, 1, 1], [], []>} : vector<8x128xf32>, vector<128x512xf32>, vector<8x512xf32> -> vector<8x512xf32>
    %46 = arith.addf %43, %45 : vector<8x512xf32>
    %47 = vector.extract_strided_slice %46 {offsets = [0, 0], sizes = [8, 384], strides = [1, 1]} : vector<8x512xf32> to vector<8x384xf32>
    %48 = arith.negf %47 : vector<8x384xf32>
    %49 = math.exp %48 : vector<8x384xf32>
    %cst_24 = arith.constant 1.000000e+00 : f32
    %50 = vector.broadcast %cst_24 : f32 to vector<8x384xf32>
    %51 = arith.addf %50, %49 : vector<8x384xf32>
    %52 = arith.divf %50, %51 : vector<8x384xf32>
    %53 = vector.extract_strided_slice %52 {offsets = [0, 0], sizes = [8, 128], strides = [1, 1]} : vector<8x384xf32> to vector<8x128xf32>
    %54 = vector.extract_strided_slice %52 {offsets = [0, 128], sizes = [8, 128], strides = [1, 1]} : vector<8x384xf32> to vector<8x128xf32>
    %55 = vector.extract_strided_slice %52 {offsets = [0, 256], sizes = [8, 128], strides = [1, 1]} : vector<8x384xf32> to vector<8x128xf32>
    %56 = vector.extract_strided_slice %46 {offsets = [0, 384], sizes = [8, 128], strides = [1, 1]} : vector<8x512xf32> to vector<8x128xf32>
    %57 = math.tanh %56 : vector<8x128xf32>
    %58 = arith.mulf %54, %35 : vector<8x128xf32>
    %59 = arith.mulf %53, %57 : vector<8x128xf32>
    %60 = arith.addf %58, %59 : vector<8x128xf32>
    %61 = math.tanh %60 : vector<8x128xf32>
    %62 = arith.mulf %55, %61 : vector<8x128xf32>
    %63 = arith.index_cast %41 : i32 to index
    %c0_25 = arith.constant 0 : index
    %64 = vector.load %arg10[%63, %c0_25] : memref<64x128xf32, #tpu.memory_space<vmem>>, vector<8x128xf32>
    tpu.vector_store %arg10[%63, %c0_25], %62 {strides = array<i32>} : memref<64x128xf32, #tpu.memory_space<vmem>>, vector<8x128xf32>,
    %c2_i32 = arith.constant 2 : i32
    %c8_i32_26 = arith.constant 8 : i32
    %65 = arith.muli %c2_i32, %c8_i32_26 : i32
    %66 = tpu.assume_multiple %65, 8 : i32
    %67 = arith.index_cast %66 : i32 to index
    %c0_27 = arith.constant 0 : index
    %68 = vector.load %arg9[%67, %c0_27] : memref<64x512xf32, #tpu.memory_space<vmem>>, vector<8x512xf32>
    %c0_28 = arith.constant 0 : index
    %c0_29 = arith.constant 0 : index
    %69 = vector.load %arg5[%c0_28, %c0_29] : memref<128x512xf32, #tpu.memory_space<vmem>>, vector<128x512xf32>
    %cst_30 = arith.constant dense<0.000000e+00> : vector<8x512xf32>
    %70 = tpu.matmul %62, %69, %cst_30 {dimension_numbers = #tpu.dot_dimension_numbers<[1], [0], [0], [1], [0, 0, 1, 1], [], []>} : vector<8x128xf32>, vector<128x512xf32>, vector<8x512xf32> -> vector<8x512xf32>
    %71 = arith.addf %68, %70 : vector<8x512xf32>
    %72 = vector.extract_strided_slice %71 {offsets = [0, 0], sizes = [8, 384], strides = [1, 1]} : vector<8x512xf32> to vector<8x384xf32>
    %73 = arith.negf %72 : vector<8x384xf32>
    %74 = math.exp %73 : vector<8x384xf32>
    %cst_31 = arith.constant 1.000000e+00 : f32
    %75 = vector.broadcast %cst_31 : f32 to vector<8x384xf32>
    %76 = arith.addf %75, %74 : vector<8x384xf32>
    %77 = arith.divf %75, %76 : vector<8x384xf32>
    %78 = vector.extract_strided_slice %77 {offsets = [0, 0], sizes = [8, 128], strides = [1, 1]} : vector<8x384xf32> to vector<8x128xf32>
    %79 = vector.extract_strided_slice %77 {offsets = [0, 128], sizes = [8, 128], strides = [1, 1]} : vector<8x384xf32> to vector<8x128xf32>
    %80 = vector.extract_strided_slice %77 {offsets = [0, 256], sizes = [8, 128], strides = [1, 1]} : vector<8x384xf32> to vector<8x128xf32>
    %81 = vector.extract_strided_slice %71 {offsets = [0, 384], sizes = [8, 128], strides = [1, 1]} : vector<8x512xf32> to vector<8x128xf32>
    %82 = math.tanh %81 : vector<8x128xf32>
    %83 = arith.mulf %79, %60 : vector<8x128xf32>
    %84 = arith.mulf %78, %82 : vector<8x128xf32>
    %85 = arith.addf %83, %84 : vector<8x128xf32>
    %86 = math.tanh %85 : vector<8x128xf32>
    %87 = arith.mulf %80, %86 : vector<8x128xf32>
    %88 = arith.index_cast %66 : i32 to index
    %c0_32 = arith.constant 0 : index
    %89 = vector.load %arg10[%88, %c0_32] : memref<64x128xf32, #tpu.memory_space<vmem>>, vector<8x128xf32>
    tpu.vector_store %arg10[%88, %c0_32], %87 {strides = array<i32>} : memref<64x128xf32, #tpu.memory_space<vmem>>, vector<8x128xf32>,
    %c3_i32 = arith.constant 3 : i32
    %c8_i32_33 = arith.constant 8 : i32
    %90 = arith.muli %c3_i32, %c8_i32_33 : i32
    %91 = tpu.assume_multiple %90, 8 : i32
    %92 = arith.index_cast %91 : i32 to index
    %c0_34 = arith.constant 0 : index
    %93 = vector.load %arg9[%92, %c0_34] : memref<64x512xf32, #tpu.memory_space<vmem>>, vector<8x512xf32>
    %c0_35 = arith.constant 0 : index
    %c0_36 = arith.constant 0 : index
    %94 = vector.load %arg5[%c0_35, %c0_36] : memref<128x512xf32, #tpu.memory_space<vmem>>, vector<128x512xf32>
    %cst_37 = arith.constant dense<0.000000e+00> : vector<8x512xf32>
    %95 = tpu.matmul %87, %94, %cst_37 {dimension_numbers = #tpu.dot_dimension_numbers<[1], [0], [0], [1], [0, 0, 1, 1], [], []>} : vector<8x128xf32>, vector<128x512xf32>, vector<8x512xf32> -> vector<8x512xf32>
    %96 = arith.addf %93, %95 : vector<8x512xf32>
    %97 = vector.extract_strided_slice %96 {offsets = [0, 0], sizes = [8, 384], strides = [1, 1]} : vector<8x512xf32> to vector<8x384xf32>
    %98 = arith.negf %97 : vector<8x384xf32>
    %99 = math.exp %98 : vector<8x384xf32>
    %cst_38 = arith.constant 1.000000e+00 : f32
    %100 = vector.broadcast %cst_38 : f32 to vector<8x384xf32>
    %101 = arith.addf %100, %99 : vector<8x384xf32>
    %102 = arith.divf %100, %101 : vector<8x384xf32>
    %103 = vector.extract_strided_slice %102 {offsets = [0, 0], sizes = [8, 128], strides = [1, 1]} : vector<8x384xf32> to vector<8x128xf32>
    %104 = vector.extract_strided_slice %102 {offsets = [0, 128], sizes = [8, 128], strides = [1, 1]} : vector<8x384xf32> to vector<8x128xf32>
    %105 = vector.extract_strided_slice %102 {offsets = [0, 256], sizes = [8, 128], strides = [1, 1]} : vector<8x384xf32> to vector<8x128xf32>
    %106 = vector.extract_strided_slice %96 {offsets = [0, 384], sizes = [8, 128], strides = [1, 1]} : vector<8x512xf32> to vector<8x128xf32>
    %107 = math.tanh %106 : vector<8x128xf32>
    %108 = arith.mulf %104, %85 : vector<8x128xf32>
    %109 = arith.mulf %103, %107 : vector<8x128xf32>
    %110 = arith.addf %108, %109 : vector<8x128xf32>
    %111 = math.tanh %110 : vector<8x128xf32>
    %112 = arith.mulf %105, %111 : vector<8x128xf32>
    %113 = arith.index_cast %91 : i32 to index
    %c0_39 = arith.constant 0 : index
    %114 = vector.load %arg10[%113, %c0_39] : memref<64x128xf32, #tpu.memory_space<vmem>>, vector<8x128xf32>
    tpu.vector_store %arg10[%113, %c0_39], %112 {strides = array<i32>} : memref<64x128xf32, #tpu.memory_space<vmem>>, vector<8x128xf32>,
    %c4_i32 = arith.constant 4 : i32
    %c8_i32_40 = arith.constant 8 : i32
    %115 = arith.muli %c4_i32, %c8_i32_40 : i32
    %116 = tpu.assume_multiple %115, 8 : i32
    %117 = arith.index_cast %116 : i32 to index
    %c0_41 = arith.constant 0 : index
    %118 = vector.load %arg9[%117, %c0_41] : memref<64x512xf32, #tpu.memory_space<vmem>>, vector<8x512xf32>
    %c0_42 = arith.constant 0 : index
    %c0_43 = arith.constant 0 : index
    %119 = vector.load %arg5[%c0_42, %c0_43] : memref<128x512xf32, #tpu.memory_space<vmem>>, vector<128x512xf32>
    %cst_44 = arith.constant dense<0.000000e+00> : vector<8x512xf32>
    %120 = tpu.matmul %112, %119, %cst_44 {dimension_numbers = #tpu.dot_dimension_numbers<[1], [0], [0], [1], [0, 0, 1, 1], [], []>} : vector<8x128xf32>, vector<128x512xf32>, vector<8x512xf32> -> vector<8x512xf32>
    %121 = arith.addf %118, %120 : vector<8x512xf32>
    %122 = vector.extract_strided_slice %121 {offsets = [0, 0], sizes = [8, 384], strides = [1, 1]} : vector<8x512xf32> to vector<8x384xf32>
    %123 = arith.negf %122 : vector<8x384xf32>
    %124 = math.exp %123 : vector<8x384xf32>
    %cst_45 = arith.constant 1.000000e+00 : f32
    %125 = vector.broadcast %cst_45 : f32 to vector<8x384xf32>
    %126 = arith.addf %125, %124 : vector<8x384xf32>
    %127 = arith.divf %125, %126 : vector<8x384xf32>
    %128 = vector.extract_strided_slice %127 {offsets = [0, 0], sizes = [8, 128], strides = [1, 1]} : vector<8x384xf32> to vector<8x128xf32>
    %129 = vector.extract_strided_slice %127 {offsets = [0, 128], sizes = [8, 128], strides = [1, 1]} : vector<8x384xf32> to vector<8x128xf32>
    %130 = vector.extract_strided_slice %127 {offsets = [0, 256], sizes = [8, 128], strides = [1, 1]} : vector<8x384xf32> to vector<8x128xf32>
    %131 = vector.extract_strided_slice %121 {offsets = [0, 384], sizes = [8, 128], strides = [1, 1]} : vector<8x512xf32> to vector<8x128xf32>
    %132 = math.tanh %131 : vector<8x128xf32>
    %133 = arith.mulf %129, %110 : vector<8x128xf32>
    %134 = arith.mulf %128, %132 : vector<8x128xf32>
    %135 = arith.addf %133, %134 : vector<8x128xf32>
    %136 = math.tanh %135 : vector<8x128xf32>
    %137 = arith.mulf %130, %136 : vector<8x128xf32>
    %138 = arith.index_cast %116 : i32 to index
    %c0_46 = arith.constant 0 : index
    %139 = vector.load %arg10[%138, %c0_46] : memref<64x128xf32, #tpu.memory_space<vmem>>, vector<8x128xf32>
    tpu.vector_store %arg10[%138, %c0_46], %137 {strides = array<i32>} : memref<64x128xf32, #tpu.memory_space<vmem>>, vector<8x128xf32>,
    %c5_i32 = arith.constant 5 : i32
    %c8_i32_47 = arith.constant 8 : i32
    %140 = arith.muli %c5_i32, %c8_i32_47 : i32
    %141 = tpu.assume_multiple %140, 8 : i32
    %142 = arith.index_cast %141 : i32 to index
    %c0_48 = arith.constant 0 : index
    %143 = vector.load %arg9[%142, %c0_48] : memref<64x512xf32, #tpu.memory_space<vmem>>, vector<8x512xf32>
    %c0_49 = arith.constant 0 : index
    %c0_50 = arith.constant 0 : index
    %144 = vector.load %arg5[%c0_49, %c0_50] : memref<128x512xf32, #tpu.memory_space<vmem>>, vector<128x512xf32>
    %cst_51 = arith.constant dense<0.000000e+00> : vector<8x512xf32>
    %145 = tpu.matmul %137, %144, %cst_51 {dimension_numbers = #tpu.dot_dimension_numbers<[1], [0], [0], [1], [0, 0, 1, 1], [], []>} : vector<8x128xf32>, vector<128x512xf32>, vector<8x512xf32> -> vector<8x512xf32>
    %146 = arith.addf %143, %145 : vector<8x512xf32>
    %147 = vector.extract_strided_slice %146 {offsets = [0, 0], sizes = [8, 384], strides = [1, 1]} : vector<8x512xf32> to vector<8x384xf32>
    %148 = arith.negf %147 : vector<8x384xf32>
    %149 = math.exp %148 : vector<8x384xf32>
    %cst_52 = arith.constant 1.000000e+00 : f32
    %150 = vector.broadcast %cst_52 : f32 to vector<8x384xf32>
    %151 = arith.addf %150, %149 : vector<8x384xf32>
    %152 = arith.divf %150, %151 : vector<8x384xf32>
    %153 = vector.extract_strided_slice %152 {offsets = [0, 0], sizes = [8, 128], strides = [1, 1]} : vector<8x384xf32> to vector<8x128xf32>
    %154 = vector.extract_strided_slice %152 {offsets = [0, 128], sizes = [8, 128], strides = [1, 1]} : vector<8x384xf32> to vector<8x128xf32>
    %155 = vector.extract_strided_slice %152 {offsets = [0, 256], sizes = [8, 128], strides = [1, 1]} : vector<8x384xf32> to vector<8x128xf32>
    %156 = vector.extract_strided_slice %146 {offsets = [0, 384], sizes = [8, 128], strides = [1, 1]} : vector<8x512xf32> to vector<8x128xf32>
    %157 = math.tanh %156 : vector<8x128xf32>
    %158 = arith.mulf %154, %135 : vector<8x128xf32>
    %159 = arith.mulf %153, %157 : vector<8x128xf32>
    %160 = arith.addf %158, %159 : vector<8x128xf32>
    %161 = math.tanh %160 : vector<8x128xf32>
    %162 = arith.mulf %155, %161 : vector<8x128xf32>
    %163 = arith.index_cast %141 : i32 to index
    %c0_53 = arith.constant 0 : index
    %164 = vector.load %arg10[%163, %c0_53] : memref<64x128xf32, #tpu.memory_space<vmem>>, vector<8x128xf32>
    tpu.vector_store %arg10[%163, %c0_53], %162 {strides = array<i32>} : memref<64x128xf32, #tpu.memory_space<vmem>>, vector<8x128xf32>,
    %c6_i32 = arith.constant 6 : i32
    %c8_i32_54 = arith.constant 8 : i32
    %165 = arith.muli %c6_i32, %c8_i32_54 : i32
    %166 = tpu.assume_multiple %165, 8 : i32
    %167 = arith.index_cast %166 : i32 to index
    %c0_55 = arith.constant 0 : index
    %168 = vector.load %arg9[%167, %c0_55] : memref<64x512xf32, #tpu.memory_space<vmem>>, vector<8x512xf32>
    %c0_56 = arith.constant 0 : index
    %c0_57 = arith.constant 0 : index
    %169 = vector.load %arg5[%c0_56, %c0_57] : memref<128x512xf32, #tpu.memory_space<vmem>>, vector<128x512xf32>
    %cst_58 = arith.constant dense<0.000000e+00> : vector<8x512xf32>
    %170 = tpu.matmul %162, %169, %cst_58 {dimension_numbers = #tpu.dot_dimension_numbers<[1], [0], [0], [1], [0, 0, 1, 1], [], []>} : vector<8x128xf32>, vector<128x512xf32>, vector<8x512xf32> -> vector<8x512xf32>
    %171 = arith.addf %168, %170 : vector<8x512xf32>
    %172 = vector.extract_strided_slice %171 {offsets = [0, 0], sizes = [8, 384], strides = [1, 1]} : vector<8x512xf32> to vector<8x384xf32>
    %173 = arith.negf %172 : vector<8x384xf32>
    %174 = math.exp %173 : vector<8x384xf32>
    %cst_59 = arith.constant 1.000000e+00 : f32
    %175 = vector.broadcast %cst_59 : f32 to vector<8x384xf32>
    %176 = arith.addf %175, %174 : vector<8x384xf32>
    %177 = arith.divf %175, %176 : vector<8x384xf32>
    %178 = vector.extract_strided_slice %177 {offsets = [0, 0], sizes = [8, 128], strides = [1, 1]} : vector<8x384xf32> to vector<8x128xf32>
    %179 = vector.extract_strided_slice %177 {offsets = [0, 128], sizes = [8, 128], strides = [1, 1]} : vector<8x384xf32> to vector<8x128xf32>
    %180 = vector.extract_strided_slice %177 {offsets = [0, 256], sizes = [8, 128], strides = [1, 1]} : vector<8x384xf32> to vector<8x128xf32>
    %181 = vector.extract_strided_slice %171 {offsets = [0, 384], sizes = [8, 128], strides = [1, 1]} : vector<8x512xf32> to vector<8x128xf32>
    %182 = math.tanh %181 : vector<8x128xf32>
    %183 = arith.mulf %179, %160 : vector<8x128xf32>
    %184 = arith.mulf %178, %182 : vector<8x128xf32>
    %185 = arith.addf %183, %184 : vector<8x128xf32>
    %186 = math.tanh %185 : vector<8x128xf32>
    %187 = arith.mulf %180, %186 : vector<8x128xf32>
    %188 = arith.index_cast %166 : i32 to index
    %c0_60 = arith.constant 0 : index
    %189 = vector.load %arg10[%188, %c0_60] : memref<64x128xf32, #tpu.memory_space<vmem>>, vector<8x128xf32>
    tpu.vector_store %arg10[%188, %c0_60], %187 {strides = array<i32>} : memref<64x128xf32, #tpu.memory_space<vmem>>, vector<8x128xf32>,
    %c7_i32 = arith.constant 7 : i32
    %c8_i32_61 = arith.constant 8 : i32
    %190 = arith.muli %c7_i32, %c8_i32_61 : i32
    %191 = tpu.assume_multiple %190, 8 : i32
    %192 = arith.index_cast %191 : i32 to index
    %c0_62 = arith.constant 0 : index
    %193 = vector.load %arg9[%192, %c0_62] : memref<64x512xf32, #tpu.memory_space<vmem>>, vector<8x512xf32>
    %c0_63 = arith.constant 0 : index
    %c0_64 = arith.constant 0 : index
    %194 = vector.load %arg5[%c0_63, %c0_64] : memref<128x512xf32, #tpu.memory_space<vmem>>, vector<128x512xf32>
    %cst_65 = arith.constant dense<0.000000e+00> : vector<8x512xf32>
    %195 = tpu.matmul %187, %194, %cst_65 {dimension_numbers = #tpu.dot_dimension_numbers<[1], [0], [0], [1], [0, 0, 1, 1], [], []>} : vector<8x128xf32>, vector<128x512xf32>, vector<8x512xf32> -> vector<8x512xf32>
    %196 = arith.addf %193, %195 : vector<8x512xf32>
    %197 = vector.extract_strided_slice %196 {offsets = [0, 0], sizes = [8, 384], strides = [1, 1]} : vector<8x512xf32> to vector<8x384xf32>
    %198 = arith.negf %197 : vector<8x384xf32>
    %199 = math.exp %198 : vector<8x384xf32>
    %cst_66 = arith.constant 1.000000e+00 : f32
    %200 = vector.broadcast %cst_66 : f32 to vector<8x384xf32>
    %201 = arith.addf %200, %199 : vector<8x384xf32>
    %202 = arith.divf %200, %201 : vector<8x384xf32>
    %203 = vector.extract_strided_slice %202 {offsets = [0, 0], sizes = [8, 128], strides = [1, 1]} : vector<8x384xf32> to vector<8x128xf32>
    %204 = vector.extract_strided_slice %202 {offsets = [0, 128], sizes = [8, 128], strides = [1, 1]} : vector<8x384xf32> to vector<8x128xf32>
    %205 = vector.extract_strided_slice %202 {offsets = [0, 256], sizes = [8, 128], strides = [1, 1]} : vector<8x384xf32> to vector<8x128xf32>
    %206 = vector.extract_strided_slice %196 {offsets = [0, 384], sizes = [8, 128], strides = [1, 1]} : vector<8x512xf32> to vector<8x128xf32>
    %207 = math.tanh %206 : vector<8x128xf32>
    %208 = arith.mulf %204, %185 : vector<8x128xf32>
    %209 = arith.mulf %203, %207 : vector<8x128xf32>
    %210 = arith.addf %208, %209 : vector<8x128xf32>
    %211 = math.tanh %210 : vector<8x128xf32>
    %212 = arith.mulf %205, %211 : vector<8x128xf32>
    %213 = arith.index_cast %191 : i32 to index
    %c0_67 = arith.constant 0 : index
    %214 = vector.load %arg10[%213, %c0_67] : memref<64x128xf32, #tpu.memory_space<vmem>>, vector<8x128xf32>
    tpu.vector_store %arg10[%213, %c0_67], %212 {strides = array<i32>} : memref<64x128xf32, #tpu.memory_space<vmem>>, vector<8x128xf32>,
    %c8_i32_68 = arith.constant 8 : i32
    %c0_69 = arith.constant 0 : index
    %c0_70 = arith.constant 0 : index
    %215 = vector.load %arg10[%c0_69, %c0_70] : memref<64x128xf32, #tpu.memory_space<vmem>>, vector<64x128xf32>
    %c0_71 = arith.constant 0 : index
    %c0_72 = arith.constant 0 : index
    %216 = vector.load %arg6[%c0_71, %c0_72] : memref<128x128xf32, #tpu.memory_space<vmem>>, vector<128x128xf32>
    %cst_73 = arith.constant dense<0.000000e+00> : vector<64x128xf32>
    %217 = tpu.matmul %215, %216, %cst_73 {dimension_numbers = #tpu.dot_dimension_numbers<[1], [0], [0], [1], [0, 0, 1, 1], [], []>} : vector<64x128xf32>, vector<128x128xf32>, vector<64x128xf32> -> vector<64x128xf32>
    %c0_74 = arith.constant 0 : index
    %c0_75 = arith.constant 0 : index
    %218 = vector.load %arg7[%c0_74, %c0_75] : memref<1x128xf32, #tpu.memory_space<vmem>>, vector<1x128xf32>
    %219 = vector.broadcast %218 : vector<1x128xf32> to vector<64x128xf32>
    %220 = arith.addf %217, %219 : vector<64x128xf32>
    %221 = arith.negf %220 : vector<64x128xf32>
    %222 = math.exp %221 : vector<64x128xf32>
    %cst_76 = arith.constant 1.000000e+00 : f32
    %223 = vector.broadcast %cst_76 : f32 to vector<64x128xf32>
    %224 = arith.addf %223, %222 : vector<64x128xf32>
    %225 = arith.divf %223, %224 : vector<64x128xf32>
    %c0_77 = arith.constant 0 : index
    %c0_78 = arith.constant 0 : index
    %226 = vector.load %arg8[%c0_77, %c0_78] : memref<64x128xf32, #tpu.memory_space<vmem>>, vector<64x128xf32>
    tpu.vector_store %arg8[%c0_77, %c0_78], %225 {strides = array<i32>} : memref<64x128xf32, #tpu.memory_space<vmem>>, vector<64x128xf32>,
    return
  }
}

</mosaic_0001>

<llo_original>
// kernel: tpu_custom_call.1
$region0: #{tpu_custom_call.1}
  #allocation0 [shape = 'u32[]', space=smem, size = 0x4, offset = 0x4, fixed_abs, tag = 'smem constant byte address 0x4 - core index']
  #allocation1 [shape = 'u32[144,128]{1,0:T(1,128)}', space=vmem, size = 0x12000, scoped, tag = 'internal scratch']
  #allocation2 [shape = 'f32[64,512]{1,0:T(8,128)}', space=vmem, size = 0x20000, scoped, tag = 'scratch operand']
  #allocation3 [shape = 'f32[64,128]{1,0:T(8,128)}', space=vmem, size = 0x8000, scoped, tag = 'scratch operand']
  %s0 = inlined_call_operand.vmem [shape: f32[64,24], index: 0, kind: input, shape index: {}]
  %s1 = inlined_call_operand.vmem [shape: f32[64,1], index: 1, kind: input, shape index: {}]
  %s2 = inlined_call_operand.hbm [shape: f32[24,512], index: 2, kind: input, shape index: {}]
  %s3 = inlined_call_operand.vmem [shape: f32[1,512], index: 3, kind: input, shape index: {}]
  %s4 = inlined_call_operand.vmem [shape: f32[1,512], index: 4, kind: input, shape index: {}]
  %s5 = inlined_call_operand.hbm [shape: f32[128,512], index: 5, kind: input, shape index: {}]
  %s6 = inlined_call_operand.vmem [shape: f32[128,128], index: 6, kind: input, shape index: {}]
  %s7 = inlined_call_operand.vmem [shape: f32[1,128], index: 7, kind: input, shape index: {}]
  %s8 = inlined_call_operand.hbm [shape: f32[64,128], index: 8, kind: output, shape index: {}]
  %s9 = sld [smem:[#allocation0]]
  $region50: #{tpu_custom_call.1} parent=0
    _
  %s11 = ssub.s32 1, %s9
  %s12 = scalar_select 0, %s11, %s9
  $region1: #{tpu_custom_call.1} parent=0
    #allocation4 [shape = 'u8[49152]{0}', space=vmem, size = 0xc000, scoped, tag = 'input window, operand 2, single buffered']
    #allocation5 [shape = 's32[1]{0}', space=sflag, size = 0x4, scoped, tag = 'scoped memory for tpu_custom_call.1']
    #allocation6 [shape = 's32[1]{0}', space=sflag, size = 0x4, scoped, tag = 'scoped memory for tpu_custom_call.1']
    #allocation7 [shape = 'u8[262144]{0}', space=vmem, size = 0x40000, scoped, tag = 'input window, operand 5, single buffered']
    #allocation8 [shape = 's32[1]{0}', space=sflag, size = 0x4, scoped, tag = 'scoped memory for tpu_custom_call.1']
    #allocation9 [shape = 'u8[32768]{0}', space=vmem, size = 0x8000, scoped, tag = 'output window, operand 0, single buffered']
    %13 = vsyncpa [#allocation5], 0
    %14 = vsyncpa [#allocation8], 0
    %15 = vsyncpa [#allocation6], 0
    // Predicated region
    $region2: #{tpu_custom_call.1} parent=1 // pred_check
      _
    $region3: #{tpu_custom_call.1} parent=1 // pred_check_branch
      %17 = sbr.rel (0) target = $region5
    $region4: #{tpu_custom_call.1} parent=1 // pred_region
      _
    $region5: #{tpu_custom_call.1} parent=1 // pred_fallthru
      _
    // Predicated region
    $region6: #{tpu_custom_call.1} parent=1 // pred_check
      _
    $region7: #{tpu_custom_call.1} parent=1 // pred_check_branch
      %19 = sbr.rel (0) target = $region9
    $region8: #{tpu_custom_call.1} parent=1 // pred_region
      _
    $region9: #{tpu_custom_call.1} parent=1 // pred_fallthru
      _
    // Predicated region
    $region10: #{tpu_custom_call.1} parent=1 // pred_check
      _
    $region11: #{tpu_custom_call.1} parent=1 // pred_check_branch
      %21 = sbr.rel (0) target = $region13
    $region12: #{tpu_custom_call.1} parent=1 // pred_region
      %s23 = ssub.s32 1536, 1536
      %24 = vsyncadd [#allocation5], %s23
      %s25 = sshll.u32 [#allocation4], 4
      %s26 = int_to_ptr.vmem [resolvable:$true] %s25
      %31 = dma.hbm_to_vmem [thread:$0]  %s2, 1536, %s26, [#allocation5], 512, 512, 32
    $region13: #{tpu_custom_call.1} parent=1 // pred_fallthru
      _
    // Predicated region
    $region14: #{tpu_custom_call.1} parent=1 // pred_check
      _
    $region15: #{tpu_custom_call.1} parent=1 // pred_check_branch
      %33 = sbr.rel (0) target = $region17
    $region16: #{tpu_custom_call.1} parent=1 // pred_region
      _
    $region17: #{tpu_custom_call.1} parent=1 // pred_fallthru
      _
    // Predicated region
    $region18: #{tpu_custom_call.1} parent=1 // pred_check
      _
    $region19: #{tpu_custom_call.1} parent=1 // pred_check_branch
      %35 = sbr.rel (0) target = $region21
    $region20: #{tpu_custom_call.1} parent=1 // pred_region
      _
    $region21: #{tpu_custom_call.1} parent=1 // pred_fallthru
      _
    // Predicated region
    $region22: #{tpu_custom_call.1} parent=1 // pred_check
      _
    $region23: #{tpu_custom_call.1} parent=1 // pred_check_branch
      %37 = sbr.rel (0) target = $region25
    $region24: #{tpu_custom_call.1} parent=1 // pred_region
      %s39 = ssub.s32 8192, 8192
      %40 = vsyncadd [#allocation8], %s39
      %s41 = sshll.u32 [#allocation7], 4
      %s42 = int_to_ptr.vmem [resolvable:$true] %s41
      %47 = dma.hbm_to_vmem [thread:$0]  %s5, 8192, %s42, [#allocation8], 512, 512, 32
    $region25: #{tpu_custom_call.1} parent=1 // pred_fallthru
      _
    // Predicated region
    $region26: #{tpu_custom_call.1} parent=1 // pred_check
      _
    $region27: #{tpu_custom_call.1} parent=1 // pred_check_branch
      %49 = sbr.rel (0) target = $region29
    $region28: #{tpu_custom_call.1} parent=1 // pred_region
      _
    $region29: #{tpu_custom_call.1} parent=1 // pred_fallthru
      _
    // Predicated region
    $region30: #{tpu_custom_call.1} parent=1 // pred_check
      _
    $region31: #{tpu_custom_call.1} parent=1 // pred_check_branch
      %51 = sbr.rel (0) target = $region33
    $region32: #{tpu_custom_call.1} parent=1 // pred_region
      _
    $region33: #{tpu_custom_call.1} parent=1 // pred_fallthru
      _
    // Predicated region
    $region34: #{tpu_custom_call.1} parent=1 // pred_check
      _
    $region35: #{tpu_custom_call.1} parent=1 // pred_check_branch
      %53 = sbr.rel (0) target = $region37
    $region36: #{tpu_custom_call.1} parent=1 // pred_region
      %54 = dma.done [#allocation5], 1536
    $region37: #{tpu_custom_call.1} parent=1 // pred_fallthru
      _
    // Predicated region
    $region38: #{tpu_custom_call.1} parent=1 // pred_check
      _
    $region39: #{tpu_custom_call.1} parent=1 // pred_check_branch
      %56 = sbr.rel (0) target = $region41
    $region40: #{tpu_custom_call.1} parent=1 // pred_region
      %57 = dma.done [#allocation8], 8192
    $region41: #{tpu_custom_call.1} parent=1 // pred_fallthru
      _
    %v58 = vld [vmem:[%s0] sm:$0xff]
    %v59 = vld [vmem:[%s0 + $0x8] sm:$0xff]
    %v60 = vld [vmem:[%s0 + $0x10] sm:$0xff]
    %v61 = vld [vmem:[%s0 + $0x18] sm:$0xff]
    %v62 = vld [vmem:[%s0 + $0x20] sm:$0xff]
    %v63 = vld [vmem:[%s0 + $0x28] sm:$0xff]
    %v64 = vld [vmem:[%s0 + $0x30] sm:$0xff]
    %v65 = vld [vmem:[%s0 + $0x38] sm:$0xff]
    %v66 = vld [vmem:[#allocation4] sm:$0xff]
    %v67 = vld [vmem:[#allocation4 + $0x8] sm:$0xff]
    %v68 = vld [vmem:[#allocation4 + $0x10] sm:$0xff]
    %v69 = vld [vmem:[#allocation4 + $0x18] sm:$0xff]
    %v70 = vld [vmem:[#allocation4 + $0x20] sm:$0xff]
    %v71 = vld [vmem:[#allocation4 + $0x28] sm:$0xff]
    %v72 = vld [vmem:[#allocation4 + $0x30] sm:$0xff]
    %v73 = vld [vmem:[#allocation4 + $0x38] sm:$0xff]
    %v74 = vld [vmem:[#allocation4 + $0x40] sm:$0xff]
    %v75 = vld [vmem:[#allocation4 + $0x48] sm:$0xff]
    %v76 = vld [vmem:[#allocation4 + $0x50] sm:$0xff]
    %v77 = vld [vmem:[#allocation4 + $0x58] sm:$0xff]
    %v78 = vld [vmem:[%s1] sm:$0xff]
    %v79 = vld [vmem:[%s1 + $0x8] sm:$0xff]
    %v80 = vld [vmem:[%s1 + $0x10] sm:$0xff]
    %v81 = vld [vmem:[%s1 + $0x18] sm:$0xff]
    %v82 = vld [vmem:[%s1 + $0x20] sm:$0xff]
    %v83 = vld [vmem:[%s1 + $0x28] sm:$0xff]
    %v84 = vld [vmem:[%s1 + $0x30] sm:$0xff]
    %v85 = vld [vmem:[%s1 + $0x38] sm:$0xff]
    %v86 = vld [vmem:[%s3] sm:$0xf]
    %88 = vset.pattern.permute.xlu0 0
    %89 = vperm.xlu0 %88, %v78
    %v90 = vpop.permute.xlu0 %89
    %93 = vset.pattern.permute.xlu0 0
    %94 = vperm.xlu0 %93, %v79
    %v95 = vpop.permute.xlu0 %94
    %98 = vset.pattern.permute.xlu0 0
    %99 = vperm.xlu0 %98, %v80
    %v100 = vpop.permute.xlu0 %99
    %103 = vset.pattern.permute.xlu0 0
    %104 = vperm.xlu0 %103, %v81
    %v105 = vpop.permute.xlu0 %104
    %108 = vset.pattern.permute.xlu0 0
    %109 = vperm.xlu0 %108, %v82
    %v110 = vpop.permute.xlu0 %109
    %113 = vset.pattern.permute.xlu0 0
    %114 = vperm.xlu0 %113, %v83
    %v115 = vpop.permute.xlu0 %114
    %118 = vset.pattern.permute.xlu0 0
    %119 = vperm.xlu0 %118, %v84
    %v120 = vpop.permute.xlu0 %119
    %123 = vset.pattern.permute.xlu0 0
    %124 = vperm.xlu0 %123, %v85
    %v125 = vpop.permute.xlu0 %124
    %v128 = vlaneseq
    %v129 = vshrl.u32 %v128, 7
    %v130 = vsub.s32 0, %v129
    %v131 = vrot.slane %v86, %v130
    %v132 = vlaneseq
    %v133 = vshrl.u32 %v132, 7
    %v134 = vsub.s32 1, %v133
    %v135 = vrot.slane %v86, %v134
    %v136 = vlaneseq
    %v137 = vshrl.u32 %v136, 7
    %v138 = vsub.s32 2, %v137
    %v139 = vrot.slane %v86, %v138
    %v140 = vlaneseq
    %v141 = vshrl.u32 %v140, 7
    %v142 = vsub.s32 3, %v141
    %v143 = vrot.slane %v86, %v142
    %v148 = vmul.f32 %v90, %v131
    %v149 = vmul.f32 %v90, %v135
    %v150 = vmul.f32 %v90, %v139
    %v151 = vmul.f32 %v90, %v143
    %v152 = vmul.f32 %v95, %v131
    %v153 = vmul.f32 %v95, %v135
    %v154 = vmul.f32 %v95, %v139
    %v155 = vmul.f32 %v95, %v143
    %v156 = vmul.f32 %v100, %v131
    %v157 = vmul.f32 %v100, %v135
    %v158 = vmul.f32 %v100, %v139
    %v159 = vmul.f32 %v100, %v143
    %v160 = vmul.f32 %v105, %v131
    %v161 = vmul.f32 %v105, %v135
    %v162 = vmul.f32 %v105, %v139
    %v163 = vmul.f32 %v105, %v143
    %v164 = vmul.f32 %v110, %v131
    %v165 = vmul.f32 %v110, %v135
    %v166 = vmul.f32 %v110, %v139
    %v167 = vmul.f32 %v110, %v143
    %v168 = vmul.f32 %v115, %v131
    %v169 = vmul.f32 %v115, %v135
    %v170 = vmul.f32 %v115, %v139
    %v171 = vmul.f32 %v115, %v143
    %v172 = vmul.f32 %v120, %v131
    %v173 = vmul.f32 %v120, %v135
    %v174 = vmul.f32 %v120, %v139
    %v175 = vmul.f32 %v120, %v143
    %v176 = vmul.f32 %v125, %v131
    %v177 = vmul.f32 %v125, %v135
    %v178 = vmul.f32 %v125, %v139
    %v179 = vmul.f32 %v125, %v143
    %vm180 = vcmask 195584
    %v182 = vsel %vm180, %v58, 0
    %v185 = vsel %vm180, %v59, 0
    %v188 = vsel %vm180, %v60, 0
    %v191 = vsel %vm180, %v61, 0
    %v194 = vsel %vm180, %v62, 0
    %v197 = vsel %vm180, %v63, 0
    %v200 = vsel %vm180, %v64, 0
    %v203 = vsel %vm180, %v65, 0
    %205 = vmatprep.subr.mxu0 %v67
    %206 = vmatpush1.msra.mxu0 %v66
    %207 = vmatprep.subr.mxu0 %v71
    %208 = vmatpush1.msra.mxu0 %v70
    %209 = vmatprep.subr.mxu0 %v75
    %210 = vmatpush1.msra.mxu0 %v74
    %211 = vmatprep.subr.mxu0 0.0
    %212 = vmatpush1.msra.mxu0 0.0
    %213 = vmatprep.subr.mxu0 0.0
    %214 = vmatpush1.msra.mxu0 0.0
    %215 = vmatprep.subr.mxu0 0.0
    %216 = vmatpush1.msra.mxu0 0.0
    %217 = vmatprep.subr.mxu0 0.0
    %218 = vmatpush1.msra.mxu0 0.0
    %219 = vmatprep.subr.mxu0 0.0
    %220 = vmatpush1.msra.mxu0 0.0
    %221 = vmatprep.subr.mxu0 0.0
    %222 = vmatpush1.msra.mxu0 0.0
    %223 = vmatprep.subr.mxu0 0.0
    %224 = vmatpush1.msra.mxu0 0.0
    %225 = vmatprep.subr.mxu0 0.0
    %226 = vmatpush1.msra.mxu0 0.0
    %227 = vmatprep.subr.mxu0 0.0
    %228 = vmatpush1.msra.mxu0 0.0
    %229 = vmatprep.subr.mxu0 0.0
    %230 = vmatpush1.msra.mxu0 0.0
    %231 = vmatprep.subr.mxu0 0.0
    %232 = vmatpush1.msra.mxu0 0.0
    %233 = vmatprep.subr.mxu0 0.0
    %234 = vmatpush1.msra.mxu0 0.0
    %235 = vmatprep.subr.mxu0 0.0
    %236 = vmatpush1.msra.mxu0 0.0
    %237 = vmatprep.subr.mxu0 0.0
    %238 = vmatpush1.msra.mxu0 0.0
    %239 = vmatprep.subr.mxu0 0.0
    %240 = vmatpush1.msra.mxu0 0.0
    %241 = vmatprep.subr.mxu0 0.0
    %242 = vmatpush1.msra.mxu0 0.0
    %243 = vmatprep.subr.mxu0 0.0
    %244 = vmatpush1.msra.mxu0 0.0
    %245 = vmatprep.subr.mxu0 0.0
    %246 = vmatpush1.msra.mxu0 0.0
    %247 = vmatprep.subr.mxu0 0.0
    %248 = vmatpush1.msra.mxu0 0.0
    %249 = vmatprep.subr.mxu0 0.0
    %250 = vmatpush1.msra.mxu0 0.0
    %251 = vmatprep.subr.mxu0 0.0
    %252 = vmatpush1.msra.mxu0 0.0
    %253 = vmatprep.subr.mxu0 0.0
    %254 = vmatpush1.msra.mxu0 0.0
    %255 = vmatprep.subr.mxu0 0.0
    %256 = vmatpush1.msra.mxu0 0.0
    %257 = vmatprep.subr.mxu0 0.0
    %258 = vmatpush1.msra.mxu0 0.0
    %259 = vmatprep.subr.mxu0 0.0
    %260 = vmatpush1.msra.mxu0 0.0
    %261 = vmatprep.subr.mxu0 0.0
    %262 = vmatpush1.msra.mxu0 0.0
    %263 = vmatprep.subr.mxu0 0.0
    %264 = vmatpush1.msra.mxu0 0.0
    %265 = vmatprep.subr.mxu0 0.0
    %266 = vmatpush1.msra.mxu0 0.0
    %267 = vmatprep.subr.mxu0 0.0
    %268 = vmatpush1.msra.mxu0 0.0
    %269 = vmatprep.mubr.f32.mxu0 0.0
    %270 = vmatmul.mubr.f32.gmra.mrb[0].mxu0 %v182
    %v271 = vpop.f32.mrb[0].mxu0
    %v272 = vadd.f32 %v148, %v271
    %v273 = vpop.f32.mrb[0].mxu0
    %v274 = vadd.f32 %v149, %v273
    %275 = vmatprep.mubr.f32.mxu0 0.0
    %276 = vmatmul.mubr.f32.gmra.mrb[0].mxu0 %v185
    %v277 = vpop.f32.mrb[0].mxu0
    %v278 = vadd.f32 %v152, %v277
    %v279 = vpop.f32.mrb[0].mxu0
    %v280 = vadd.f32 %v153, %v279
    %281 = vmatprep.mubr.f32.mxu0 0.0
    %282 = vmatmul.mubr.f32.gmra.mrb[0].mxu0 %v188
    %v283 = vpop.f32.mrb[0].mxu0
    %v284 = vadd.f32 %v156, %v283
    %v285 = vpop.f32.mrb[0].mxu0
    %v286 = vadd.f32 %v157, %v285
    %287 = vmatprep.mubr.f32.mxu0 0.0
    %288 = vmatmul.mubr.f32.gmra.mrb[0].mxu0 %v191
    %v289 = vpop.f32.mrb[0].mxu0
    %v290 = vadd.f32 %v160, %v289
    %v291 = vpop.f32.mrb[0].mxu0
    %v292 = vadd.f32 %v161, %v291
    %293 = vmatprep.mubr.f32.mxu0 0.0
    %294 = vmatmul.mubr.f32.gmra.mrb[0].mxu0 %v194
    %v295 = vpop.f32.mrb[0].mxu0
    %v296 = vadd.f32 %v164, %v295
    %v297 = vpop.f32.mrb[0].mxu0
    %v298 = vadd.f32 %v165, %v297
    %299 = vmatprep.mubr.f32.mxu0 0.0
    %300 = vmatmul.mubr.f32.gmra.mrb[0].mxu0 %v197
    %v301 = vpop.f32.mrb[0].mxu0
    %v302 = vadd.f32 %v168, %v301
    %v303 = vpop.f32.mrb[0].mxu0
    %v304 = vadd.f32 %v169, %v303
    %305 = vmatprep.mubr.f32.mxu0 0.0
    %306 = vmatmul.mubr.f32.gmra.mrb[0].mxu0 %v200
    %v307 = vpop.f32.mrb[0].mxu0
    %v308 = vadd.f32 %v172, %v307
    %v309 = vpop.f32.mrb[0].mxu0
    %v310 = vadd.f32 %v173, %v309
    %311 = vmatprep.mubr.f32.mxu0 0.0
    %312 = vmatmul.mubr.f32.gmra.mrb[0].mxu0 %v203
    %v313 = vpop.f32.mrb[0].mxu0
    %v314 = vadd.f32 %v176, %v313
    %v315 = vpop.f32.mrb[0].mxu0
    %v316 = vadd.f32 %v177, %v315
    %317 = vdwg.mxu0
    %318 = vmatprep.subr.mxu0 %v69
    %319 = vmatpush1.msra.mxu0 %v68
    %320 = vmatprep.subr.mxu0 %v73
    %321 = vmatpush1.msra.mxu0 %v72
    %322 = vmatprep.subr.mxu0 %v77
    %323 = vmatpush1.msra.mxu0 %v76
    %324 = vmatprep.subr.mxu0 0.0
    %325 = vmatpush1.msra.mxu0 0.0
    %326 = vmatprep.subr.mxu0 0.0
    %327 = vmatpush1.msra.mxu0 0.0
    %328 = vmatprep.subr.mxu0 0.0
    %329 = vmatpush1.msra.mxu0 0.0
    %330 = vmatprep.subr.mxu0 0.0
    %331 = vmatpush1.msra.mxu0 0.0
    %332 = vmatprep.subr.mxu0 0.0
    %333 = vmatpush1.msra.mxu0 0.0
    %334 = vmatprep.subr.mxu0 0.0
    %335 = vmatpush1.msra.mxu0 0.0
    %336 = vmatprep.subr.mxu0 0.0
    %337 = vmatpush1.msra.mxu0 0.0
    %338 = vmatprep.subr.mxu0 0.0
    %339 = vmatpush1.msra.mxu0 0.0
    %340 = vmatprep.subr.mxu0 0.0
    %341 = vmatpush1.msra.mxu0 0.0
    %342 = vmatprep.subr.mxu0 0.0
    %343 = vmatpush1.msra.mxu0 0.0
    %344 = vmatprep.subr.mxu0 0.0
    %345 = vmatpush1.msra.mxu0 0.0
    %346 = vmatprep.subr.mxu0 0.0
    %347 = vmatpush1.msra.mxu0 0.0
    %348 = vmatprep.subr.mxu0 0.0
    %349 = vmatpush1.msra.mxu0 0.0
    %350 = vmatprep.subr.mxu0 0.0
    %351 = vmatpush1.msra.mxu0 0.0
    %352 = vmatprep.subr.mxu0 0.0
    %353 = vmatpush1.msra.mxu0 0.0
    %354 = vmatprep.subr.mxu0 0.0
    %355 = vmatpush1.msra.mxu0 0.0
    %356 = vmatprep.subr.mxu0 0.0
    %357 = vmatpush1.msra.mxu0 0.0
    %358 = vmatprep.subr.mxu0 0.0
    %359 = vmatpush1.msra.mxu0 0.0
    %360 = vmatprep.subr.mxu0 0.0
    %361 = vmatpush1.msra.mxu0 0.0
    %362 = vmatprep.subr.mxu0 0.0
    %363 = vmatpush1.msra.mxu0 0.0
    %364 = vmatprep.subr.mxu0 0.0
    %365 = vmatpush1.msra.mxu0 0.0
    %366 = vmatprep.subr.mxu0 0.0
    %367 = vmatpush1.msra.mxu0 0.0
    %368 = vmatprep.subr.mxu0 0.0
    %369 = vmatpush1.msra.mxu0 0.0
    %370 = vmatprep.subr.mxu0 0.0
    %371 = vmatpush1.msra.mxu0 0.0
    %372 = vmatprep.subr.mxu0 0.0
    %373 = vmatpush1.msra.mxu0 0.0
    %374 = vmatprep.subr.mxu0 0.0
    %375 = vmatpush1.msra.mxu0 0.0
    %376 = vmatprep.subr.mxu0 0.0
    %377 = vmatpush1.msra.mxu0 0.0
    %378 = vmatprep.subr.mxu0 0.0
    %379 = vmatpush1.msra.mxu0 0.0
    %380 = vmatprep.subr.mxu0 0.0
    %381 = vmatpush1.msra.mxu0 0.0
    %382 = vmatprep.mubr.f32.mxu0 0.0
    %383 = vmatmul.mubr.f32.gmra.mrb[0].mxu0 %v182
    %v384 = vpop.f32.mrb[0].mxu0
    %v385 = vadd.f32 %v150, %v384
    %v386 = vpop.f32.mrb[0].mxu0
    %v387 = vadd.f32 %v151, %v386
    %388 = vmatprep.mubr.f32.mxu0 0.0
    %389 = vmatmul.mubr.f32.gmra.mrb[0].mxu0 %v185
    %v390 = vpop.f32.mrb[0].mxu0
    %v391 = vadd.f32 %v154, %v390
    %v392 = vpop.f32.mrb[0].mxu0
    %v393 = vadd.f32 %v155, %v392
    %394 = vmatprep.mubr.f32.mxu0 0.0
    %395 = vmatmul.mubr.f32.gmra.mrb[0].mxu0 %v188
    %v396 = vpop.f32.mrb[0].mxu0
    %v397 = vadd.f32 %v158, %v396
    %v398 = vpop.f32.mrb[0].mxu0
    %v399 = vadd.f32 %v159, %v398
    %400 = vmatprep.mubr.f32.mxu0 0.0
    %401 = vmatmul.mubr.f32.gmra.mrb[0].mxu0 %v191
    %v402 = vpop.f32.mrb[0].mxu0
    %v403 = vadd.f32 %v162, %v402
    %v404 = vpop.f32.mrb[0].mxu0
    %v405 = vadd.f32 %v163, %v404
    %406 = vmatprep.mubr.f32.mxu0 0.0
    %407 = vmatmul.mubr.f32.gmra.mrb[0].mxu0 %v194
    %v408 = vpop.f32.mrb[0].mxu0
    %v409 = vadd.f32 %v166, %v408
    %v410 = vpop.f32.mrb[0].mxu0
    %v411 = vadd.f32 %v167, %v410
    %412 = vmatprep.mubr.f32.mxu0 0.0
    %413 = vmatmul.mubr.f32.gmra.mrb[0].mxu0 %v197
    %v414 = vpop.f32.mrb[0].mxu0
    %v415 = vadd.f32 %v170, %v414
    %v416 = vpop.f32.mrb[0].mxu0
    %v417 = vadd.f32 %v171, %v416
    %418 = vmatprep.mubr.f32.mxu0 0.0
    %419 = vmatmul.mubr.f32.gmra.mrb[0].mxu0 %v200
    %v420 = vpop.f32.mrb[0].mxu0
    %v421 = vadd.f32 %v174, %v420
    %v422 = vpop.f32.mrb[0].mxu0
    %v423 = vadd.f32 %v175, %v422
    %424 = vmatprep.mubr.f32.mxu0 0.0
    %425 = vmatmul.mubr.f32.gmra.mrb[0].mxu0 %v203
    %v426 = vpop.f32.mrb[0].mxu0
    %v427 = vadd.f32 %v178, %v426
    %v428 = vpop.f32.mrb[0].mxu0
    %v429 = vadd.f32 %v179, %v428
    %430 = vdwg.mxu0
    %v431 = vld [vmem:[%s4] sm:$0xf]
    %v433 = vlaneseq
    %v434 = vshrl.u32 %v433, 7
    %v435 = vsub.s32 0, %v434
    %v436 = vrot.slane %v431, %v435
    %v437 = vlaneseq
    %v438 = vshrl.u32 %v437, 7
    %v439 = vsub.s32 1, %v438
    %v440 = vrot.slane %v431, %v439
    %v441 = vlaneseq
    %v442 = vshrl.u32 %v441, 7
    %v443 = vsub.s32 2, %v442
    %v444 = vrot.slane %v431, %v443
    %v445 = vlaneseq
    %v446 = vshrl.u32 %v445, 7
    %v447 = vsub.s32 3, %v446
    %v448 = vrot.slane %v431, %v447
    %v453 = vadd.f32 %v272, %v436
    %v454 = vadd.f32 %v274, %v440
    %v455 = vadd.f32 %v385, %v444
    %v456 = vadd.f32 %v387, %v448
    %v457 = vadd.f32 %v278, %v436
    %v458 = vadd.f32 %v280, %v440
    %v459 = vadd.f32 %v391, %v444
    %v460 = vadd.f32 %v393, %v448
    %v461 = vadd.f32 %v284, %v436
    %v462 = vadd.f32 %v286, %v440
    %v463 = vadd.f32 %v397, %v444
    %v464 = vadd.f32 %v399, %v448
    %v465 = vadd.f32 %v290, %v436
    %v466 = vadd.f32 %v292, %v440
    %v467 = vadd.f32 %v403, %v444
    %v468 = vadd.f32 %v405, %v448
    %v469 = vadd.f32 %v296, %v436
    %v470 = vadd.f32 %v298, %v440
    %v471 = vadd.f32 %v409, %v444
    %v472 = vadd.f32 %v411, %v448
    %v473 = vadd.f32 %v302, %v436
    %v474 = vadd.f32 %v304, %v440
    %v475 = vadd.f32 %v415, %v444
    %v476 = vadd.f32 %v417, %v448
    %v477 = vadd.f32 %v308, %v436
    %v478 = vadd.f32 %v310, %v440
    %v479 = vadd.f32 %v421, %v444
    %v480 = vadd.f32 %v423, %v448
    %v481 = vadd.f32 %v314, %v436
    %v482 = vadd.f32 %v316, %v440
    %v483 = vadd.f32 %v427, %v444
    %v484 = vadd.f32 %v429, %v448
    %485 = vst [vmem:[#allocation2] sm:$0xff] %v453
    %486 = vst [vmem:[#allocation2 + $0x8] sm:$0xff] %v454
    %487 = vst [vmem:[#allocation2 + $0x10] sm:$0xff] %v455
    %488 = vst [vmem:[#allocation2 + $0x18] sm:$0xff] %v456
    %489 = vst [vmem:[#allocation2 + $0x20] sm:$0xff] %v457
    %490 = vst [vmem:[#allocation2 + $0x28] sm:$0xff] %v458
    %491 = vst [vmem:[#allocation2 + $0x30] sm:$0xff] %v459
    %492 = vst [vmem:[#allocation2 + $0x38] sm:$0xff] %v460
    %493 = vst [vmem:[#allocation2 + $0x40] sm:$0xff] %v461
    %494 = vst [vmem:[#allocation2 + $0x48] sm:$0xff] %v462
    %495 = vst [vmem:[#allocation2 + $0x50] sm:$0xff] %v463
    %496 = vst [vmem:[#allocation2 + $0x58] sm:$0xff] %v464
    %497 = vst [vmem:[#allocation2 + $0x60] sm:$0xff] %v465
    %498 = vst [vmem:[#allocation2 + $0x68] sm:$0xff] %v466
    %499 = vst [vmem:[#allocation2 + $0x70] sm:$0xff] %v467
    %500 = vst [vmem:[#allocation2 + $0x78] sm:$0xff] %v468
    %501 = vst [vmem:[#allocation2 + $0x80] sm:$0xff] %v469
    %502 = vst [vmem:[#allocation2 + $0x88] sm:$0xff] %v470
    %503 = vst [vmem:[#allocation2 + $0x90] sm:$0xff] %v471
    %504 = vst [vmem:[#allocation2 + $0x98] sm:$0xff] %v472
    %505 = vst [vmem:[#allocation2 + $0xa0] sm:$0xff] %v473
    %506 = vst [vmem:[#allocation2 + $0xa8] sm:$0xff] %v474
    %507 = vst [vmem:[#allocation2 + $0xb0] sm:$0xff] %v475
    %508 = vst [vmem:[#allocation2 + $0xb8] sm:$0xff] %v476
    %509 = vst [vmem:[#allocation2 + $0xc0] sm:$0xff] %v477
    %510 = vst [vmem:[#allocation2 + $0xc8] sm:$0xff] %v478
    %511 = vst [vmem:[#allocation2 + $0xd0] sm:$0xff] %v479
    %512 = vst [vmem:[#allocation2 + $0xd8] sm:$0xff] %v480
    %513 = vst [vmem:[#allocation2 + $0xe0] sm:$0xff] %v481
    %514 = vst [vmem:[#allocation2 + $0xe8] sm:$0xff] %v482
    %515 = vst [vmem:[#allocation2 + $0xf0] sm:$0xff] %v483
    %516 = vst [vmem:[#allocation2 + $0xf8] sm:$0xff] %v484
    %s517 = smul.u32 0, 4
    %s518 = smul.addr %s517, 8
    %s519 = scalar_lea.vmem [#allocation2], %s518
    %v520 = vld [vmem:[%s519] sm:$0xff]
    %v521 = vld [vmem:[%s519 + $0x8] sm:$0xff]
    %v522 = vld [vmem:[%s519 + $0x10] sm:$0xff]
    %v523 = vld [vmem:[%s519 + $0x18] sm:$0xff]
    %v524 = vld [vmem:[#allocation7] sm:$0xff]
    %v525 = vld [vmem:[#allocation7 + $0x8] sm:$0xff]
    %v526 = vld [vmem:[#allocation7 + $0x10] sm:$0xff]
    %v527 = vld [vmem:[#allocation7 + $0x18] sm:$0xff]
    %v528 = vld [vmem:[#allocation7 + $0x20] sm:$0xff]
    %v529 = vld [vmem:[#allocation7 + $0x28] sm:$0xff]
    %v530 = vld [vmem:[#allocation7 + $0x30] sm:$0xff]
    %v531 = vld [vmem:[#allocation7 + $0x38] sm:$0xff]
    %v532 = vld [vmem:[#allocation7 + $0x40] sm:$0xff]
    %v533 = vld [vmem:[#allocation7 + $0x48] sm:$0xff]
    %v534 = vld [vmem:[#allocation7 + $0x50] sm:$0xff]
    %v535 = vld [vmem:[#allocation7 + $0x58] sm:$0xff]
    %v536 = vld [vmem:[#allocation7 + $0x60] sm:$0xff]
    %v537 = vld [vmem:[#allocation7 + $0x68] sm:$0xff]
    %v538 = vld [vmem:[#allocation7 + $0x70] sm:$0xff]
    %v539 = vld [vmem:[#allocation7 + $0x78] sm:$0xff]
    %v540 = vld [vmem:[#allocation7 + $0x80] sm:$0xff]
    %v541 = vld [vmem:[#allocation7 + $0x88] sm:$0xff]
    %v542 = vld [vmem:[#allocation7 + $0x90] sm:$0xff]
    %v543 = vld [vmem:[#allocation7 + $0x98] sm:$0xff]
    %v544 = vld [vmem:[#allocation7 + $0xa0] sm:$0xff]
    %v545 = vld [vmem:[#allocation7 + $0xa8] sm:$0xff]
    %v546 = vld [vmem:[#allocation7 + $0xb0] sm:$0xff]
    %v547 = vld [vmem:[#allocation7 + $0xb8] sm:$0xff]
    %v548 = vld [vmem:[#allocation7 + $0xc0] sm:$0xff]
    %v549 = vld [vmem:[#allocation7 + $0xc8] sm:$0xff]
    %v550 = vld [vmem:[#allocation7 + $0xd0] sm:$0xff]
    %v551 = vld [vmem:[#allocation7 + $0xd8] sm:$0xff]
    %v552 = vld [vmem:[#allocation7 + $0xe0] sm:$0xff]
    %v553 = vld [vmem:[#allocation7 + $0xe8] sm:$0xff]
    %v554 = vld [vmem:[#allocation7 + $0xf0] sm:$0xff]
    %v555 = vld [vmem:[#allocation7 + $0xf8] sm:$0xff]
    %v556 = vld [vmem:[#allocation7 + $0x100] sm:$0xff]
    %v557 = vld [vmem:[#allocation7 + $0x108] sm:$0xff]
    %v558 = vld [vmem:[#allocation7 + $0x110] sm:$0xff]
    %v559 = vld [vmem:[#allocation7 + $0x118] sm:$0xff]
    %v560 = vld [vmem:[#allocation7 + $0x120] sm:$0xff]
    %v561 = vld [vmem:[#allocation7 + $0x128] sm:$0xff]
    %v562 = vld [vmem:[#allocation7 + $0x130] sm:$0xff]
    %v563 = vld [vmem:[#allocation7 + $0x138] sm:$0xff]
    %v564 = vld [vmem:[#allocation7 + $0x140] sm:$0xff]
    %v565 = vld [vmem:[#allocation7 + $0x148] sm:$0xff]
    %v566 = vld [vmem:[#allocation7 + $0x150] sm:$0xff]
    %v567 = vld [vmem:[#allocation7 + $0x158] sm:$0xff]
    %v568 = vld [vmem:[#allocation7 + $0x160] sm:$0xff]
    %v569 = vld [vmem:[#allocation7 + $0x168] sm:$0xff]
    %v570 = vld [vmem:[#allocation7 + $0x170] sm:$0xff]
    %v571 = vld [vmem:[#allocation7 + $0x178] sm:$0xff]
    %v572 = vld [vmem:[#allocation7 + $0x180] sm:$0xff]
    %v573 = vld [vmem:[#allocation7 + $0x188] sm:$0xff]
    %v574 = vld [vmem:[#allocation7 + $0x190] sm:$0xff]
    %v575 = vld [vmem:[#allocation7 + $0x198] sm:$0xff]
    %v576 = vld [vmem:[#allocation7 + $0x1a0] sm:$0xff]
    %v577 = vld [vmem:[#allocation7 + $0x1a8] sm:$0xff]
    %v578 = vld [vmem:[#allocation7 + $0x1b0] sm:$0xff]
    %v579 = vld [vmem:[#allocation7 + $0x1b8] sm:$0xff]
    %v580 = vld [vmem:[#allocation7 + $0x1c0] sm:$0xff]
    %v581 = vld [vmem:[#allocation7 + $0x1c8] sm:$0xff]
    %v582 = vld [vmem:[#allocation7 + $0x1d0] sm:$0xff]
    %v583 = vld [vmem:[#allocation7 + $0x1d8] sm:$0xff]
    %v584 = vld [vmem:[#allocation7 + $0x1e0] sm:$0xff]
    %v585 = vld [vmem:[#allocation7 + $0x1e8] sm:$0xff]
    %v586 = vld [vmem:[#allocation7 + $0x1f0] sm:$0xff]
    %v587 = vld [vmem:[#allocation7 + $0x1f8] sm:$0xff]
    %588 = vmatprep.subr.mxu0 %v525
    %589 = vmatpush1.msra.mxu0 %v524
    %590 = vmatprep.subr.mxu0 %v529
    %591 = vmatpush1.msra.mxu0 %v528
    %592 = vmatprep.subr.mxu0 %v533
    %593 = vmatpush1.msra.mxu0 %v532
    %594 = vmatprep.subr.mxu0 %v537
    %595 = vmatpush1.msra.mxu0 %v536
    %596 = vmatprep.subr.mxu0 %v541
    %597 = vmatpush1.msra.mxu0 %v540
    %598 = vmatprep.subr.mxu0 %v545
    %599 = vmatpush1.msra.mxu0 %v544
    %600 = vmatprep.subr.mxu0 %v549
    %601 = vmatpush1.msra.mxu0 %v548
    %602 = vmatprep.subr.mxu0 %v553
    %603 = vmatpush1.msra.mxu0 %v552
    %604 = vmatprep.subr.mxu0 %v557
    %605 = vmatpush1.msra.mxu0 %v556
    %606 = vmatprep.subr.mxu0 %v561
    %607 = vmatpush1.msra.mxu0 %v560
    %608 = vmatprep.subr.mxu0 %v565
    %609 = vmatpush1.msra.mxu0 %v564
    %610 = vmatprep.subr.mxu0 %v569
    %611 = vmatpush1.msra.mxu0 %v568
    %612 = vmatprep.subr.mxu0 %v573
    %613 = vmatpush1.msra.mxu0 %v572
    %614 = vmatprep.subr.mxu0 %v577
    %615 = vmatpush1.msra.mxu0 %v576
    %616 = vmatprep.subr.mxu0 %v581
    %617 = vmatpush1.msra.mxu0 %v580
    %618 = vmatprep.subr.mxu0 %v585
    %619 = vmatpush1.msra.mxu0 %v584
    %620 = vmatprep.subr.mxu0 0.0
    %621 = vmatpush1.msra.mxu0 0.0
    %622 = vmatprep.subr.mxu0 0.0
    %623 = vmatpush1.msra.mxu0 0.0
    %624 = vmatprep.subr.mxu0 0.0
    %625 = vmatpush1.msra.mxu0 0.0
    %626 = vmatprep.subr.mxu0 0.0
    %627 = vmatpush1.msra.mxu0 0.0
    %628 = vmatprep.subr.mxu0 0.0
    %629 = vmatpush1.msra.mxu0 0.0
    %630 = vmatprep.subr.mxu0 0.0
    %631 = vmatpush1.msra.mxu0 0.0
    %632 = vmatprep.subr.mxu0 0.0
    %633 = vmatpush1.msra.mxu0 0.0
    %634 = vmatprep.subr.mxu0 0.0
    %635 = vmatpush1.msra.mxu0 0.0
    %636 = vmatprep.subr.mxu0 0.0
    %637 = vmatpush1.msra.mxu0 0.0
    %638 = vmatprep.subr.mxu0 0.0
    %639 = vmatpush1.msra.mxu0 0.0
    %640 = vmatprep.subr.mxu0 0.0
    %641 = vmatpush1.msra.mxu0 0.0
    %642 = vmatprep.subr.mxu0 0.0
    %643 = vmatpush1.msra.mxu0 0.0
    %644 = vmatprep.subr.mxu0 0.0
    %645 = vmatpush1.msra.mxu0 0.0
    %646 = vmatprep.subr.mxu0 0.0
    %647 = vmatpush1.msra.mxu0 0.0
    %648 = vmatprep.subr.mxu0 0.0
    %649 = vmatpush1.msra.mxu0 0.0
    %650 = vmatprep.subr.mxu0 0.0
    %651 = vmatpush1.msra.mxu0 0.0
    %652 = vmatprep.mubr.f32.mxu0 0.0
    %653 = vmatmul.mubr.f32.gmra.mrb[0].mxu0 0.0
    %v654 = vpop.f32.mrb[0].mxu0
    %v655 = vadd.f32 0.0, %v654
    %v656 = vpop.f32.mrb[0].mxu0
    %v657 = vadd.f32 0.0, %v656
    %658 = vdwg.mxu0
    %659 = vmatprep.subr.mxu0 %v527
    %660 = vmatpush1.msra.mxu0 %v526
    %661 = vmatprep.subr.mxu0 %v531
    %662 = vmatpush1.msra.mxu0 %v530
    %663 = vmatprep.subr.mxu0 %v535
    %664 = vmatpush1.msra.mxu0 %v534
    %665 = vmatprep.subr.mxu0 %v539
    %666 = vmatpush1.msra.mxu0 %v538
    %667 = vmatprep.subr.mxu0 %v543
    %668 = vmatpush1.msra.mxu0 %v542
    %669 = vmatprep.subr.mxu0 %v547
    %670 = vmatpush1.msra.mxu0 %v546
    %671 = vmatprep.subr.mxu0 %v551
    %672 = vmatpush1.msra.mxu0 %v550
    %673 = vmatprep.subr.mxu0 %v555
    %674 = vmatpush1.msra.mxu0 %v554
    %675 = vmatprep.subr.mxu0 %v559
    %676 = vmatpush1.msra.mxu0 %v558
    %677 = vmatprep.subr.mxu0 %v563
    %678 = vmatpush1.msra.mxu0 %v562
    %679 = vmatprep.subr.mxu0 %v567
    %680 = vmatpush1.msra.mxu0 %v566
    %681 = vmatprep.subr.mxu0 %v571
    %682 = vmatpush1.msra.mxu0 %v570
    %683 = vmatprep.subr.mxu0 %v575
    %684 = vmatpush1.msra.mxu0 %v574
    %685 = vmatprep.subr.mxu0 %v579
    %686 = vmatpush1.msra.mxu0 %v578
    %687 = vmatprep.subr.mxu0 %v583
    %688 = vmatpush1.msra.mxu0 %v582
    %689 = vmatprep.subr.mxu0 %v587
    %690 = vmatpush1.msra.mxu0 %v586
    %691 = vmatprep.subr.mxu0 0.0
    %692 = vmatpush1.msra.mxu0 0.0
    %693 = vmatprep.subr.mxu0 0.0
    %694 = vmatpush1.msra.mxu0 0.0
    %695 = vmatprep.subr.mxu0 0.0
    %696 = vmatpush1.msra.mxu0 0.0
    %697 = vmatprep.subr.mxu0 0.0
    %698 = vmatpush1.msra.mxu0 0.0
    %699 = vmatprep.subr.mxu0 0.0
    %700 = vmatpush1.msra.mxu0 0.0
    %701 = vmatprep.subr.mxu0 0.0
    %702 = vmatpush1.msra.mxu0 0.0
    %703 = vmatprep.subr.mxu0 0.0
    %704 = vmatpush1.msra.mxu0 0.0
    %705 = vmatprep.subr.mxu0 0.0
    %706 = vmatpush1.msra.mxu0 0.0
    %707 = vmatprep.subr.mxu0 0.0
    %708 = vmatpush1.msra.mxu0 0.0
    %709 = vmatprep.subr.mxu0 0.0
    %710 = vmatpush1.msra.mxu0 0.0
    %711 = vmatprep.subr.mxu0 0.0
    %712 = vmatpush1.msra.mxu0 0.0
    %713 = vmatprep.subr.mxu0 0.0
    %714 = vmatpush1.msra.mxu0 0.0
    %715 = vmatprep.subr.mxu0 0.0
    %716 = vmatpush1.msra.mxu0 0.0
    %717 = vmatprep.subr.mxu0 0.0
    %718 = vmatpush1.msra.mxu0 0.0
    %719 = vmatprep.subr.mxu0 0.0
    %720 = vmatpush1.msra.mxu0 0.0
    %721 = vmatprep.subr.mxu0 0.0
    %722 = vmatpush1.msra.mxu0 0.0
    %723 = vmatprep.mubr.f32.mxu0 0.0
    %724 = vmatmul.mubr.f32.gmra.mrb[0].mxu0 0.0
    %v725 = vpop.f32.mrb[0].mxu0
    %v726 = vadd.f32 0.0, %v725
    %v727 = vpop.f32.mrb[0].mxu0
    %v728 = vadd.f32 0.0, %v727
    %729 = vdwg.mxu0
    %v730 = vadd.f32 %v520, %v655
    %v731 = vadd.f32 %v521, %v657
    %v732 = vadd.f32 %v522, %v726
    %v733 = vadd.f32 %v523, %v728
    %v734 = vxor.u32 %v730, 2147483648
    %v735 = vxor.u32 %v731, 2147483648
    %v736 = vxor.u32 %v732, 2147483648
    %v737 = vmul.f32 %v734, 1.442695
    %v738 = vpow.pop %v737
    %v739 = vmul.f32 %v735, 1.442695
    %v740 = vpow.pop %v739
    %v741 = vmul.f32 %v736, 1.442695
    %v742 = vpow.pop %v741
    %v743 = vadd.f32 %v738, 1.0
    %v744 = vadd.f32 %v740, 1.0
    %v745 = vadd.f32 %v742, 1.0
    %v746 = vrcp.pop %v743
    %v747 = vmul.f32 1.0, %v746
    %v748 = vrcp.pop %v744
    %v749 = vmul.f32 1.0, %v748
    %v750 = vrcp.pop %v745
    %v751 = vmul.f32 1.0, %v750
    %v752 = vtanh.pop %v733
    %v753 = vmul.f32 %v749, 0.0
    %v754 = vmul.f32 %v747, %v752
    %v755 = vadd.f32 %v753, %v754
    %v756 = vtanh.pop %v755
    %v757 = vmul.f32 %v751, %v756
    %758 = vst [vmem:[#allocation3] sm:$0xff] %v757
    %s759 = smul.u32 1, 4
    %s760 = smul.addr %s759, 8
    %s761 = scalar_lea.vmem [#allocation2], %s760
    %v762 = vld [vmem:[%s761] sm:$0xff]
    %v763 = vld [vmem:[%s761 + $0x8] sm:$0xff]
    %v764 = vld [vmem:[%s761 + $0x10] sm:$0xff]
    %v765 = vld [vmem:[%s761 + $0x18] sm:$0xff]
    %v766 = vld [vmem:[#allocation7] sm:$0xff]
    %v767 = vld [vmem:[#allocation7 + $0x8] sm:$0xff]
    %v768 = vld [vmem:[#allocation7 + $0x10] sm:$0xff]
    %v769 = vld [vmem:[#allocation7 + $0x18] sm:$0xff]
    %v770 = vld [vmem:[#allocation7 + $0x20] sm:$0xff]
    %v771 = vld [vmem:[#allocation7 + $0x28] sm:$0xff]
    %v772 = vld [vmem:[#allocation7 + $0x30] sm:$0xff]
    %v773 = vld [vmem:[#allocation7 + $0x38] sm:$0xff]
    %v774 = vld [vmem:[#allocation7 + $0x40] sm:$0xff]
    %v775 = vld [vmem:[#allocation7 + $0x48] sm:$0xff]
    %v776 = vld [vmem:[#allocation7 + $0x50] sm:$0xff]
    %v777 = vld [vmem:[#allocation7 + $0x58] sm:$0xff]
    %v778 = vld [vmem:[#allocation7 + $0x60] sm:$0xff]
    %v779 = vld [vmem:[#allocation7 + $0x68] sm:$0xff]
    %v780 = vld [vmem:[#allocation7 + $0x70] sm:$0xff]
    %v781 = vld [vmem:[#allocation7 + $0x78] sm:$0xff]
    %v782 = vld [vmem:[#allocation7 + $0x80] sm:$0xff]
    %v783 = vld [vmem:[#allocation7 + $0x88] sm:$0xff]
    %v784 = vld [vmem:[#allocation7 + $0x90] sm:$0xff]
    %v785 = vld [vmem:[#allocation7 + $0x98] sm:$0xff]
    %v786 = vld [vmem:[#allocation7 + $0xa0] sm:$0xff]
    %v787 = vld [vmem:[#allocation7 + $0xa8] sm:$0xff]
    %v788 = vld [vmem:[#allocation7 + $0xb0] sm:$0xff]
    %v789 = vld [vmem:[#allocation7 + $0xb8] sm:$0xff]
    %v790 = vld [vmem:[#allocation7 + $0xc0] sm:$0xff]
    %v791 = vld [vmem:[#allocation7 + $0xc8] sm:$0xff]
    %v792 = vld [vmem:[#allocation7 + $0xd0] sm:$0xff]
    %v793 = vld [vmem:[#allocation7 + $0xd8] sm:$0xff]
    %v794 = vld [vmem:[#allocation7 + $0xe0] sm:$0xff]
    %v795 = vld [vmem:[#allocation7 + $0xe8] sm:$0xff]
    %v796 = vld [vmem:[#allocation7 + $0xf0] sm:$0xff]
    %v797 = vld [vmem:[#allocation7 + $0xf8] sm:$0xff]
    %v798 = vld [vmem:[#allocation7 + $0x100] sm:$0xff]
    %v799 = vld [vmem:[#allocation7 + $0x108] sm:$0xff]
    %v800 = vld [vmem:[#allocation7 + $0x110] sm:$0xff]
    %v801 = vld [vmem:[#allocation7 + $0x118] sm:$0xff]
    %v802 = vld [vmem:[#allocation7 + $0x120] sm:$0xff]
    %v803 = vld [vmem:[#allocation7 + $0x128] sm:$0xff]
    %v804 = vld [vmem:[#allocation7 + $0x130] sm:$0xff]
    %v805 = vld [vmem:[#allocation7 + $0x138] sm:$0xff]
    %v806 = vld [vmem:[#allocation7 + $0x140] sm:$0xff]
    %v807 = vld [vmem:[#allocation7 + $0x148] sm:$0xff]
    %v808 = vld [vmem:[#allocation7 + $0x150] sm:$0xff]
    %v809 = vld [vmem:[#allocation7 + $0x158] sm:$0xff]
    %v810 = vld [vmem:[#allocation7 + $0x160] sm:$0xff]
    %v811 = vld [vmem:[#allocation7 + $0x168] sm:$0xff]
    %v812 = vld [vmem:[#allocation7 + $0x170] sm:$0xff]
    %v813 = vld [vmem:[#allocation7 + $0x178] sm:$0xff]
    %v814 = vld [vmem:[#allocation7 + $0x180] sm:$0xff]
    %v815 = vld [vmem:[#allocation7 + $0x188] sm:$0xff]
    %v816 = vld [vmem:[#allocation7 + $0x190] sm:$0xff]
    %v817 = vld [vmem:[#allocation7 + $0x198] sm:$0xff]
    %v818 = vld [vmem:[#allocation7 + $0x1a0] sm:$0xff]
    %v819 = vld [vmem:[#allocation7 + $0x1a8] sm:$0xff]
    %v820 = vld [vmem:[#allocation7 + $0x1b0] sm:$0xff]
    %v821 = vld [vmem:[#allocation7 + $0x1b8] sm:$0xff]
    %v822 = vld [vmem:[#allocation7 + $0x1c0] sm:$0xff]
    %v823 = vld [vmem:[#allocation7 + $0x1c8] sm:$0xff]
    %v824 = vld [vmem:[#allocation7 + $0x1d0] sm:$0xff]
    %v825 = vld [vmem:[#allocation7 + $0x1d8] sm:$0xff]
    %v826 = vld [vmem:[#allocation7 + $0x1e0] sm:$0xff]
    %v827 = vld [vmem:[#allocation7 + $0x1e8] sm:$0xff]
    %v828 = vld [vmem:[#allocation7 + $0x1f0] sm:$0xff]
    %v829 = vld [vmem:[#allocation7 + $0x1f8] sm:$0xff]
    %830 = vmatprep.subr.mxu0 %v767
    %831 = vmatpush1.msra.mxu0 %v766
    %832 = vmatprep.subr.mxu0 %v771
    %833 = vmatpush1.msra.mxu0 %v770
    %834 = vmatprep.subr.mxu0 %v775
    %835 = vmatpush1.msra.mxu0 %v774
    %836 = vmatprep.subr.mxu0 %v779
    %837 = vmatpush1.msra.mxu0 %v778
    %838 = vmatprep.subr.mxu0 %v783
    %839 = vmatpush1.msra.mxu0 %v782
    %840 = vmatprep.subr.mxu0 %v787
    %841 = vmatpush1.msra.mxu0 %v786
    %842 = vmatprep.subr.mxu0 %v791
    %843 = vmatpush1.msra.mxu0 %v790
    %844 = vmatprep.subr.mxu0 %v795
    %845 = vmatpush1.msra.mxu0 %v794
    %846 = vmatprep.subr.mxu0 %v799
    %847 = vmatpush1.msra.mxu0 %v798
    %848 = vmatprep.subr.mxu0 %v803
    %849 = vmatpush1.msra.mxu0 %v802
    %850 = vmatprep.subr.mxu0 %v807
    %851 = vmatpush1.msra.mxu0 %v806
    %852 = vmatprep.subr.mxu0 %v811
    %853 = vmatpush1.msra.mxu0 %v810
    %854 = vmatprep.subr.mxu0 %v815
    %855 = vmatpush1.msra.mxu0 %v814
    %856 = vmatprep.subr.mxu0 %v819
    %857 = vmatpush1.msra.mxu0 %v818
    %858 = vmatprep.subr.mxu0 %v823
    %859 = vmatpush1.msra.mxu0 %v822
    %860 = vmatprep.subr.mxu0 %v827
    %861 = vmatpush1.msra.mxu0 %v826
    %862 = vmatprep.subr.mxu0 0.0
    %863 = vmatpush1.msra.mxu0 0.0
    %864 = vmatprep.subr.mxu0 0.0
    %865 = vmatpush1.msra.mxu0 0.0
    %866 = vmatprep.subr.mxu0 0.0
    %867 = vmatpush1.msra.mxu0 0.0
    %868 = vmatprep.subr.mxu0 0.0
    %869 = vmatpush1.msra.mxu0 0.0
    %870 = vmatprep.subr.mxu0 0.0
    %871 = vmatpush1.msra.mxu0 0.0
    %872 = vmatprep.subr.mxu0 0.0
    %873 = vmatpush1.msra.mxu0 0.0
    %874 = vmatprep.subr.mxu0 0.0
    %875 = vmatpush1.msra.mxu0 0.0
    %876 = vmatprep.subr.mxu0 0.0
    %877 = vmatpush1.msra.mxu0 0.0
    %878 = vmatprep.subr.mxu0 0.0
    %879 = vmatpush1.msra.mxu0 0.0
    %880 = vmatprep.subr.mxu0 0.0
    %881 = vmatpush1.msra.mxu0 0.0
    %882 = vmatprep.subr.mxu0 0.0
    %883 = vmatpush1.msra.mxu0 0.0
    %884 = vmatprep.subr.mxu0 0.0
    %885 = vmatpush1.msra.mxu0 0.0
    %886 = vmatprep.subr.mxu0 0.0
    %887 = vmatpush1.msra.mxu0 0.0
    %888 = vmatprep.subr.mxu0 0.0
    %889 = vmatpush1.msra.mxu0 0.0
    %890 = vmatprep.subr.mxu0 0.0
    %891 = vmatpush1.msra.mxu0 0.0
    %892 = vmatprep.subr.mxu0 0.0
    %893 = vmatpush1.msra.mxu0 0.0
    %894 = vmatprep.mubr.f32.mxu0 0.0
    %895 = vmatmul.mubr.f32.gmra.mrb[0].mxu0 %v757
    %v896 = vpop.f32.mrb[0].mxu0
    %v897 = vadd.f32 0.0, %v896
    %v898 = vpop.f32.mrb[0].mxu0
    %v899 = vadd.f32 0.0, %v898
    %900 = vdwg.mxu0
    %901 = vmatprep.subr.mxu0 %v769
    %902 = vmatpush1.msra.mxu0 %v768
    %903 = vmatprep.subr.mxu0 %v773
    %904 = vmatpush1.msra.mxu0 %v772
    %905 = vmatprep.subr.mxu0 %v777
    %906 = vmatpush1.msra.mxu0 %v776
    %907 = vmatprep.subr.mxu0 %v781
    %908 = vmatpush1.msra.mxu0 %v780
    %909 = vmatprep.subr.mxu0 %v785
    %910 = vmatpush1.msra.mxu0 %v784
    %911 = vmatprep.subr.mxu0 %v789
    %912 = vmatpush1.msra.mxu0 %v788
    %913 = vmatprep.subr.mxu0 %v793
    %914 = vmatpush1.msra.mxu0 %v792
    %915 = vmatprep.subr.mxu0 %v797
    %916 = vmatpush1.msra.mxu0 %v796
    %917 = vmatprep.subr.mxu0 %v801
    %918 = vmatpush1.msra.mxu0 %v800
    %919 = vmatprep.subr.mxu0 %v805
    %920 = vmatpush1.msra.mxu0 %v804
    %921 = vmatprep.subr.mxu0 %v809
    %922 = vmatpush1.msra.mxu0 %v808
    %923 = vmatprep.subr.mxu0 %v813
    %924 = vmatpush1.msra.mxu0 %v812
    %925 = vmatprep.subr.mxu0 %v817
    %926 = vmatpush1.msra.mxu0 %v816
    %927 = vmatprep.subr.mxu0 %v821
    %928 = vmatpush1.msra.mxu0 %v820
    %929 = vmatprep.subr.mxu0 %v825
    %930 = vmatpush1.msra.mxu0 %v824
    %931 = vmatprep.subr.mxu0 %v829
    %932 = vmatpush1.msra.mxu0 %v828
    %933 = vmatprep.subr.mxu0 0.0
    %934 = vmatpush1.msra.mxu0 0.0
    %935 = vmatprep.subr.mxu0 0.0
    %936 = vmatpush1.msra.mxu0 0.0
    %937 = vmatprep.subr.mxu0 0.0
    %938 = vmatpush1.msra.mxu0 0.0
    %939 = vmatprep.subr.mxu0 0.0
    %940 = vmatpush1.msra.mxu0 0.0
    %941 = vmatprep.subr.mxu0 0.0
    %942 = vmatpush1.msra.mxu0 0.0
    %943 = vmatprep.subr.mxu0 0.0
    %944 = vmatpush1.msra.mxu0 0.0
    %945 = vmatprep.subr.mxu0 0.0
    %946 = vmatpush1.msra.mxu0 0.0
    %947 = vmatprep.subr.mxu0 0.0
    %948 = vmatpush1.msra.mxu0 0.0
    %949 = vmatprep.subr.mxu0 0.0
    %950 = vmatpush1.msra.mxu0 0.0
    %951 = vmatprep.subr.mxu0 0.0
    %952 = vmatpush1.msra.mxu0 0.0
    %953 = vmatprep.subr.mxu0 0.0
    %954 = vmatpush1.msra.mxu0 0.0
    %955 = vmatprep.subr.mxu0 0.0
    %956 = vmatpush1.msra.mxu0 0.0
    %957 = vmatprep.subr.mxu0 0.0
    %958 = vmatpush1.msra.mxu0 0.0
    %959 = vmatprep.subr.mxu0 0.0
    %960 = vmatpush1.msra.mxu0 0.0
    %961 = vmatprep.subr.mxu0 0.0
    %962 = vmatpush1.msra.mxu0 0.0
    %963 = vmatprep.subr.mxu0 0.0
    %964 = vmatpush1.msra.mxu0 0.0
    %965 = vmatprep.mubr.f32.mxu0 0.0
    %966 = vmatmul.mubr.f32.gmra.mrb[0].mxu0 %v757
    %v967 = vpop.f32.mrb[0].mxu0
    %v968 = vadd.f32 0.0, %v967
    %v969 = vpop.f32.mrb[0].mxu0
    %v970 = vadd.f32 0.0, %v969
    %971 = vdwg.mxu0
    %v972 = vadd.f32 %v762, %v897
    %v973 = vadd.f32 %v763, %v899
    %v974 = vadd.f32 %v764, %v968
    %v975 = vadd.f32 %v765, %v970
    %v976 = vxor.u32 %v972, 2147483648
    %v977 = vxor.u32 %v973, 2147483648
    %v978 = vxor.u32 %v974, 2147483648
    %v979 = vmul.f32 %v976, 1.442695
    %v980 = vpow.pop %v979
    %v981 = vmul.f32 %v977, 1.442695
    %v982 = vpow.pop %v981
    %v983 = vmul.f32 %v978, 1.442695
    %v984 = vpow.pop %v983
    %v985 = vadd.f32 %v980, 1.0
    %v986 = vadd.f32 %v982, 1.0
    %v987 = vadd.f32 %v984, 1.0
    %v988 = vrcp.pop %v985
    %v989 = vmul.f32 1.0, %v988
    %v990 = vrcp.pop %v986
    %v991 = vmul.f32 1.0, %v990
    %v992 = vrcp.pop %v987
    %v993 = vmul.f32 1.0, %v992
    %v994 = vtanh.pop %v975
    %v995 = vmul.f32 %v991, %v755
    %v996 = vmul.f32 %v989, %v994
    %v997 = vadd.f32 %v995, %v996
    %v998 = vtanh.pop %v997
    %v999 = vmul.f32 %v993, %v998
    %s1000 = scalar_lea.vmem [#allocation3], 8
    %1001 = vst [vmem:[%s1000] sm:$0xff] %v999
    %s1002 = smul.u32 2, 4
    %s1003 = smul.addr %s1002, 8
    %s1004 = scalar_lea.vmem [#allocation2], %s1003
    %v1005 = vld [vmem:[%s1004] sm:$0xff]
    %v1006 = vld [vmem:[%s1004 + $0x8] sm:$0xff]
    %v1007 = vld [vmem:[%s1004 + $0x10] sm:$0xff]
    %v1008 = vld [vmem:[%s1004 + $0x18] sm:$0xff]
    %v1009 = vld [vmem:[#allocation7] sm:$0xff]
    %v1010 = vld [vmem:[#allocation7 + $0x8] sm:$0xff]
    %v1011 = vld [vmem:[#allocation7 + $0x10] sm:$0xff]
    %v1012 = vld [vmem:[#allocation7 + $0x18] sm:$0xff]
    %v1013 = vld [vmem:[#allocation7 + $0x20] sm:$0xff]
    %v1014 = vld [vmem:[#allocation7 + $0x28] sm:$0xff]
    %v1015 = vld [vmem:[#allocation7 + $0x30] sm:$0xff]
    %v1016 = vld [vmem:[#allocation7 + $0x38] sm:$0xff]
    %v1017 = vld [vmem:[#allocation7 + $0x40] sm:$0xff]
    %v1018 = vld [vmem:[#allocation7 + $0x48] sm:$0xff]
    %v1019 = vld [vmem:[#allocation7 + $0x50] sm:$0xff]
    %v1020 = vld [vmem:[#allocation7 + $0x58] sm:$0xff]
    %v1021 = vld [vmem:[#allocation7 + $0x60] sm:$0xff]
    %v1022 = vld [vmem:[#allocation7 + $0x68] sm:$0xff]
    %v1023 = vld [vmem:[#allocation7 + $0x70] sm:$0xff]
    %v1024 = vld [vmem:[#allocation7 + $0x78] sm:$0xff]
    %v1025 = vld [vmem:[#allocation7 + $0x80] sm:$0xff]
    %v1026 = vld [vmem:[#allocation7 + $0x88] sm:$0xff]
    %v1027 = vld [vmem:[#allocation7 + $0x90] sm:$0xff]
    %v1028 = vld [vmem:[#allocation7 + $0x98] sm:$0xff]
    %v1029 = vld [vmem:[#allocation7 + $0xa0] sm:$0xff]
    %v1030 = vld [vmem:[#allocation7 + $0xa8] sm:$0xff]
    %v1031 = vld [vmem:[#allocation7 + $0xb0] sm:$0xff]
    %v1032 = vld [vmem:[#allocation7 + $0xb8] sm:$0xff]
    %v1033 = vld [vmem:[#allocation7 + $0xc0] sm:$0xff]
    %v1034 = vld [vmem:[#allocation7 + $0xc8] sm:$0xff]
    %v1035 = vld [vmem:[#allocation7 + $0xd0] sm:$0xff]
    %v1036 = vld [vmem:[#allocation7 + $0xd8] sm:$0xff]
    %v1037 = vld [vmem:[#allocation7 + $0xe0] sm:$0xff]
    %v1038 = vld [vmem:[#allocation7 + $0xe8] sm:$0xff]
    %v1039 = vld [vmem:[#allocation7 + $0xf0] sm:$0xff]
    %v1040 = vld [vmem:[#allocation7 + $0xf8] sm:$0xff]
    %v1041 = vld [vmem:[#allocation7 + $0x100] sm:$0xff]
    %v1042 = vld [vmem:[#allocation7 + $0x108] sm:$0xff]
    %v1043 = vld [vmem:[#allocation7 + $0x110] sm:$0xff]
    %v1044 = vld [vmem:[#allocation7 + $0x118] sm:$0xff]
    %v1045 = vld [vmem:[#allocation7 + $0x120] sm:$0xff]
    %v1046 = vld [vmem:[#allocation7 + $0x128] sm:$0xff]
    %v1047 = vld [vmem:[#allocation7 + $0x130] sm:$0xff]
    %v1048 = vld [vmem:[#allocation7 + $0x138] sm:$0xff]
    %v1049 = vld [vmem:[#allocation7 + $0x140] sm:$0xff]
    %v1050 = vld [vmem:[#allocation7 + $0x148] sm:$0xff]
    %v1051 = vld [vmem:[#allocation7 + $0x150] sm:$0xff]
    %v1052 = vld [vmem:[#allocation7 + $0x158] sm:$0xff]
    %v1053 = vld [vmem:[#allocation7 + $0x160] sm:$0xff]
    %v1054 = vld [vmem:[#allocation7 + $0x168] sm:$0xff]
    %v1055 = vld [vmem:[#allocation7 + $0x170] sm:$0xff]
    %v1056 = vld [vmem:[#allocation7 + $0x178] sm:$0xff]
    %v1057 = vld [vmem:[#allocation7 + $0x180] sm:$0xff]
    %v1058 = vld [vmem:[#allocation7 + $0x188] sm:$0xff]
    %v1059 = vld [vmem:[#allocation7 + $0x190] sm:$0xff]
    %v1060 = vld [vmem:[#allocation7 + $0x198] sm:$0xff]
    %v1061 = vld [vmem:[#allocation7 + $0x1a0] sm:$0xff]
    %v1062 = vld [vmem:[#allocation7 + $0x1a8] sm:$0xff]
    %v1063 = vld [vmem:[#allocation7 + $0x1b0] sm:$0xff]
    %v1064 = vld [vmem:[#allocation7 + $0x1b8] sm:$0xff]
    %v1065 = vld [vmem:[#allocation7 + $0x1c0] sm:$0xff]
    %v1066 = vld [vmem:[#allocation7 + $0x1c8] sm:$0xff]
    %v1067 = vld [vmem:[#allocation7 + $0x1d0] sm:$0xff]
    %v1068 = vld [vmem:[#allocation7 + $0x1d8] sm:$0xff]
    %v1069 = vld [vmem:[#allocation7 + $0x1e0] sm:$0xff]
    %v1070 = vld [vmem:[#allocation7 + $0x1e8] sm:$0xff]
    %v1071 = vld [vmem:[#allocation7 + $0x1f0] sm:$0xff]
    %v1072 = vld [vmem:[#allocation7 + $0x1f8] sm:$0xff]
    %1073 = vmatprep.subr.mxu0 %v1010
    %1074 = vmatpush1.msra.mxu0 %v1009
    %1075 = vmatprep.subr.mxu0 %v1014
    %1076 = vmatpush1.msra.mxu0 %v1013
    %1077 = vmatprep.subr.mxu0 %v1018
    %1078 = vmatpush1.msra.mxu0 %v1017
    %1079 = vmatprep.subr.mxu0 %v1022
    %1080 = vmatpush1.msra.mxu0 %v1021
    %1081 = vmatprep.subr.mxu0 %v1026
    %1082 = vmatpush1.msra.mxu0 %v1025
    %1083 = vmatprep.subr.mxu0 %v1030
    %1084 = vmatpush1.msra.mxu0 %v1029
    %1085 = vmatprep.subr.mxu0 %v1034
    %1086 = vmatpush1.msra.mxu0 %v1033
    %1087 = vmatprep.subr.mxu0 %v1038
    %1088 = vmatpush1.msra.mxu0 %v1037
    %1089 = vmatprep.subr.mxu0 %v1042
    %1090 = vmatpush1.msra.mxu0 %v1041
    %1091 = vmatprep.subr.mxu0 %v1046
    %1092 = vmatpush1.msra.mxu0 %v1045
    %1093 = vmatprep.subr.mxu0 %v1050
    %1094 = vmatpush1.msra.mxu0 %v1049
    %1095 = vmatprep.subr.mxu0 %v1054
    %1096 = vmatpush1.msra.mxu0 %v1053
    %1097 = vmatprep.subr.mxu0 %v1058
    %1098 = vmatpush1.msra.mxu0 %v1057
    %1099 = vmatprep.subr.mxu0 %v1062
    %1100 = vmatpush1.msra.mxu0 %v1061
    %1101 = vmatprep.subr.mxu0 %v1066
    %1102 = vmatpush1.msra.mxu0 %v1065
    %1103 = vmatprep.subr.mxu0 %v1070
    %1104 = vmatpush1.msra.mxu0 %v1069
    %1105 = vmatprep.subr.mxu0 0.0
    %1106 = vmatpush1.msra.mxu0 0.0
    %1107 = vmatprep.subr.mxu0 0.0
    %1108 = vmatpush1.msra.mxu0 0.0
    %1109 = vmatprep.subr.mxu0 0.0
    %1110 = vmatpush1.msra.mxu0 0.0
    %1111 = vmatprep.subr.mxu0 0.0
    %1112 = vmatpush1.msra.mxu0 0.0
    %1113 = vmatprep.subr.mxu0 0.0
    %1114 = vmatpush1.msra.mxu0 0.0
    %1115 = vmatprep.subr.mxu0 0.0
    %1116 = vmatpush1.msra.mxu0 0.0
    %1117 = vmatprep.subr.mxu0 0.0
    %1118 = vmatpush1.msra.mxu0 0.0
    %1119 = vmatprep.subr.mxu0 0.0
    %1120 = vmatpush1.msra.mxu0 0.0
    %1121 = vmatprep.subr.mxu0 0.0
    %1122 = vmatpush1.msra.mxu0 0.0
    %1123 = vmatprep.subr.mxu0 0.0
    %1124 = vmatpush1.msra.mxu0 0.0
    %1125 = vmatprep.subr.mxu0 0.0
    %1126 = vmatpush1.msra.mxu0 0.0
    %1127 = vmatprep.subr.mxu0 0.0
    %1128 = vmatpush1.msra.mxu0 0.0
    %1129 = vmatprep.subr.mxu0 0.0
    %1130 = vmatpush1.msra.mxu0 0.0
    %1131 = vmatprep.subr.mxu0 0.0
    %1132 = vmatpush1.msra.mxu0 0.0
    %1133 = vmatprep.subr.mxu0 0.0
    %1134 = vmatpush1.msra.mxu0 0.0
    %1135 = vmatprep.subr.mxu0 0.0
    %1136 = vmatpush1.msra.mxu0 0.0
    %1137 = vmatprep.mubr.f32.mxu0 0.0
    %1138 = vmatmul.mubr.f32.gmra.mrb[0].mxu0 %v999
    %v1139 = vpop.f32.mrb[0].mxu0
    %v1140 = vadd.f32 0.0, %v1139
    %v1141 = vpop.f32.mrb[0].mxu0
    %v1142 = vadd.f32 0.0, %v1141
    %1143 = vdwg.mxu0
    %1144 = vmatprep.subr.mxu0 %v1012
    %1145 = vmatpush1.msra.mxu0 %v1011
    %1146 = vmatprep.subr.mxu0 %v1016
    %1147 = vmatpush1.msra.mxu0 %v1015
    %1148 = vmatprep.subr.mxu0 %v1020
    %1149 = vmatpush1.msra.mxu0 %v1019
    %1150 = vmatprep.subr.mxu0 %v1024
    %1151 = vmatpush1.msra.mxu0 %v1023
    %1152 = vmatprep.subr.mxu0 %v1028
    %1153 = vmatpush1.msra.mxu0 %v1027
    %1154 = vmatprep.subr.mxu0 %v1032
    %1155 = vmatpush1.msra.mxu0 %v1031
    %1156 = vmatprep.subr.mxu0 %v1036
    %1157 = vmatpush1.msra.mxu0 %v1035
    %1158 = vmatprep.subr.mxu0 %v1040
    %1159 = vmatpush1.msra.mxu0 %v1039
    %1160 = vmatprep.subr.mxu0 %v1044
    %1161 = vmatpush1.msra.mxu0 %v1043
    %1162 = vmatprep.subr.mxu0 %v1048
    %1163 = vmatpush1.msra.mxu0 %v1047
    %1164 = vmatprep.subr.mxu0 %v1052
    %1165 = vmatpush1.msra.mxu0 %v1051
    %1166 = vmatprep.subr.mxu0 %v1056
    %1167 = vmatpush1.msra.mxu0 %v1055
    %1168 = vmatprep.subr.mxu0 %v1060
    %1169 = vmatpush1.msra.mxu0 %v1059
    %1170 = vmatprep.subr.mxu0 %v1064
    %1171 = vmatpush1.msra.mxu0 %v1063
    %1172 = vmatprep.subr.mxu0 %v1068
    %1173 = vmatpush1.msra.mxu0 %v1067
    %1174 = vmatprep.subr.mxu0 %v1072
    %1175 = vmatpush1.msra.mxu0 %v1071
    %1176 = vmatprep.subr.mxu0 0.0
    %1177 = vmatpush1.msra.mxu0 0.0
    %1178 = vmatprep.subr.mxu0 0.0
    %1179 = vmatpush1.msra.mxu0 0.0
    %1180 = vmatprep.subr.mxu0 0.0
    %1181 = vmatpush1.msra.mxu0 0.0
    %1182 = vmatprep.subr.mxu0 0.0
    %1183 = vmatpush1.msra.mxu0 0.0
    %1184 = vmatprep.subr.mxu0 0.0
    %1185 = vmatpush1.msra.mxu0 0.0
    %1186 = vmatprep.subr.mxu0 0.0
    %1187 = vmatpush1.msra.mxu0 0.0
    %1188 = vmatprep.subr.mxu0 0.0
    %1189 = vmatpush1.msra.mxu0 0.0
    %1190 = vmatprep.subr.mxu0 0.0
    %1191 = vmatpush1.msra.mxu0 0.0
    %1192 = vmatprep.subr.mxu0 0.0
    %1193 = vmatpush1.msra.mxu0 0.0
    %1194 = vmatprep.subr.mxu0 0.0
    %1195 = vmatpush1.msra.mxu0 0.0
    %1196 = vmatprep.subr.mxu0 0.0
    %1197 = vmatpush1.msra.mxu0 0.0
    %1198 = vmatprep.subr.mxu0 0.0
    %1199 = vmatpush1.msra.mxu0 0.0
    %1200 = vmatprep.subr.mxu0 0.0
    %1201 = vmatpush1.msra.mxu0 0.0
    %1202 = vmatprep.subr.mxu0 0.0
    %1203 = vmatpush1.msra.mxu0 0.0
    %1204 = vmatprep.subr.mxu0 0.0
    %1205 = vmatpush1.msra.mxu0 0.0
    %1206 = vmatprep.subr.mxu0 0.0
    %1207 = vmatpush1.msra.mxu0 0.0
    %1208 = vmatprep.mubr.f32.mxu0 0.0
    %1209 = vmatmul.mubr.f32.gmra.mrb[0].mxu0 %v999
    %v1210 = vpop.f32.mrb[0].mxu0
    %v1211 = vadd.f32 0.0, %v1210
    %v1212 = vpop.f32.mrb[0].mxu0
    %v1213 = vadd.f32 0.0, %v1212
    %1214 = vdwg.mxu0
    %v1215 = vadd.f32 %v1005, %v1140
    %v1216 = vadd.f32 %v1006, %v1142
    %v1217 = vadd.f32 %v1007, %v1211
    %v1218 = vadd.f32 %v1008, %v1213
    %v1219 = vxor.u32 %v1215, 2147483648
    %v1220 = vxor.u32 %v1216, 2147483648
    %v1221 = vxor.u32 %v1217, 2147483648
    %v1222 = vmul.f32 %v1219, 1.442695
    %v1223 = vpow.pop %v1222
    %v1224 = vmul.f32 %v1220, 1.442695
    %v1225 = vpow.pop %v1224
    %v1226 = vmul.f32 %v1221, 1.442695
    %v1227 = vpow.pop %v1226
    %v1228 = vadd.f32 %v1223, 1.0
    %v1229 = vadd.f32 %v1225, 1.0
    %v1230 = vadd.f32 %v1227, 1.0
    %v1231 = vrcp.pop %v1228
    %v1232 = vmul.f32 1.0, %v1231
    %v1233 = vrcp.pop %v1229
    %v1234 = vmul.f32 1.0, %v1233
    %v1235 = vrcp.pop %v1230
    %v1236 = vmul.f32 1.0, %v1235
    %v1237 = vtanh.pop %v1218
    %v1238 = vmul.f32 %v1234, %v997
    %v1239 = vmul.f32 %v1232, %v1237
    %v1240 = vadd.f32 %v1238, %v1239
    %v1241 = vtanh.pop %v1240
    %v1242 = vmul.f32 %v1236, %v1241
    %s1243 = scalar_lea.vmem [#allocation3], 16
    %1244 = vst [vmem:[%s1243] sm:$0xff] %v1242
    %s1245 = smul.u32 3, 4
    %s1246 = smul.addr %s1245, 8
    %s1247 = scalar_lea.vmem [#allocation2], %s1246
    %v1248 = vld [vmem:[%s1247] sm:$0xff]
    %v1249 = vld [vmem:[%s1247 + $0x8] sm:$0xff]
    %v1250 = vld [vmem:[%s1247 + $0x10] sm:$0xff]
    %v1251 = vld [vmem:[%s1247 + $0x18] sm:$0xff]
    %v1252 = vld [vmem:[#allocation7] sm:$0xff]
    %v1253 = vld [vmem:[#allocation7 + $0x8] sm:$0xff]
    %v1254 = vld [vmem:[#allocation7 + $0x10] sm:$0xff]
    %v1255 = vld [vmem:[#allocation7 + $0x18] sm:$0xff]
    %v1256 = vld [vmem:[#allocation7 + $0x20] sm:$0xff]
    %v1257 = vld [vmem:[#allocation7 + $0x28] sm:$0xff]
    %v1258 = vld [vmem:[#allocation7 + $0x30] sm:$0xff]
    %v1259 = vld [vmem:[#allocation7 + $0x38] sm:$0xff]
    %v1260 = vld [vmem:[#allocation7 + $0x40] sm:$0xff]
    %v1261 = vld [vmem:[#allocation7 + $0x48] sm:$0xff]
    %v1262 = vld [vmem:[#allocation7 + $0x50] sm:$0xff]
    %v1263 = vld [vmem:[#allocation7 + $0x58] sm:$0xff]
    %v1264 = vld [vmem:[#allocation7 + $0x60] sm:$0xff]
    %v1265 = vld [vmem:[#allocation7 + $0x68] sm:$0xff]
    %v1266 = vld [vmem:[#allocation7 + $0x70] sm:$0xff]
    %v1267 = vld [vmem:[#allocation7 + $0x78] sm:$0xff]
    %v1268 = vld [vmem:[#allocation7 + $0x80] sm:$0xff]
    %v1269 = vld [vmem:[#allocation7 + $0x88] sm:$0xff]
    %v1270 = vld [vmem:[#allocation7 + $0x90] sm:$0xff]
    %v1271 = vld [vmem:[#allocation7 + $0x98] sm:$0xff]
    %v1272 = vld [vmem:[#allocation7 + $0xa0] sm:$0xff]
    %v1273 = vld [vmem:[#allocation7 + $0xa8] sm:$0xff]
    %v1274 = vld [vmem:[#allocation7 + $0xb0] sm:$0xff]
    %v1275 = vld [vmem:[#allocation7 + $0xb8] sm:$0xff]
    %v1276 = vld [vmem:[#allocation7 + $0xc0] sm:$0xff]
    %v1277 = vld [vmem:[#allocation7 + $0xc8] sm:$0xff]
    %v1278 = vld [vmem:[#allocation7 + $0xd0] sm:$0xff]
    %v1279 = vld [vmem:[#allocation7 + $0xd8] sm:$0xff]
    %v1280 = vld [vmem:[#allocation7 + $0xe0] sm:$0xff]
    %v1281 = vld [vmem:[#allocation7 + $0xe8] sm:$0xff]
    %v1282 = vld [vmem:[#allocation7 + $0xf0] sm:$0xff]
    %v1283 = vld [vmem:[#allocation7 + $0xf8] sm:$0xff]
    %v1284 = vld [vmem:[#allocation7 + $0x100] sm:$0xff]
    %v1285 = vld [vmem:[#allocation7 + $0x108] sm:$0xff]
    %v1286 = vld [vmem:[#allocation7 + $0x110] sm:$0xff]
    %v1287 = vld [vmem:[#allocation7 + $0x118] sm:$0xff]
    %v1288 = vld [vmem:[#allocation7 + $0x120] sm:$0xff]
    %v1289 = vld [vmem:[#allocation7 + $0x128] sm:$0xff]
    %v1290 = vld [vmem:[#allocation7 + $0x130] sm:$0xff]
    %v1291 = vld [vmem:[#allocation7 + $0x138] sm:$0xff]
    %v1292 = vld [vmem:[#allocation7 + $0x140] sm:$0xff]
    %v1293 = vld [vmem:[#allocation7 + $0x148] sm:$0xff]
    %v1294 = vld [vmem:[#allocation7 + $0x150] sm:$0xff]
    %v1295 = vld [vmem:[#allocation7 + $0x158] sm:$0xff]
    %v1296 = vld [vmem:[#allocation7 + $0x160] sm:$0xff]
    %v1297 = vld [vmem:[#allocation7 + $0x168] sm:$0xff]
    %v1298 = vld [vmem:[#allocation7 + $0x170] sm:$0xff]
    %v1299 = vld [vmem:[#allocation7 + $0x178] sm:$0xff]
    %v1300 = vld [vmem:[#allocation7 + $0x180] sm:$0xff]
    %v1301 = vld [vmem:[#allocation7 + $0x188] sm:$0xff]
    %v1302 = vld [vmem:[#allocation7 + $0x190] sm:$0xff]
    %v1303 = vld [vmem:[#allocation7 + $0x198] sm:$0xff]
    %v1304 = vld [vmem:[#allocation7 + $0x1a0] sm:$0xff]
    %v1305 = vld [vmem:[#allocation7 + $0x1a8] sm:$0xff]
    %v1306 = vld [vmem:[#allocation7 + $0x1b0] sm:$0xff]
    %v1307 = vld [vmem:[#allocation7 + $0x1b8] sm:$0xff]
    %v1308 = vld [vmem:[#allocation7 + $0x1c0] sm:$0xff]
    %v1309 = vld [vmem:[#allocation7 + $0x1c8] sm:$0xff]
    %v1310 = vld [vmem:[#allocation7 + $0x1d0] sm:$0xff]
    %v1311 = vld [vmem:[#allocation7 + $0x1d8] sm:$0xff]
    %v1312 = vld [vmem:[#allocation7 + $0x1e0] sm:$0xff]
    %v1313 = vld [vmem:[#allocation7 + $0x1e8] sm:$0xff]
    %v1314 = vld [vmem:[#allocation7 + $0x1f0] sm:$0xff]
    %v1315 = vld [vmem:[#allocation7 + $0x1f8] sm:$0xff]
    %1316 = vmatprep.subr.mxu0 %v1253
    %1317 = vmatpush1.msra.mxu0 %v1252
    %1318 = vmatprep.subr.mxu0 %v1257
    %1319 = vmatpush1.msra.mxu0 %v1256
    %1320 = vmatprep.subr.mxu0 %v1261
    %1321 = vmatpush1.msra.mxu0 %v1260
    %1322 = vmatprep.subr.mxu0 %v1265
    %1323 = vmatpush1.msra.mxu0 %v1264
    %1324 = vmatprep.subr.mxu0 %v1269
    %1325 = vmatpush1.msra.mxu0 %v1268
    %1326 = vmatprep.subr.mxu0 %v1273
    %1327 = vmatpush1.msra.mxu0 %v1272
    %1328 = vmatprep.subr.mxu0 %v1277
    %1329 = vmatpush1.msra.mxu0 %v1276
    %1330 = vmatprep.subr.mxu0 %v1281
    %1331 = vmatpush1.msra.mxu0 %v1280
    %1332 = vmatprep.subr.mxu0 %v1285
    %1333 = vmatpush1.msra.mxu0 %v1284
    %1334 = vmatprep.subr.mxu0 %v1289
    %1335 = vmatpush1.msra.mxu0 %v1288
    %1336 = vmatprep.subr.mxu0 %v1293
    %1337 = vmatpush1.msra.mxu0 %v1292
    %1338 = vmatprep.subr.mxu0 %v1297
    %1339 = vmatpush1.msra.mxu0 %v1296
    %1340 = vmatprep.subr.mxu0 %v1301
    %1341 = vmatpush1.msra.mxu0 %v1300
    %1342 = vmatprep.subr.mxu0 %v1305
    %1343 = vmatpush1.msra.mxu0 %v1304
    %1344 = vmatprep.subr.mxu0 %v1309
    %1345 = vmatpush1.msra.mxu0 %v1308
    %1346 = vmatprep.subr.mxu0 %v1313
    %1347 = vmatpush1.msra.mxu0 %v1312
    %1348 = vmatprep.subr.mxu0 0.0
    %1349 = vmatpush1.msra.mxu0 0.0
    %1350 = vmatprep.subr.mxu0 0.0
    %1351 = vmatpush1.msra.mxu0 0.0
    %1352 = vmatprep.subr.mxu0 0.0
    %1353 = vmatpush1.msra.mxu0 0.0
    %1354 = vmatprep.subr.mxu0 0.0
    %1355 = vmatpush1.msra.mxu0 0.0
    %1356 = vmatprep.subr.mxu0 0.0
    %1357 = vmatpush1.msra.mxu0 0.0
    %1358 = vmatprep.subr.mxu0 0.0
    %1359 = vmatpush1.msra.mxu0 0.0
    %1360 = vmatprep.subr.mxu0 0.0
    %1361 = vmatpush1.msra.mxu0 0.0
    %1362 = vmatprep.subr.mxu0 0.0
    %1363 = vmatpush1.msra.mxu0 0.0
    %1364 = vmatprep.subr.mxu0 0.0
    %1365 = vmatpush1.msra.mxu0 0.0
    %1366 = vmatprep.subr.mxu0 0.0
    %1367 = vmatpush1.msra.mxu0 0.0
    %1368 = vmatprep.subr.mxu0 0.0
    %1369 = vmatpush1.msra.mxu0 0.0
    %1370 = vmatprep.subr.mxu0 0.0
    %1371 = vmatpush1.msra.mxu0 0.0
    %1372 = vmatprep.subr.mxu0 0.0
    %1373 = vmatpush1.msra.mxu0 0.0
    %1374 = vmatprep.subr.mxu0 0.0
    %1375 = vmatpush1.msra.mxu0 0.0
    %1376 = vmatprep.subr.mxu0 0.0
    %1377 = vmatpush1.msra.mxu0 0.0
    %1378 = vmatprep.subr.mxu0 0.0
    %1379 = vmatpush1.msra.mxu0 0.0
    %1380 = vmatprep.mubr.f32.mxu0 0.0
    %1381 = vmatmul.mubr.f32.gmra.mrb[0].mxu0 %v1242
    %v1382 = vpop.f32.mrb[0].mxu0
    %v1383 = vadd.f32 0.0, %v1382
    %v1384 = vpop.f32.mrb[0].mxu0
    %v1385 = vadd.f32 0.0, %v1384
    %1386 = vdwg.mxu0
    %1387 = vmatprep.subr.mxu0 %v1255
    %1388 = vmatpush1.msra.mxu0 %v1254
    %1389 = vmatprep.subr.mxu0 %v1259
    %1390 = vmatpush1.msra.mxu0 %v1258
    %1391 = vmatprep.subr.mxu0 %v1263
    %1392 = vmatpush1.msra.mxu0 %v1262
    %1393 = vmatprep.subr.mxu0 %v1267
    %1394 = vmatpush1.msra.mxu0 %v1266
    %1395 = vmatprep.subr.mxu0 %v1271
    %1396 = vmatpush1.msra.mxu0 %v1270
    %1397 = vmatprep.subr.mxu0 %v1275
    %1398 = vmatpush1.msra.mxu0 %v1274
    %1399 = vmatprep.subr.mxu0 %v1279
    %1400 = vmatpush1.msra.mxu0 %v1278
    %1401 = vmatprep.subr.mxu0 %v1283
    %1402 = vmatpush1.msra.mxu0 %v1282
    %1403 = vmatprep.subr.mxu0 %v1287
    %1404 = vmatpush1.msra.mxu0 %v1286
    %1405 = vmatprep.subr.mxu0 %v1291
    %1406 = vmatpush1.msra.mxu0 %v1290
    %1407 = vmatprep.subr.mxu0 %v1295
    %1408 = vmatpush1.msra.mxu0 %v1294
    %1409 = vmatprep.subr.mxu0 %v1299
    %1410 = vmatpush1.msra.mxu0 %v1298
    %1411 = vmatprep.subr.mxu0 %v1303
    %1412 = vmatpush1.msra.mxu0 %v1302
    %1413 = vmatprep.subr.mxu0 %v1307
    %1414 = vmatpush1.msra.mxu0 %v1306
    %1415 = vmatprep.subr.mxu0 %v1311
    %1416 = vmatpush1.msra.mxu0 %v1310
    %1417 = vmatprep.subr.mxu0 %v1315
    %1418 = vmatpush1.msra.mxu0 %v1314
    %1419 = vmatprep.subr.mxu0 0.0
    %1420 = vmatpush1.msra.mxu0 0.0
    %1421 = vmatprep.subr.mxu0 0.0
    %1422 = vmatpush1.msra.mxu0 0.0
    %1423 = vmatprep.subr.mxu0 0.0
    %1424 = vmatpush1.msra.mxu0 0.0
    %1425 = vmatprep.subr.mxu0 0.0
    %1426 = vmatpush1.msra.mxu0 0.0
    %1427 = vmatprep.subr.mxu0 0.0
    %1428 = vmatpush1.msra.mxu0 0.0
    %1429 = vmatprep.subr.mxu0 0.0
    %1430 = vmatpush1.msra.mxu0 0.0
    %1431 = vmatprep.subr.mxu0 0.0
    %1432 = vmatpush1.msra.mxu0 0.0
    %1433 = vmatprep.subr.mxu0 0.0
    %1434 = vmatpush1.msra.mxu0 0.0
    %1435 = vmatprep.subr.mxu0 0.0
    %1436 = vmatpush1.msra.mxu0 0.0
    %1437 = vmatprep.subr.mxu0 0.0
    %1438 = vmatpush1.msra.mxu0 0.0
    %1439 = vmatprep.subr.mxu0 0.0
    %1440 = vmatpush1.msra.mxu0 0.0
    %1441 = vmatprep.subr.mxu0 0.0
    %1442 = vmatpush1.msra.mxu0 0.0
    %1443 = vmatprep.subr.mxu0 0.0
    %1444 = vmatpush1.msra.mxu0 0.0
    %1445 = vmatprep.subr.mxu0 0.0
    %1446 = vmatpush1.msra.mxu0 0.0
    %1447 = vmatprep.subr.mxu0 0.0
    %1448 = vmatpush1.msra.mxu0 0.0
    %1449 = vmatprep.subr.mxu0 0.0
    %1450 = vmatpush1.msra.mxu0 0.0
    %1451 = vmatprep.mubr.f32.mxu0 0.0
    %1452 = vmatmul.mubr.f32.gmra.mrb[0].mxu0 %v1242
    %v1453 = vpop.f32.mrb[0].mxu0
    %v1454 = vadd.f32 0.0, %v1453
    %v1455 = vpop.f32.mrb[0].mxu0
    %v1456 = vadd.f32 0.0, %v1455
    %1457 = vdwg.mxu0
    %v1458 = vadd.f32 %v1248, %v1383
    %v1459 = vadd.f32 %v1249, %v1385
    %v1460 = vadd.f32 %v1250, %v1454
    %v1461 = vadd.f32 %v1251, %v1456
    %v1462 = vxor.u32 %v1458, 2147483648
    %v1463 = vxor.u32 %v1459, 2147483648
    %v1464 = vxor.u32 %v1460, 2147483648
    %v1465 = vmul.f32 %v1462, 1.442695
    %v1466 = vpow.pop %v1465
    %v1467 = vmul.f32 %v1463, 1.442695
    %v1468 = vpow.pop %v1467
    %v1469 = vmul.f32 %v1464, 1.442695
    %v1470 = vpow.pop %v1469
    %v1471 = vadd.f32 %v1466, 1.0
    %v1472 = vadd.f32 %v1468, 1.0
    %v1473 = vadd.f32 %v1470, 1.0
    %v1474 = vrcp.pop %v1471
    %v1475 = vmul.f32 1.0, %v1474
    %v1476 = vrcp.pop %v1472
    %v1477 = vmul.f32 1.0, %v1476
    %v1478 = vrcp.pop %v1473
    %v1479 = vmul.f32 1.0, %v1478
    %v1480 = vtanh.pop %v1461
    %v1481 = vmul.f32 %v1477, %v1240
    %v1482 = vmul.f32 %v1475, %v1480
    %v1483 = vadd.f32 %v1481, %v1482
    %v1484 = vtanh.pop %v1483
    %v1485 = vmul.f32 %v1479, %v1484
    %s1486 = scalar_lea.vmem [#allocation3], 24
    %1487 = vst [vmem:[%s1486] sm:$0xff] %v1485
    %s1488 = smul.u32 4, 4
    %s1489 = smul.addr %s1488, 8
    %s1490 = scalar_lea.vmem [#allocation2], %s1489
    %v1491 = vld [vmem:[%s1490] sm:$0xff]
    %v1492 = vld [vmem:[%s1490 + $0x8] sm:$0xff]
    %v1493 = vld [vmem:[%s1490 + $0x10] sm:$0xff]
    %v1494 = vld [vmem:[%s1490 + $0x18] sm:$0xff]
    %v1495 = vld [vmem:[#allocation7] sm:$0xff]
    %v1496 = vld [vmem:[#allocation7 + $0x8] sm:$0xff]
    %v1497 = vld [vmem:[#allocation7 + $0x10] sm:$0xff]
    %v1498 = vld [vmem:[#allocation7 + $0x18] sm:$0xff]
    %v1499 = vld [vmem:[#allocation7 + $0x20] sm:$0xff]
    %v1500 = vld [vmem:[#allocation7 + $0x28] sm:$0xff]
    %v1501 = vld [vmem:[#allocation7 + $0x30] sm:$0xff]
    %v1502 = vld [vmem:[#allocation7 + $0x38] sm:$0xff]
    %v1503 = vld [vmem:[#allocation7 + $0x40] sm:$0xff]
    %v1504 = vld [vmem:[#allocation7 + $0x48] sm:$0xff]
    %v1505 = vld [vmem:[#allocation7 + $0x50] sm:$0xff]
    %v1506 = vld [vmem:[#allocation7 + $0x58] sm:$0xff]
    %v1507 = vld [vmem:[#allocation7 + $0x60] sm:$0xff]
    %v1508 = vld [vmem:[#allocation7 + $0x68] sm:$0xff]
    %v1509 = vld [vmem:[#allocation7 + $0x70] sm:$0xff]
    %v1510 = vld [vmem:[#allocation7 + $0x78] sm:$0xff]
    %v1511 = vld [vmem:[#allocation7 + $0x80] sm:$0xff]
    %v1512 = vld [vmem:[#allocation7 + $0x88] sm:$0xff]
    %v1513 = vld [vmem:[#allocation7 + $0x90] sm:$0xff]
    %v1514 = vld [vmem:[#allocation7 + $0x98] sm:$0xff]
    %v1515 = vld [vmem:[#allocation7 + $0xa0] sm:$0xff]
    %v1516 = vld [vmem:[#allocation7 + $0xa8] sm:$0xff]
    %v1517 = vld [vmem:[#allocation7 + $0xb0] sm:$0xff]
    %v1518 = vld [vmem:[#allocation7 + $0xb8] sm:$0xff]
    %v1519 = vld [vmem:[#allocation7 + $0xc0] sm:$0xff]
    %v1520 = vld [vmem:[#allocation7 + $0xc8] sm:$0xff]
    %v1521 = vld [vmem:[#allocation7 + $0xd0] sm:$0xff]
    %v1522 = vld [vmem:[#allocation7 + $0xd8] sm:$0xff]
    %v1523 = vld [vmem:[#allocation7 + $0xe0] sm:$0xff]
    %v1524 = vld [vmem:[#allocation7 + $0xe8] sm:$0xff]
    %v1525 = vld [vmem:[#allocation7 + $0xf0] sm:$0xff]
    %v1526 = vld [vmem:[#allocation7 + $0xf8] sm:$0xff]
    %v1527 = vld [vmem:[#allocation7 + $0x100] sm:$0xff]
    %v1528 = vld [vmem:[#allocation7 + $0x108] sm:$0xff]
    %v1529 = vld [vmem:[#allocation7 + $0x110] sm:$0xff]
    %v1530 = vld [vmem:[#allocation7 + $0x118] sm:$0xff]
    %v1531 = vld [vmem:[#allocation7 + $0x120] sm:$0xff]
    %v1532 = vld [vmem:[#allocation7 + $0x128] sm:$0xff]
    %v1533 = vld [vmem:[#allocation7 + $0x130] sm:$0xff]
    %v1534 = vld [vmem:[#allocation7 + $0x138] sm:$0xff]
    %v1535 = vld [vmem:[#allocation7 + $0x140] sm:$0xff]
    %v1536 = vld [vmem:[#allocation7 + $0x148] sm:$0xff]
    %v1537 = vld [vmem:[#allocation7 + $0x150] sm:$0xff]
    %v1538 = vld [vmem:[#allocation7 + $0x158] sm:$0xff]
    %v1539 = vld [vmem:[#allocation7 + $0x160] sm:$0xff]
    %v1540 = vld [vmem:[#allocation7 + $0x168] sm:$0xff]
    %v1541 = vld [vmem:[#allocation7 + $0x170] sm:$0xff]
    %v1542 = vld [vmem:[#allocation7 + $0x178] sm:$0xff]
    %v1543 = vld [vmem:[#allocation7 + $0x180] sm:$0xff]
    %v1544 = vld [vmem:[#allocation7 + $0x188] sm:$0xff]
    %v1545 = vld [vmem:[#allocation7 + $0x190] sm:$0xff]
    %v1546 = vld [vmem:[#allocation7 + $0x198] sm:$0xff]
    %v1547 = vld [vmem:[#allocation7 + $0x1a0] sm:$0xff]
    %v1548 = vld [vmem:[#allocation7 + $0x1a8] sm:$0xff]
    %v1549 = vld [vmem:[#allocation7 + $0x1b0] sm:$0xff]
    %v1550 = vld [vmem:[#allocation7 + $0x1b8] sm:$0xff]
    %v1551 = vld [vmem:[#allocation7 + $0x1c0] sm:$0xff]
    %v1552 = vld [vmem:[#allocation7 + $0x1c8] sm:$0xff]
    %v1553 = vld [vmem:[#allocation7 + $0x1d0] sm:$0xff]
    %v1554 = vld [vmem:[#allocation7 + $0x1d8] sm:$0xff]
    %v1555 = vld [vmem:[#allocation7 + $0x1e0] sm:$0xff]
    %v1556 = vld [vmem:[#allocation7 + $0x1e8] sm:$0xff]
    %v1557 = vld [vmem:[#allocation7 + $0x1f0] sm:$0xff]
    %v1558 = vld [vmem:[#allocation7 + $0x1f8] sm:$0xff]
    %1559 = vmatprep.subr.mxu0 %v1496
    %1560 = vmatpush1.msra.mxu0 %v1495
    %1561 = vmatprep.subr.mxu0 %v1500
    %1562 = vmatpush1.msra.mxu0 %v1499
    %1563 = vmatprep.subr.mxu0 %v1504
    %1564 = vmatpush1.msra.mxu0 %v1503
    %1565 = vmatprep.subr.mxu0 %v1508
    %1566 = vmatpush1.msra.mxu0 %v1507
    %1567 = vmatprep.subr.mxu0 %v1512
    %1568 = vmatpush1.msra.mxu0 %v1511
    %1569 = vmatprep.subr.mxu0 %v1516
    %1570 = vmatpush1.msra.mxu0 %v1515
    %1571 = vmatprep.subr.mxu0 %v1520
    %1572 = vmatpush1.msra.mxu0 %v1519
    %1573 = vmatprep.subr.mxu0 %v1524
    %1574 = vmatpush1.msra.mxu0 %v1523
    %1575 = vmatprep.subr.mxu0 %v1528
    %1576 = vmatpush1.msra.mxu0 %v1527
    %1577 = vmatprep.subr.mxu0 %v1532
    %1578 = vmatpush1.msra.mxu0 %v1531
    %1579 = vmatprep.subr.mxu0 %v1536
    %1580 = vmatpush1.msra.mxu0 %v1535
    %1581 = vmatprep.subr.mxu0 %v1540
    %1582 = vmatpush1.msra.mxu0 %v1539
    %1583 = vmatprep.subr.mxu0 %v1544
    %1584 = vmatpush1.msra.mxu0 %v1543
    %1585 = vmatprep.subr.mxu0 %v1548
    %1586 = vmatpush1.msra.mxu0 %v1547
    %1587 = vmatprep.subr.mxu0 %v1552
    %1588 = vmatpush1.msra.mxu0 %v1551
    %1589 = vmatprep.subr.mxu0 %v1556
    %1590 = vmatpush1.msra.mxu0 %v1555
    %1591 = vmatprep.subr.mxu0 0.0
    %1592 = vmatpush1.msra.mxu0 0.0
    %1593 = vmatprep.subr.mxu0 0.0
    %1594 = vmatpush1.msra.mxu0 0.0
    %1595 = vmatprep.subr.mxu0 0.0
    %1596 = vmatpush1.msra.mxu0 0.0
    %1597 = vmatprep.subr.mxu0 0.0
    %1598 = vmatpush1.msra.mxu0 0.0
    %1599 = vmatprep.subr.mxu0 0.0
    %1600 = vmatpush1.msra.mxu0 0.0
    %1601 = vmatprep.subr.mxu0 0.0
    %1602 = vmatpush1.msra.mxu0 0.0
    %1603 = vmatprep.subr.mxu0 0.0
    %1604 = vmatpush1.msra.mxu0 0.0
    %1605 = vmatprep.subr.mxu0 0.0
    %1606 = vmatpush1.msra.mxu0 0.0
    %1607 = vmatprep.subr.mxu0 0.0
    %1608 = vmatpush1.msra.mxu0 0.0
    %1609 = vmatprep.subr.mxu0 0.0
    %1610 = vmatpush1.msra.mxu0 0.0
    %1611 = vmatprep.subr.mxu0 0.0
    %1612 = vmatpush1.msra.mxu0 0.0
    %1613 = vmatprep.subr.mxu0 0.0
    %1614 = vmatpush1.msra.mxu0 0.0
    %1615 = vmatprep.subr.mxu0 0.0
    %1616 = vmatpush1.msra.mxu0 0.0
    %1617 = vmatprep.subr.mxu0 0.0
    %1618 = vmatpush1.msra.mxu0 0.0
    %1619 = vmatprep.subr.mxu0 0.0
    %1620 = vmatpush1.msra.mxu0 0.0
    %1621 = vmatprep.subr.mxu0 0.0
    %1622 = vmatpush1.msra.mxu0 0.0
    %1623 = vmatprep.mubr.f32.mxu0 0.0
    %1624 = vmatmul.mubr.f32.gmra.mrb[0].mxu0 %v1485
    %v1625 = vpop.f32.mrb[0].mxu0
    %v1626 = vadd.f32 0.0, %v1625
    %v1627 = vpop.f32.mrb[0].mxu0
    %v1628 = vadd.f32 0.0, %v1627
    %1629 = vdwg.mxu0
    %1630 = vmatprep.subr.mxu0 %v1498
    %1631 = vmatpush1.msra.mxu0 %v1497
    %1632 = vmatprep.subr.mxu0 %v1502
    %1633 = vmatpush1.msra.mxu0 %v1501
    %1634 = vmatprep.subr.mxu0 %v1506
    %1635 = vmatpush1.msra.mxu0 %v1505
    %1636 = vmatprep.subr.mxu0 %v1510
    %1637 = vmatpush1.msra.mxu0 %v1509
    %1638 = vmatprep.subr.mxu0 %v1514
    %1639 = vmatpush1.msra.mxu0 %v1513
    %1640 = vmatprep.subr.mxu0 %v1518
    %1641 = vmatpush1.msra.mxu0 %v1517
    %1642 = vmatprep.subr.mxu0 %v1522
    %1643 = vmatpush1.msra.mxu0 %v1521
    %1644 = vmatprep.subr.mxu0 %v1526
    %1645 = vmatpush1.msra.mxu0 %v1525
    %1646 = vmatprep.subr.mxu0 %v1530
    %1647 = vmatpush1.msra.mxu0 %v1529
    %1648 = vmatprep.subr.mxu0 %v1534
    %1649 = vmatpush1.msra.mxu0 %v1533
    %1650 = vmatprep.subr.mxu0 %v1538
    %1651 = vmatpush1.msra.mxu0 %v1537
    %1652 = vmatprep.subr.mxu0 %v1542
    %1653 = vmatpush1.msra.mxu0 %v1541
    %1654 = vmatprep.subr.mxu0 %v1546
    %1655 = vmatpush1.msra.mxu0 %v1545
    %1656 = vmatprep.subr.mxu0 %v1550
    %1657 = vmatpush1.msra.mxu0 %v1549
    %1658 = vmatprep.subr.mxu0 %v1554
    %1659 = vmatpush1.msra.mxu0 %v1553
    %1660 = vmatprep.subr.mxu0 %v1558
    %1661 = vmatpush1.msra.mxu0 %v1557
    %1662 = vmatprep.subr.mxu0 0.0
    %1663 = vmatpush1.msra.mxu0 0.0
    %1664 = vmatprep.subr.mxu0 0.0
    %1665 = vmatpush1.msra.mxu0 0.0
    %1666 = vmatprep.subr.mxu0 0.0
    %1667 = vmatpush1.msra.mxu0 0.0
    %1668 = vmatprep.subr.mxu0 0.0
    %1669 = vmatpush1.msra.mxu0 0.0
    %1670 = vmatprep.subr.mxu0 0.0
    %1671 = vmatpush1.msra.mxu0 0.0
    %1672 = vmatprep.subr.mxu0 0.0
    %1673 = vmatpush1.msra.mxu0 0.0
    %1674 = vmatprep.subr.mxu0 0.0
    %1675 = vmatpush1.msra.mxu0 0.0
    %1676 = vmatprep.subr.mxu0 0.0
    %1677 = vmatpush1.msra.mxu0 0.0
    %1678 = vmatprep.subr.mxu0 0.0
    %1679 = vmatpush1.msra.mxu0 0.0
    %1680 = vmatprep.subr.mxu0 0.0
    %1681 = vmatpush1.msra.mxu0 0.0
    %1682 = vmatprep.subr.mxu0 0.0
    %1683 = vmatpush1.msra.mxu0 0.0
    %1684 = vmatprep.subr.mxu0 0.0
    %1685 = vmatpush1.msra.mxu0 0.0
    %1686 = vmatprep.subr.mxu0 0.0
    %1687 = vmatpush1.msra.mxu0 0.0
    %1688 = vmatprep.subr.mxu0 0.0
    %1689 = vmatpush1.msra.mxu0 0.0
    %1690 = vmatprep.subr.mxu0 0.0
    %1691 = vmatpush1.msra.mxu0 0.0
    %1692 = vmatprep.subr.mxu0 0.0
    %1693 = vmatpush1.msra.mxu0 0.0
    %1694 = vmatprep.mubr.f32.mxu0 0.0
    %1695 = vmatmul.mubr.f32.gmra.mrb[0].mxu0 %v1485
    %v1696 = vpop.f32.mrb[0].mxu0
    %v1697 = vadd.f32 0.0, %v1696
    %v1698 = vpop.f32.mrb[0].mxu0
    %v1699 = vadd.f32 0.0, %v1698
    %1700 = vdwg.mxu0
    %v1701 = vadd.f32 %v1491, %v1626
    %v1702 = vadd.f32 %v1492, %v1628
    %v1703 = vadd.f32 %v1493, %v1697
    %v1704 = vadd.f32 %v1494, %v1699
    %v1705 = vxor.u32 %v1701, 2147483648
    %v1706 = vxor.u32 %v1702, 2147483648
    %v1707 = vxor.u32 %v1703, 2147483648
    %v1708 = vmul.f32 %v1705, 1.442695
    %v1709 = vpow.pop %v1708
    %v1710 = vmul.f32 %v1706, 1.442695
    %v1711 = vpow.pop %v1710
    %v1712 = vmul.f32 %v1707, 1.442695
    %v1713 = vpow.pop %v1712
    %v1714 = vadd.f32 %v1709, 1.0
    %v1715 = vadd.f32 %v1711, 1.0
    %v1716 = vadd.f32 %v1713, 1.0
    %v1717 = vrcp.pop %v1714
    %v1718 = vmul.f32 1.0, %v1717
    %v1719 = vrcp.pop %v1715
    %v1720 = vmul.f32 1.0, %v1719
    %v1721 = vrcp.pop %v1716
    %v1722 = vmul.f32 1.0, %v1721
    %v1723 = vtanh.pop %v1704
    %v1724 = vmul.f32 %v1720, %v1483
    %v1725 = vmul.f32 %v1718, %v1723
    %v1726 = vadd.f32 %v1724, %v1725
    %v1727 = vtanh.pop %v1726
    %v1728 = vmul.f32 %v1722, %v1727
    %s1729 = scalar_lea.vmem [#allocation3], 32
    %1730 = vst [vmem:[%s1729] sm:$0xff] %v1728
    %s1731 = smul.u32 5, 4
    %s1732 = smul.addr %s1731, 8
    %s1733 = scalar_lea.vmem [#allocation2], %s1732
    %v1734 = vld [vmem:[%s1733] sm:$0xff]
    %v1735 = vld [vmem:[%s1733 + $0x8] sm:$0xff]
    %v1736 = vld [vmem:[%s1733 + $0x10] sm:$0xff]
    %v1737 = vld [vmem:[%s1733 + $0x18] sm:$0xff]
    %v1738 = vld [vmem:[#allocation7] sm:$0xff]
    %v1739 = vld [vmem:[#allocation7 + $0x8] sm:$0xff]
    %v1740 = vld [vmem:[#allocation7 + $0x10] sm:$0xff]
    %v1741 = vld [vmem:[#allocation7 + $0x18] sm:$0xff]
    %v1742 = vld [vmem:[#allocation7 + $0x20] sm:$0xff]
    %v1743 = vld [vmem:[#allocation7 + $0x28] sm:$0xff]
    %v1744 = vld [vmem:[#allocation7 + $0x30] sm:$0xff]
    %v1745 = vld [vmem:[#allocation7 + $0x38] sm:$0xff]
    %v1746 = vld [vmem:[#allocation7 + $0x40] sm:$0xff]
    %v1747 = vld [vmem:[#allocation7 + $0x48] sm:$0xff]
    %v1748 = vld [vmem:[#allocation7 + $0x50] sm:$0xff]
    %v1749 = vld [vmem:[#allocation7 + $0x58] sm:$0xff]
    %v1750 = vld [vmem:[#allocation7 + $0x60] sm:$0xff]
    %v1751 = vld [vmem:[#allocation7 + $0x68] sm:$0xff]
    %v1752 = vld [vmem:[#allocation7 + $0x70] sm:$0xff]
    %v1753 = vld [vmem:[#allocation7 + $0x78] sm:$0xff]
    %v1754 = vld [vmem:[#allocation7 + $0x80] sm:$0xff]
    %v1755 = vld [vmem:[#allocation7 + $0x88] sm:$0xff]
    %v1756 = vld [vmem:[#allocation7 + $0x90] sm:$0xff]
    %v1757 = vld [vmem:[#allocation7 + $0x98] sm:$0xff]
    %v1758 = vld [vmem:[#allocation7 + $0xa0] sm:$0xff]
    %v1759 = vld [vmem:[#allocation7 + $0xa8] sm:$0xff]
    %v1760 = vld [vmem:[#allocation7 + $0xb0] sm:$0xff]
    %v1761 = vld [vmem:[#allocation7 + $0xb8] sm:$0xff]
    %v1762 = vld [vmem:[#allocation7 + $0xc0] sm:$0xff]
    %v1763 = vld [vmem:[#allocation7 + $0xc8] sm:$0xff]
    %v1764 = vld [vmem:[#allocation7 + $0xd0] sm:$0xff]
    %v1765 = vld [vmem:[#allocation7 + $0xd8] sm:$0xff]
    %v1766 = vld [vmem:[#allocation7 + $0xe0] sm:$0xff]
    %v1767 = vld [vmem:[#allocation7 + $0xe8] sm:$0xff]
    %v1768 = vld [vmem:[#allocation7 + $0xf0] sm:$0xff]
    %v1769 = vld [vmem:[#allocation7 + $0xf8] sm:$0xff]
    %v1770 = vld [vmem:[#allocation7 + $0x100] sm:$0xff]
    %v1771 = vld [vmem:[#allocation7 + $0x108] sm:$0xff]
    %v1772 = vld [vmem:[#allocation7 + $0x110] sm:$0xff]
    %v1773 = vld [vmem:[#allocation7 + $0x118] sm:$0xff]
    %v1774 = vld [vmem:[#allocation7 + $0x120] sm:$0xff]
    %v1775 = vld [vmem:[#allocation7 + $0x128] sm:$0xff]
    %v1776 = vld [vmem:[#allocation7 + $0x130] sm:$0xff]
    %v1777 = vld [vmem:[#allocation7 + $0x138] sm:$0xff]
    %v1778 = vld [vmem:[#allocation7 + $0x140] sm:$0xff]
    %v1779 = vld [vmem:[#allocation7 + $0x148] sm:$0xff]
    %v1780 = vld [vmem:[#allocation7 + $0x150] sm:$0xff]
    %v1781 = vld [vmem:[#allocation7 + $0x158] sm:$0xff]
    %v1782 = vld [vmem:[#allocation7 + $0x160] sm:$0xff]
    %v1783 = vld [vmem:[#allocation7 + $0x168] sm:$0xff]
    %v1784 = vld [vmem:[#allocation7 + $0x170] sm:$0xff]
    %v1785 = vld [vmem:[#allocation7 + $0x178] sm:$0xff]
    %v1786 = vld [vmem:[#allocation7 + $0x180] sm:$0xff]
    %v1787 = vld [vmem:[#allocation7 + $0x188] sm:$0xff]
    %v1788 = vld [vmem:[#allocation7 + $0x190] sm:$0xff]
    %v1789 = vld [vmem:[#allocation7 + $0x198] sm:$0xff]
    %v1790 = vld [vmem:[#allocation7 + $0x1a0] sm:$0xff]
    %v1791 = vld [vmem:[#allocation7 + $0x1a8] sm:$0xff]
    %v1792 = vld [vmem:[#allocation7 + $0x1b0] sm:$0xff]
    %v1793 = vld [vmem:[#allocation7 + $0x1b8] sm:$0xff]
    %v1794 = vld [vmem:[#allocation7 + $0x1c0] sm:$0xff]
    %v1795 = vld [vmem:[#allocation7 + $0x1c8] sm:$0xff]
    %v1796 = vld [vmem:[#allocation7 + $0x1d0] sm:$0xff]
    %v1797 = vld [vmem:[#allocation7 + $0x1d8] sm:$0xff]
    %v1798 = vld [vmem:[#allocation7 + $0x1e0] sm:$0xff]
    %v1799 = vld [vmem:[#allocation7 + $0x1e8] sm:$0xff]
    %v1800 = vld [vmem:[#allocation7 + $0x1f0] sm:$0xff]
    %v1801 = vld [vmem:[#allocation7 + $0x1f8] sm:$0xff]
    %1802 = vmatprep.subr.mxu0 %v1739
    %1803 = vmatpush1.msra.mxu0 %v1738
    %1804 = vmatprep.subr.mxu0 %v1743
    %1805 = vmatpush1.msra.mxu0 %v1742
    %1806 = vmatprep.subr.mxu0 %v1747
    %1807 = vmatpush1.msra.mxu0 %v1746
    %1808 = vmatprep.subr.mxu0 %v1751
    %1809 = vmatpush1.msra.mxu0 %v1750
    %1810 = vmatprep.subr.mxu0 %v1755
    %1811 = vmatpush1.msra.mxu0 %v1754
    %1812 = vmatprep.subr.mxu0 %v1759
    %1813 = vmatpush1.msra.mxu0 %v1758
    %1814 = vmatprep.subr.mxu0 %v1763
    %1815 = vmatpush1.msra.mxu0 %v1762
    %1816 = vmatprep.subr.mxu0 %v1767
    %1817 = vmatpush1.msra.mxu0 %v1766
    %1818 = vmatprep.subr.mxu0 %v1771
    %1819 = vmatpush1.msra.mxu0 %v1770
    %1820 = vmatprep.subr.mxu0 %v1775
    %1821 = vmatpush1.msra.mxu0 %v1774
    %1822 = vmatprep.subr.mxu0 %v1779
    %1823 = vmatpush1.msra.mxu0 %v1778
    %1824 = vmatprep.subr.mxu0 %v1783
    %1825 = vmatpush1.msra.mxu0 %v1782
    %1826 = vmatprep.subr.mxu0 %v1787
    %1827 = vmatpush1.msra.mxu0 %v1786
    %1828 = vmatprep.subr.mxu0 %v1791
    %1829 = vmatpush1.msra.mxu0 %v1790
    %1830 = vmatprep.subr.mxu0 %v1795
    %1831 = vmatpush1.msra.mxu0 %v1794
    %1832 = vmatprep.subr.mxu0 %v1799
    %1833 = vmatpush1.msra.mxu0 %v1798
    %1834 = vmatprep.subr.mxu0 0.0
    %1835 = vmatpush1.msra.mxu0 0.0
    %1836 = vmatprep.subr.mxu0 0.0
    %1837 = vmatpush1.msra.mxu0 0.0
    %1838 = vmatprep.subr.mxu0 0.0
    %1839 = vmatpush1.msra.mxu0 0.0
    %1840 = vmatprep.subr.mxu0 0.0
    %1841 = vmatpush1.msra.mxu0 0.0
    %1842 = vmatprep.subr.mxu0 0.0
    %1843 = vmatpush1.msra.mxu0 0.0
    %1844 = vmatprep.subr.mxu0 0.0
    %1845 = vmatpush1.msra.mxu0 0.0
    %1846 = vmatprep.subr.mxu0 0.0
    %1847 = vmatpush1.msra.mxu0 0.0
    %1848 = vmatprep.subr.mxu0 0.0
    %1849 = vmatpush1.msra.mxu0 0.0
    %1850 = vmatprep.subr.mxu0 0.0
    %1851 = vmatpush1.msra.mxu0 0.0
    %1852 = vmatprep.subr.mxu0 0.0
    %1853 = vmatpush1.msra.mxu0 0.0
    %1854 = vmatprep.subr.mxu0 0.0
    %1855 = vmatpush1.msra.mxu0 0.0
    %1856 = vmatprep.subr.mxu0 0.0
    %1857 = vmatpush1.msra.mxu0 0.0
    %1858 = vmatprep.subr.mxu0 0.0
    %1859 = vmatpush1.msra.mxu0 0.0
    %1860 = vmatprep.subr.mxu0 0.0
    %1861 = vmatpush1.msra.mxu0 0.0
    %1862 = vmatprep.subr.mxu0 0.0
    %1863 = vmatpush1.msra.mxu0 0.0
    %1864 = vmatprep.subr.mxu0 0.0
    %1865 = vmatpush1.msra.mxu0 0.0
    %1866 = vmatprep.mubr.f32.mxu0 0.0
    %1867 = vmatmul.mubr.f32.gmra.mrb[0].mxu0 %v1728
    %v1868 = vpop.f32.mrb[0].mxu0
    %v1869 = vadd.f32 0.0, %v1868
    %v1870 = vpop.f32.mrb[0].mxu0
    %v1871 = vadd.f32 0.0, %v1870
    %1872 = vdwg.mxu0
    %1873 = vmatprep.subr.mxu0 %v1741
    %1874 = vmatpush1.msra.mxu0 %v1740
    %1875 = vmatprep.subr.mxu0 %v1745
    %1876 = vmatpush1.msra.mxu0 %v1744
    %1877 = vmatprep.subr.mxu0 %v1749
    %1878 = vmatpush1.msra.mxu0 %v1748
    %1879 = vmatprep.subr.mxu0 %v1753
    %1880 = vmatpush1.msra.mxu0 %v1752
    %1881 = vmatprep.subr.mxu0 %v1757
    %1882 = vmatpush1.msra.mxu0 %v1756
    %1883 = vmatprep.subr.mxu0 %v1761
    %1884 = vmatpush1.msra.mxu0 %v1760
    %1885 = vmatprep.subr.mxu0 %v1765
    %1886 = vmatpush1.msra.mxu0 %v1764
    %1887 = vmatprep.subr.mxu0 %v1769
    %1888 = vmatpush1.msra.mxu0 %v1768
    %1889 = vmatprep.subr.mxu0 %v1773
    %1890 = vmatpush1.msra.mxu0 %v1772
    %1891 = vmatprep.subr.mxu0 %v1777
    %1892 = vmatpush1.msra.mxu0 %v1776
    %1893 = vmatprep.subr.mxu0 %v1781
    %1894 = vmatpush1.msra.mxu0 %v1780
    %1895 = vmatprep.subr.mxu0 %v1785
    %1896 = vmatpush1.msra.mxu0 %v1784
    %1897 = vmatprep.subr.mxu0 %v1789
    %1898 = vmatpush1.msra.mxu0 %v1788
    %1899 = vmatprep.subr.mxu0 %v1793
    %1900 = vmatpush1.msra.mxu0 %v1792
    %1901 = vmatprep.subr.mxu0 %v1797
    %1902 = vmatpush1.msra.mxu0 %v1796
    %1903 = vmatprep.subr.mxu0 %v1801
    %1904 = vmatpush1.msra.mxu0 %v1800
    %1905 = vmatprep.subr.mxu0 0.0
    %1906 = vmatpush1.msra.mxu0 0.0
    %1907 = vmatprep.subr.mxu0 0.0
    %1908 = vmatpush1.msra.mxu0 0.0
    %1909 = vmatprep.subr.mxu0 0.0
    %1910 = vmatpush1.msra.mxu0 0.0
    %1911 = vmatprep.subr.mxu0 0.0
    %1912 = vmatpush1.msra.mxu0 0.0
    %1913 = vmatprep.subr.mxu0 0.0
    %1914 = vmatpush1.msra.mxu0 0.0
    %1915 = vmatprep.subr.mxu0 0.0
    %1916 = vmatpush1.msra.mxu0 0.0
    %1917 = vmatprep.subr.mxu0 0.0
    %1918 = vmatpush1.msra.mxu0 0.0
    %1919 = vmatprep.subr.mxu0 0.0
    %1920 = vmatpush1.msra.mxu0 0.0
    %1921 = vmatprep.subr.mxu0 0.0
    %1922 = vmatpush1.msra.mxu0 0.0
    %1923 = vmatprep.subr.mxu0 0.0
    %1924 = vmatpush1.msra.mxu0 0.0
    %1925 = vmatprep.subr.mxu0 0.0
    %1926 = vmatpush1.msra.mxu0 0.0
    %1927 = vmatprep.subr.mxu0 0.0
    %1928 = vmatpush1.msra.mxu0 0.0
    %1929 = vmatprep.subr.mxu0 0.0
    %1930 = vmatpush1.msra.mxu0 0.0
    %1931 = vmatprep.subr.mxu0 0.0
    %1932 = vmatpush1.msra.mxu0 0.0
    %1933 = vmatprep.subr.mxu0 0.0
    %1934 = vmatpush1.msra.mxu0 0.0
    %1935 = vmatprep.subr.mxu0 0.0
    %1936 = vmatpush1.msra.mxu0 0.0
    %1937 = vmatprep.mubr.f32.mxu0 0.0
    %1938 = vmatmul.mubr.f32.gmra.mrb[0].mxu0 %v1728
    %v1939 = vpop.f32.mrb[0].mxu0
    %v1940 = vadd.f32 0.0, %v1939
    %v1941 = vpop.f32.mrb[0].mxu0
    %v1942 = vadd.f32 0.0, %v1941
    %1943 = vdwg.mxu0
    %v1944 = vadd.f32 %v1734, %v1869
    %v1945 = vadd.f32 %v1735, %v1871
    %v1946 = vadd.f32 %v1736, %v1940
    %v1947 = vadd.f32 %v1737, %v1942
    %v1948 = vxor.u32 %v1944, 2147483648
    %v1949 = vxor.u32 %v1945, 2147483648
    %v1950 = vxor.u32 %v1946, 2147483648
    %v1951 = vmul.f32 %v1948, 1.442695
    %v1952 = vpow.pop %v1951
    %v1953 = vmul.f32 %v1949, 1.442695
    %v1954 = vpow.pop %v1953
    %v1955 = vmul.f32 %v1950, 1.442695
    %v1956 = vpow.pop %v1955
    %v1957 = vadd.f32 %v1952, 1.0
    %v1958 = vadd.f32 %v1954, 1.0
    %v1959 = vadd.f32 %v1956, 1.0
    %v1960 = vrcp.pop %v1957
    %v1961 = vmul.f32 1.0, %v1960
    %v1962 = vrcp.pop %v1958
    %v1963 = vmul.f32 1.0, %v1962
    %v1964 = vrcp.pop %v1959
    %v1965 = vmul.f32 1.0, %v1964
    %v1966 = vtanh.pop %v1947
    %v1967 = vmul.f32 %v1963, %v1726
    %v1968 = vmul.f32 %v1961, %v1966
    %v1969 = vadd.f32 %v1967, %v1968
    %v1970 = vtanh.pop %v1969
    %v1971 = vmul.f32 %v1965, %v1970
    %s1972 = scalar_lea.vmem [#allocation3], 40
    %1973 = vst [vmem:[%s1972] sm:$0xff] %v1971
    %s1974 = smul.u32 6, 4
    %s1975 = smul.addr %s1974, 8
    %s1976 = scalar_lea.vmem [#allocation2], %s1975
    %v1977 = vld [vmem:[%s1976] sm:$0xff]
    %v1978 = vld [vmem:[%s1976 + $0x8] sm:$0xff]
    %v1979 = vld [vmem:[%s1976 + $0x10] sm:$0xff]
    %v1980 = vld [vmem:[%s1976 + $0x18] sm:$0xff]
    %v1981 = vld [vmem:[#allocation7] sm:$0xff]
    %v1982 = vld [vmem:[#allocation7 + $0x8] sm:$0xff]
    %v1983 = vld [vmem:[#allocation7 + $0x10] sm:$0xff]
    %v1984 = vld [vmem:[#allocation7 + $0x18] sm:$0xff]
    %v1985 = vld [vmem:[#allocation7 + $0x20] sm:$0xff]
    %v1986 = vld [vmem:[#allocation7 + $0x28] sm:$0xff]
    %v1987 = vld [vmem:[#allocation7 + $0x30] sm:$0xff]
    %v1988 = vld [vmem:[#allocation7 + $0x38] sm:$0xff]
    %v1989 = vld [vmem:[#allocation7 + $0x40] sm:$0xff]
    %v1990 = vld [vmem:[#allocation7 + $0x48] sm:$0xff]
    %v1991 = vld [vmem:[#allocation7 + $0x50] sm:$0xff]
    %v1992 = vld [vmem:[#allocation7 + $0x58] sm:$0xff]
    %v1993 = vld [vmem:[#allocation7 + $0x60] sm:$0xff]
    %v1994 = vld [vmem:[#allocation7 + $0x68] sm:$0xff]
    %v1995 = vld [vmem:[#allocation7 + $0x70] sm:$0xff]
    %v1996 = vld [vmem:[#allocation7 + $0x78] sm:$0xff]
    %v1997 = vld [vmem:[#allocation7 + $0x80] sm:$0xff]
    %v1998 = vld [vmem:[#allocation7 + $0x88] sm:$0xff]
    %v1999 = vld [vmem:[#allocation7 + $0x90] sm:$0xff]
    %v2000 = vld [vmem:[#allocation7 + $0x98] sm:$0xff]
    %v2001 = vld [vmem:[#allocation7 + $0xa0] sm:$0xff]
    %v2002 = vld [vmem:[#allocation7 + $0xa8] sm:$0xff]
    %v2003 = vld [vmem:[#allocation7 + $0xb0] sm:$0xff]
    %v2004 = vld [vmem:[#allocation7 + $0xb8] sm:$0xff]
    %v2005 = vld [vmem:[#allocation7 + $0xc0] sm:$0xff]
    %v2006 = vld [vmem:[#allocation7 + $0xc8] sm:$0xff]
    %v2007 = vld [vmem:[#allocation7 + $0xd0] sm:$0xff]
    %v2008 = vld [vmem:[#allocation7 + $0xd8] sm:$0xff]
    %v2009 = vld [vmem:[#allocation7 + $0xe0] sm:$0xff]
    %v2010 = vld [vmem:[#allocation7 + $0xe8] sm:$0xff]
    %v2011 = vld [vmem:[#allocation7 + $0xf0] sm:$0xff]
    %v2012 = vld [vmem:[#allocation7 + $0xf8] sm:$0xff]
    %v2013 = vld [vmem:[#allocation7 + $0x100] sm:$0xff]
    %v2014 = vld [vmem:[#allocation7 + $0x108] sm:$0xff]
    %v2015 = vld [vmem:[#allocation7 + $0x110] sm:$0xff]
    %v2016 = vld [vmem:[#allocation7 + $0x118] sm:$0xff]
    %v2017 = vld [vmem:[#allocation7 + $0x120] sm:$0xff]
    %v2018 = vld [vmem:[#allocation7 + $0x128] sm:$0xff]
    %v2019 = vld [vmem:[#allocation7 + $0x130] sm:$0xff]
    %v2020 = vld [vmem:[#allocation7 + $0x138] sm:$0xff]
    %v2021 = vld [vmem:[#allocation7 + $0x140] sm:$0xff]
    %v2022 = vld [vmem:[#allocation7 + $0x148] sm:$0xff]
    %v2023 = vld [vmem:[#allocation7 + $0x150] sm:$0xff]
    %v2024 = vld [vmem:[#allocation7 + $0x158] sm:$0xff]
    %v2025 = vld [vmem:[#allocation7 + $0x160] sm:$0xff]
    %v2026 = vld [vmem:[#allocation7 + $0x168] sm:$0xff]
    %v2027 = vld [vmem:[#allocation7 + $0x170] sm:$0xff]
    %v2028 = vld [vmem:[#allocation7 + $0x178] sm:$0xff]
    %v2029 = vld [vmem:[#allocation7 + $0x180] sm:$0xff]
    %v2030 = vld [vmem:[#allocation7 + $0x188] sm:$0xff]
    %v2031 = vld [vmem:[#allocation7 + $0x190] sm:$0xff]
    %v2032 = vld [vmem:[#allocation7 + $0x198] sm:$0xff]
    %v2033 = vld [vmem:[#allocation7 + $0x1a0] sm:$0xff]
    %v2034 = vld [vmem:[#allocation7 + $0x1a8] sm:$0xff]
    %v2035 = vld [vmem:[#allocation7 + $0x1b0] sm:$0xff]
    %v2036 = vld [vmem:[#allocation7 + $0x1b8] sm:$0xff]
    %v2037 = vld [vmem:[#allocation7 + $0x1c0] sm:$0xff]
    %v2038 = vld [vmem:[#allocation7 + $0x1c8] sm:$0xff]
    %v2039 = vld [vmem:[#allocation7 + $0x1d0] sm:$0xff]
    %v2040 = vld [vmem:[#allocation7 + $0x1d8] sm:$0xff]
    %v2041 = vld [vmem:[#allocation7 + $0x1e0] sm:$0xff]
    %v2042 = vld [vmem:[#allocation7 + $0x1e8] sm:$0xff]
    %v2043 = vld [vmem:[#allocation7 + $0x1f0] sm:$0xff]
    %v2044 = vld [vmem:[#allocation7 + $0x1f8] sm:$0xff]
    %2045 = vmatprep.subr.mxu0 %v1982
    %2046 = vmatpush1.msra.mxu0 %v1981
    %2047 = vmatprep.subr.mxu0 %v1986
    %2048 = vmatpush1.msra.mxu0 %v1985
    %2049 = vmatprep.subr.mxu0 %v1990
    %2050 = vmatpush1.msra.mxu0 %v1989
    %2051 = vmatprep.subr.mxu0 %v1994
    %2052 = vmatpush1.msra.mxu0 %v1993
    %2053 = vmatprep.subr.mxu0 %v1998
    %2054 = vmatpush1.msra.mxu0 %v1997
    %2055 = vmatprep.subr.mxu0 %v2002
    %2056 = vmatpush1.msra.mxu0 %v2001
    %2057 = vmatprep.subr.mxu0 %v2006
    %2058 = vmatpush1.msra.mxu0 %v2005
    %2059 = vmatprep.subr.mxu0 %v2010
    %2060 = vmatpush1.msra.mxu0 %v2009
    %2061 = vmatprep.subr.mxu0 %v2014
    %2062 = vmatpush1.msra.mxu0 %v2013
    %2063 = vmatprep.subr.mxu0 %v2018
    %2064 = vmatpush1.msra.mxu0 %v2017
    %2065 = vmatprep.subr.mxu0 %v2022
    %2066 = vmatpush1.msra.mxu0 %v2021
    %2067 = vmatprep.subr.mxu0 %v2026
    %2068 = vmatpush1.msra.mxu0 %v2025
    %2069 = vmatprep.subr.mxu0 %v2030
    %2070 = vmatpush1.msra.mxu0 %v2029
    %2071 = vmatprep.subr.mxu0 %v2034
    %2072 = vmatpush1.msra.mxu0 %v2033
    %2073 = vmatprep.subr.mxu0 %v2038
    %2074 = vmatpush1.msra.mxu0 %v2037
    %2075 = vmatprep.subr.mxu0 %v2042
    %2076 = vmatpush1.msra.mxu0 %v2041
    %2077 = vmatprep.subr.mxu0 0.0
    %2078 = vmatpush1.msra.mxu0 0.0
    %2079 = vmatprep.subr.mxu0 0.0
    %2080 = vmatpush1.msra.mxu0 0.0
    %2081 = vmatprep.subr.mxu0 0.0
    %2082 = vmatpush1.msra.mxu0 0.0
    %2083 = vmatprep.subr.mxu0 0.0
    %2084 = vmatpush1.msra.mxu0 0.0
    %2085 = vmatprep.subr.mxu0 0.0
    %2086 = vmatpush1.msra.mxu0 0.0
    %2087 = vmatprep.subr.mxu0 0.0
    %2088 = vmatpush1.msra.mxu0 0.0
    %2089 = vmatprep.subr.mxu0 0.0
    %2090 = vmatpush1.msra.mxu0 0.0
    %2091 = vmatprep.subr.mxu0 0.0
    %2092 = vmatpush1.msra.mxu0 0.0
    %2093 = vmatprep.subr.mxu0 0.0
    %2094 = vmatpush1.msra.mxu0 0.0
    %2095 = vmatprep.subr.mxu0 0.0
    %2096 = vmatpush1.msra.mxu0 0.0
    %2097 = vmatprep.subr.mxu0 0.0
    %2098 = vmatpush1.msra.mxu0 0.0
    %2099 = vmatprep.subr.mxu0 0.0
    %2100 = vmatpush1.msra.mxu0 0.0
    %2101 = vmatprep.subr.mxu0 0.0
    %2102 = vmatpush1.msra.mxu0 0.0
    %2103 = vmatprep.subr.mxu0 0.0
    %2104 = vmatpush1.msra.mxu0 0.0
    %2105 = vmatprep.subr.mxu0 0.0
    %2106 = vmatpush1.msra.mxu0 0.0
    %2107 = vmatprep.subr.mxu0 0.0
    %2108 = vmatpush1.msra.mxu0 0.0
    %2109 = vmatprep.mubr.f32.mxu0 0.0
    %2110 = vmatmul.mubr.f32.gmra.mrb[0].mxu0 %v1971
    %v2111 = vpop.f32.mrb[0].mxu0
    %v2112 = vadd.f32 0.0, %v2111
    %v2113 = vpop.f32.mrb[0].mxu0
    %v2114 = vadd.f32 0.0, %v2113
    %2115 = vdwg.mxu0
    %2116 = vmatprep.subr.mxu0 %v1984
    %2117 = vmatpush1.msra.mxu0 %v1983
    %2118 = vmatprep.subr.mxu0 %v1988
    %2119 = vmatpush1.msra.mxu0 %v1987
    %2120 = vmatprep.subr.mxu0 %v1992
    %2121 = vmatpush1.msra.mxu0 %v1991
    %2122 = vmatprep.subr.mxu0 %v1996
    %2123 = vmatpush1.msra.mxu0 %v1995
    %2124 = vmatprep.subr.mxu0 %v2000
    %2125 = vmatpush1.msra.mxu0 %v1999
    %2126 = vmatprep.subr.mxu0 %v2004
    %2127 = vmatpush1.msra.mxu0 %v2003
    %2128 = vmatprep.subr.mxu0 %v2008
    %2129 = vmatpush1.msra.mxu0 %v2007
    %2130 = vmatprep.subr.mxu0 %v2012
    %2131 = vmatpush1.msra.mxu0 %v2011
    %2132 = vmatprep.subr.mxu0 %v2016
    %2133 = vmatpush1.msra.mxu0 %v2015
    %2134 = vmatprep.subr.mxu0 %v2020
    %2135 = vmatpush1.msra.mxu0 %v2019
    %2136 = vmatprep.subr.mxu0 %v2024
    %2137 = vmatpush1.msra.mxu0 %v2023
    %2138 = vmatprep.subr.mxu0 %v2028
    %2139 = vmatpush1.msra.mxu0 %v2027
    %2140 = vmatprep.subr.mxu0 %v2032
    %2141 = vmatpush1.msra.mxu0 %v2031
    %2142 = vmatprep.subr.mxu0 %v2036
    %2143 = vmatpush1.msra.mxu0 %v2035
    %2144 = vmatprep.subr.mxu0 %v2040
    %2145 = vmatpush1.msra.mxu0 %v2039
    %2146 = vmatprep.subr.mxu0 %v2044
    %2147 = vmatpush1.msra.mxu0 %v2043
    %2148 = vmatprep.subr.mxu0 0.0
    %2149 = vmatpush1.msra.mxu0 0.0
    %2150 = vmatprep.subr.mxu0 0.0
    %2151 = vmatpush1.msra.mxu0 0.0
    %2152 = vmatprep.subr.mxu0 0.0
    %2153 = vmatpush1.msra.mxu0 0.0
    %2154 = vmatprep.subr.mxu0 0.0
    %2155 = vmatpush1.msra.mxu0 0.0
    %2156 = vmatprep.subr.mxu0 0.0
    %2157 = vmatpush1.msra.mxu0 0.0
    %2158 = vmatprep.subr.mxu0 0.0
    %2159 = vmatpush1.msra.mxu0 0.0
    %2160 = vmatprep.subr.mxu0 0.0
    %2161 = vmatpush1.msra.mxu0 0.0
    %2162 = vmatprep.subr.mxu0 0.0
    %2163 = vmatpush1.msra.mxu0 0.0
    %2164 = vmatprep.subr.mxu0 0.0
    %2165 = vmatpush1.msra.mxu0 0.0
    %2166 = vmatprep.subr.mxu0 0.0
    %2167 = vmatpush1.msra.mxu0 0.0
    %2168 = vmatprep.subr.mxu0 0.0
    %2169 = vmatpush1.msra.mxu0 0.0
    %2170 = vmatprep.subr.mxu0 0.0
    %2171 = vmatpush1.msra.mxu0 0.0
    %2172 = vmatprep.subr.mxu0 0.0
    %2173 = vmatpush1.msra.mxu0 0.0
    %2174 = vmatprep.subr.mxu0 0.0
    %2175 = vmatpush1.msra.mxu0 0.0
    %2176 = vmatprep.subr.mxu0 0.0
    %2177 = vmatpush1.msra.mxu0 0.0
    %2178 = vmatprep.subr.mxu0 0.0
    %2179 = vmatpush1.msra.mxu0 0.0
    %2180 = vmatprep.mubr.f32.mxu0 0.0
    %2181 = vmatmul.mubr.f32.gmra.mrb[0].mxu0 %v1971
    %v2182 = vpop.f32.mrb[0].mxu0
    %v2183 = vadd.f32 0.0, %v2182
    %v2184 = vpop.f32.mrb[0].mxu0
    %v2185 = vadd.f32 0.0, %v2184
    %2186 = vdwg.mxu0
    %v2187 = vadd.f32 %v1977, %v2112
    %v2188 = vadd.f32 %v1978, %v2114
    %v2189 = vadd.f32 %v1979, %v2183
    %v2190 = vadd.f32 %v1980, %v2185
    %v2191 = vxor.u32 %v2187, 2147483648
    %v2192 = vxor.u32 %v2188, 2147483648
    %v2193 = vxor.u32 %v2189, 2147483648
    %v2194 = vmul.f32 %v2191, 1.442695
    %v2195 = vpow.pop %v2194
    %v2196 = vmul.f32 %v2192, 1.442695
    %v2197 = vpow.pop %v2196
    %v2198 = vmul.f32 %v2193, 1.442695
    %v2199 = vpow.pop %v2198
    %v2200 = vadd.f32 %v2195, 1.0
    %v2201 = vadd.f32 %v2197, 1.0
    %v2202 = vadd.f32 %v2199, 1.0
    %v2203 = vrcp.pop %v2200
    %v2204 = vmul.f32 1.0, %v2203
    %v2205 = vrcp.pop %v2201
    %v2206 = vmul.f32 1.0, %v2205
    %v2207 = vrcp.pop %v2202
    %v2208 = vmul.f32 1.0, %v2207
    %v2209 = vtanh.pop %v2190
    %v2210 = vmul.f32 %v2206, %v1969
    %v2211 = vmul.f32 %v2204, %v2209
    %v2212 = vadd.f32 %v2210, %v2211
    %v2213 = vtanh.pop %v2212
    %v2214 = vmul.f32 %v2208, %v2213
    %s2215 = scalar_lea.vmem [#allocation3], 48
    %2216 = vst [vmem:[%s2215] sm:$0xff] %v2214
    %s2217 = smul.u32 7, 4
    %s2218 = smul.addr %s2217, 8
    %s2219 = scalar_lea.vmem [#allocation2], %s2218
    %v2220 = vld [vmem:[%s2219] sm:$0xff]
    %v2221 = vld [vmem:[%s2219 + $0x8] sm:$0xff]
    %v2222 = vld [vmem:[%s2219 + $0x10] sm:$0xff]
    %v2223 = vld [vmem:[%s2219 + $0x18] sm:$0xff]
    %v2224 = vld [vmem:[#allocation7] sm:$0xff]
    %v2225 = vld [vmem:[#allocation7 + $0x8] sm:$0xff]
    %v2226 = vld [vmem:[#allocation7 + $0x10] sm:$0xff]
    %v2227 = vld [vmem:[#allocation7 + $0x18] sm:$0xff]
    %v2228 = vld [vmem:[#allocation7 + $0x20] sm:$0xff]
    %v2229 = vld [vmem:[#allocation7 + $0x28] sm:$0xff]
    %v2230 = vld [vmem:[#allocation7 + $0x30] sm:$0xff]
    %v2231 = vld [vmem:[#allocation7 + $0x38] sm:$0xff]
    %v2232 = vld [vmem:[#allocation7 + $0x40] sm:$0xff]
    %v2233 = vld [vmem:[#allocation7 + $0x48] sm:$0xff]
    %v2234 = vld [vmem:[#allocation7 + $0x50] sm:$0xff]
    %v2235 = vld [vmem:[#allocation7 + $0x58] sm:$0xff]
    %v2236 = vld [vmem:[#allocation7 + $0x60] sm:$0xff]
    %v2237 = vld [vmem:[#allocation7 + $0x68] sm:$0xff]
    %v2238 = vld [vmem:[#allocation7 + $0x70] sm:$0xff]
    %v2239 = vld [vmem:[#allocation7 + $0x78] sm:$0xff]
    %v2240 = vld [vmem:[#allocation7 + $0x80] sm:$0xff]
    %v2241 = vld [vmem:[#allocation7 + $0x88] sm:$0xff]
    %v2242 = vld [vmem:[#allocation7 + $0x90] sm:$0xff]
    %v2243 = vld [vmem:[#allocation7 + $0x98] sm:$0xff]
    %v2244 = vld [vmem:[#allocation7 + $0xa0] sm:$0xff]
    %v2245 = vld [vmem:[#allocation7 + $0xa8] sm:$0xff]
    %v2246 = vld [vmem:[#allocation7 + $0xb0] sm:$0xff]
    %v2247 = vld [vmem:[#allocation7 + $0xb8] sm:$0xff]
    %v2248 = vld [vmem:[#allocation7 + $0xc0] sm:$0xff]
    %v2249 = vld [vmem:[#allocation7 + $0xc8] sm:$0xff]
    %v2250 = vld [vmem:[#allocation7 + $0xd0] sm:$0xff]
    %v2251 = vld [vmem:[#allocation7 + $0xd8] sm:$0xff]
    %v2252 = vld [vmem:[#allocation7 + $0xe0] sm:$0xff]
    %v2253 = vld [vmem:[#allocation7 + $0xe8] sm:$0xff]
    %v2254 = vld [vmem:[#allocation7 + $0xf0] sm:$0xff]
    %v2255 = vld [vmem:[#allocation7 + $0xf8] sm:$0xff]
    %v2256 = vld [vmem:[#allocation7 + $0x100] sm:$0xff]
    %v2257 = vld [vmem:[#allocation7 + $0x108] sm:$0xff]
    %v2258 = vld [vmem:[#allocation7 + $0x110] sm:$0xff]
    %v2259 = vld [vmem:[#allocation7 + $0x118] sm:$0xff]
    %v2260 = vld [vmem:[#allocation7 + $0x120] sm:$0xff]
    %v2261 = vld [vmem:[#allocation7 + $0x128] sm:$0xff]
    %v2262 = vld [vmem:[#allocation7 + $0x130] sm:$0xff]
    %v2263 = vld [vmem:[#allocation7 + $0x138] sm:$0xff]
    %v2264 = vld [vmem:[#allocation7 + $0x140] sm:$0xff]
    %v2265 = vld [vmem:[#allocation7 + $0x148] sm:$0xff]
    %v2266 = vld [vmem:[#allocation7 + $0x150] sm:$0xff]
    %v2267 = vld [vmem:[#allocation7 + $0x158] sm:$0xff]
    %v2268 = vld [vmem:[#allocation7 + $0x160] sm:$0xff]
    %v2269 = vld [vmem:[#allocation7 + $0x168] sm:$0xff]
    %v2270 = vld [vmem:[#allocation7 + $0x170] sm:$0xff]
    %v2271 = vld [vmem:[#allocation7 + $0x178] sm:$0xff]
    %v2272 = vld [vmem:[#allocation7 + $0x180] sm:$0xff]
    %v2273 = vld [vmem:[#allocation7 + $0x188] sm:$0xff]
    %v2274 = vld [vmem:[#allocation7 + $0x190] sm:$0xff]
    %v2275 = vld [vmem:[#allocation7 + $0x198] sm:$0xff]
    %v2276 = vld [vmem:[#allocation7 + $0x1a0] sm:$0xff]
    %v2277 = vld [vmem:[#allocation7 + $0x1a8] sm:$0xff]
    %v2278 = vld [vmem:[#allocation7 + $0x1b0] sm:$0xff]
    %v2279 = vld [vmem:[#allocation7 + $0x1b8] sm:$0xff]
    %v2280 = vld [vmem:[#allocation7 + $0x1c0] sm:$0xff]
    %v2281 = vld [vmem:[#allocation7 + $0x1c8] sm:$0xff]
    %v2282 = vld [vmem:[#allocation7 + $0x1d0] sm:$0xff]
    %v2283 = vld [vmem:[#allocation7 + $0x1d8] sm:$0xff]
    %v2284 = vld [vmem:[#allocation7 + $0x1e0] sm:$0xff]
    %v2285 = vld [vmem:[#allocation7 + $0x1e8] sm:$0xff]
    %v2286 = vld [vmem:[#allocation7 + $0x1f0] sm:$0xff]
    %v2287 = vld [vmem:[#allocation7 + $0x1f8] sm:$0xff]
    %2288 = vmatprep.subr.mxu0 %v2225
    %2289 = vmatpush1.msra.mxu0 %v2224
    %2290 = vmatprep.subr.mxu0 %v2229
    %2291 = vmatpush1.msra.mxu0 %v2228
    %2292 = vmatprep.subr.mxu0 %v2233
    %2293 = vmatpush1.msra.mxu0 %v2232
    %2294 = vmatprep.subr.mxu0 %v2237
    %2295 = vmatpush1.msra.mxu0 %v2236
    %2296 = vmatprep.subr.mxu0 %v2241
    %2297 = vmatpush1.msra.mxu0 %v2240
    %2298 = vmatprep.subr.mxu0 %v2245
    %2299 = vmatpush1.msra.mxu0 %v2244
    %2300 = vmatprep.subr.mxu0 %v2249
    %2301 = vmatpush1.msra.mxu0 %v2248
    %2302 = vmatprep.subr.mxu0 %v2253
    %2303 = vmatpush1.msra.mxu0 %v2252
    %2304 = vmatprep.subr.mxu0 %v2257
    %2305 = vmatpush1.msra.mxu0 %v2256
    %2306 = vmatprep.subr.mxu0 %v2261
    %2307 = vmatpush1.msra.mxu0 %v2260
    %2308 = vmatprep.subr.mxu0 %v2265
    %2309 = vmatpush1.msra.mxu0 %v2264
    %2310 = vmatprep.subr.mxu0 %v2269
    %2311 = vmatpush1.msra.mxu0 %v2268
    %2312 = vmatprep.subr.mxu0 %v2273
    %2313 = vmatpush1.msra.mxu0 %v2272
    %2314 = vmatprep.subr.mxu0 %v2277
    %2315 = vmatpush1.msra.mxu0 %v2276
    %2316 = vmatprep.subr.mxu0 %v2281
    %2317 = vmatpush1.msra.mxu0 %v2280
    %2318 = vmatprep.subr.mxu0 %v2285
    %2319 = vmatpush1.msra.mxu0 %v2284
    %2320 = vmatprep.subr.mxu0 0.0
    %2321 = vmatpush1.msra.mxu0 0.0
    %2322 = vmatprep.subr.mxu0 0.0
    %2323 = vmatpush1.msra.mxu0 0.0
    %2324 = vmatprep.subr.mxu0 0.0
    %2325 = vmatpush1.msra.mxu0 0.0
    %2326 = vmatprep.subr.mxu0 0.0
    %2327 = vmatpush1.msra.mxu0 0.0
    %2328 = vmatprep.subr.mxu0 0.0
    %2329 = vmatpush1.msra.mxu0 0.0
    %2330 = vmatprep.subr.mxu0 0.0
    %2331 = vmatpush1.msra.mxu0 0.0
    %2332 = vmatprep.subr.mxu0 0.0
    %2333 = vmatpush1.msra.mxu0 0.0
    %2334 = vmatprep.subr.mxu0 0.0
    %2335 = vmatpush1.msra.mxu0 0.0
    %2336 = vmatprep.subr.mxu0 0.0
    %2337 = vmatpush1.msra.mxu0 0.0
    %2338 = vmatprep.subr.mxu0 0.0
    %2339 = vmatpush1.msra.mxu0 0.0
    %2340 = vmatprep.subr.mxu0 0.0
    %2341 = vmatpush1.msra.mxu0 0.0
    %2342 = vmatprep.subr.mxu0 0.0
    %2343 = vmatpush1.msra.mxu0 0.0
    %2344 = vmatprep.subr.mxu0 0.0
    %2345 = vmatpush1.msra.mxu0 0.0
    %2346 = vmatprep.subr.mxu0 0.0
    %2347 = vmatpush1.msra.mxu0 0.0
    %2348 = vmatprep.subr.mxu0 0.0
    %2349 = vmatpush1.msra.mxu0 0.0
    %2350 = vmatprep.subr.mxu0 0.0
    %2351 = vmatpush1.msra.mxu0 0.0
    %2352 = vmatprep.mubr.f32.mxu0 0.0
    %2353 = vmatmul.mubr.f32.gmra.mrb[0].mxu0 %v2214
    %v2354 = vpop.f32.mrb[0].mxu0
    %v2355 = vadd.f32 0.0, %v2354
    %v2356 = vpop.f32.mrb[0].mxu0
    %v2357 = vadd.f32 0.0, %v2356
    %2358 = vdwg.mxu0
    %2359 = vmatprep.subr.mxu0 %v2227
    %2360 = vmatpush1.msra.mxu0 %v2226
    %2361 = vmatprep.subr.mxu0 %v2231
    %2362 = vmatpush1.msra.mxu0 %v2230
    %2363 = vmatprep.subr.mxu0 %v2235
    %2364 = vmatpush1.msra.mxu0 %v2234
    %2365 = vmatprep.subr.mxu0 %v2239
    %2366 = vmatpush1.msra.mxu0 %v2238
    %2367 = vmatprep.subr.mxu0 %v2243
    %2368 = vmatpush1.msra.mxu0 %v2242
    %2369 = vmatprep.subr.mxu0 %v2247
    %2370 = vmatpush1.msra.mxu0 %v2246
    %2371 = vmatprep.subr.mxu0 %v2251
    %2372 = vmatpush1.msra.mxu0 %v2250
    %2373 = vmatprep.subr.mxu0 %v2255
    %2374 = vmatpush1.msra.mxu0 %v2254
    %2375 = vmatprep.subr.mxu0 %v2259
    %2376 = vmatpush1.msra.mxu0 %v2258
    %2377 = vmatprep.subr.mxu0 %v2263
    %2378 = vmatpush1.msra.mxu0 %v2262
    %2379 = vmatprep.subr.mxu0 %v2267
    %2380 = vmatpush1.msra.mxu0 %v2266
    %2381 = vmatprep.subr.mxu0 %v2271
    %2382 = vmatpush1.msra.mxu0 %v2270
    %2383 = vmatprep.subr.mxu0 %v2275
    %2384 = vmatpush1.msra.mxu0 %v2274
    %2385 = vmatprep.subr.mxu0 %v2279
    %2386 = vmatpush1.msra.mxu0 %v2278
    %2387 = vmatprep.subr.mxu0 %v2283
    %2388 = vmatpush1.msra.mxu0 %v2282
    %2389 = vmatprep.subr.mxu0 %v2287
    %2390 = vmatpush1.msra.mxu0 %v2286
    %2391 = vmatprep.subr.mxu0 0.0
    %2392 = vmatpush1.msra.mxu0 0.0
    %2393 = vmatprep.subr.mxu0 0.0
    %2394 = vmatpush1.msra.mxu0 0.0
    %2395 = vmatprep.subr.mxu0 0.0
    %2396 = vmatpush1.msra.mxu0 0.0
    %2397 = vmatprep.subr.mxu0 0.0
    %2398 = vmatpush1.msra.mxu0 0.0
    %2399 = vmatprep.subr.mxu0 0.0
    %2400 = vmatpush1.msra.mxu0 0.0
    %2401 = vmatprep.subr.mxu0 0.0
    %2402 = vmatpush1.msra.mxu0 0.0
    %2403 = vmatprep.subr.mxu0 0.0
    %2404 = vmatpush1.msra.mxu0 0.0
    %2405 = vmatprep.subr.mxu0 0.0
    %2406 = vmatpush1.msra.mxu0 0.0
    %2407 = vmatprep.subr.mxu0 0.0
    %2408 = vmatpush1.msra.mxu0 0.0
    %2409 = vmatprep.subr.mxu0 0.0
    %2410 = vmatpush1.msra.mxu0 0.0
    %2411 = vmatprep.subr.mxu0 0.0
    %2412 = vmatpush1.msra.mxu0 0.0
    %2413 = vmatprep.subr.mxu0 0.0
    %2414 = vmatpush1.msra.mxu0 0.0
    %2415 = vmatprep.subr.mxu0 0.0
    %2416 = vmatpush1.msra.mxu0 0.0
    %2417 = vmatprep.subr.mxu0 0.0
    %2418 = vmatpush1.msra.mxu0 0.0
    %2419 = vmatprep.subr.mxu0 0.0
    %2420 = vmatpush1.msra.mxu0 0.0
    %2421 = vmatprep.subr.mxu0 0.0
    %2422 = vmatpush1.msra.mxu0 0.0
    %2423 = vmatprep.mubr.f32.mxu0 0.0
    %2424 = vmatmul.mubr.f32.gmra.mrb[0].mxu0 %v2214
    %v2425 = vpop.f32.mrb[0].mxu0
    %v2426 = vadd.f32 0.0, %v2425
    %v2427 = vpop.f32.mrb[0].mxu0
    %v2428 = vadd.f32 0.0, %v2427
    %2429 = vdwg.mxu0
    %v2430 = vadd.f32 %v2220, %v2355
    %v2431 = vadd.f32 %v2221, %v2357
    %v2432 = vadd.f32 %v2222, %v2426
    %v2433 = vadd.f32 %v2223, %v2428
    %v2434 = vxor.u32 %v2430, 2147483648
    %v2435 = vxor.u32 %v2431, 2147483648
    %v2436 = vxor.u32 %v2432, 2147483648
    %v2437 = vmul.f32 %v2434, 1.442695
    %v2438 = vpow.pop %v2437
    %v2439 = vmul.f32 %v2435, 1.442695
    %v2440 = vpow.pop %v2439
    %v2441 = vmul.f32 %v2436, 1.442695
    %v2442 = vpow.pop %v2441
    %v2443 = vadd.f32 %v2438, 1.0
    %v2444 = vadd.f32 %v2440, 1.0
    %v2445 = vadd.f32 %v2442, 1.0
    %v2446 = vrcp.pop %v2443
    %v2447 = vmul.f32 1.0, %v2446
    %v2448 = vrcp.pop %v2444
    %v2449 = vmul.f32 1.0, %v2448
    %v2450 = vrcp.pop %v2445
    %v2451 = vmul.f32 1.0, %v2450
    %v2452 = vtanh.pop %v2433
    %v2453 = vmul.f32 %v2449, %v2212
    %v2454 = vmul.f32 %v2447, %v2452
    %v2455 = vadd.f32 %v2453, %v2454
    %v2456 = vtanh.pop %v2455
    %v2457 = vmul.f32 %v2451, %v2456
    %s2458 = scalar_lea.vmem [#allocation3], 56
    %2459 = vst [vmem:[%s2458] sm:$0xff] %v2457
    %v2460 = vld [vmem:[#allocation3] sm:$0xff]
    %v2461 = vld [vmem:[#allocation3 + $0x8] sm:$0xff]
    %v2462 = vld [vmem:[#allocation3 + $0x10] sm:$0xff]
    %v2463 = vld [vmem:[#allocation3 + $0x18] sm:$0xff]
    %v2464 = vld [vmem:[#allocation3 + $0x20] sm:$0xff]
    %v2465 = vld [vmem:[#allocation3 + $0x28] sm:$0xff]
    %v2466 = vld [vmem:[#allocation3 + $0x30] sm:$0xff]
    %v2467 = vld [vmem:[#allocation3 + $0x38] sm:$0xff]
    %v2468 = vld [vmem:[%s6] sm:$0xff]
    %v2469 = vld [vmem:[%s6 + $0x8] sm:$0xff]
    %v2470 = vld [vmem:[%s6 + $0x10] sm:$0xff]
    %v2471 = vld [vmem:[%s6 + $0x18] sm:$0xff]
    %v2472 = vld [vmem:[%s6 + $0x20] sm:$0xff]
    %v2473 = vld [vmem:[%s6 + $0x28] sm:$0xff]
    %v2474 = vld [vmem:[%s6 + $0x30] sm:$0xff]
    %v2475 = vld [vmem:[%s6 + $0x38] sm:$0xff]
    %v2476 = vld [vmem:[%s6 + $0x40] sm:$0xff]
    %v2477 = vld [vmem:[%s6 + $0x48] sm:$0xff]
    %v2478 = vld [vmem:[%s6 + $0x50] sm:$0xff]
    %v2479 = vld [vmem:[%s6 + $0x58] sm:$0xff]
    %v2480 = vld [vmem:[%s6 + $0x60] sm:$0xff]
    %v2481 = vld [vmem:[%s6 + $0x68] sm:$0xff]
    %v2482 = vld [vmem:[%s6 + $0x70] sm:$0xff]
    %v2483 = vld [vmem:[%s6 + $0x78] sm:$0xff]
    %v2484 = vld [vmem:[%s7] sm:$0x1]
    %v2486 = vlaneseq
    %v2487 = vshrl.u32 %v2486, 7
    %v2488 = vsub.s32 0, %v2487
    %v2489 = vrot.slane %v2484, %v2488
    %2491 = vmatprep.subr.mxu0 0.0
    %2492 = vmatpush1.msra.mxu0 %v2468
    %2493 = vmatprep.subr.mxu0 0.0
    %2494 = vmatpush1.msra.mxu0 %v2469
    %2495 = vmatprep.subr.mxu0 0.0
    %2496 = vmatpush1.msra.mxu0 %v2470
    %2497 = vmatprep.subr.mxu0 0.0
    %2498 = vmatpush1.msra.mxu0 %v2471
    %2499 = vmatprep.subr.mxu0 0.0
    %2500 = vmatpush1.msra.mxu0 %v2472
    %2501 = vmatprep.subr.mxu0 0.0
    %2502 = vmatpush1.msra.mxu0 %v2473
    %2503 = vmatprep.subr.mxu0 0.0
    %2504 = vmatpush1.msra.mxu0 %v2474
    %2505 = vmatprep.subr.mxu0 0.0
    %2506 = vmatpush1.msra.mxu0 %v2475
    %2507 = vmatprep.subr.mxu0 0.0
    %2508 = vmatpush1.msra.mxu0 %v2476
    %2509 = vmatprep.subr.mxu0 0.0
    %2510 = vmatpush1.msra.mxu0 %v2477
    %2511 = vmatprep.subr.mxu0 0.0
    %2512 = vmatpush1.msra.mxu0 %v2478
    %2513 = vmatprep.subr.mxu0 0.0
    %2514 = vmatpush1.msra.mxu0 %v2479
    %2515 = vmatprep.subr.mxu0 0.0
    %2516 = vmatpush1.msra.mxu0 %v2480
    %2517 = vmatprep.subr.mxu0 0.0
    %2518 = vmatpush1.msra.mxu0 %v2481
    %2519 = vmatprep.subr.mxu0 0.0
    %2520 = vmatpush1.msra.mxu0 %v2482
    %2521 = vmatprep.subr.mxu0 0.0
    %2522 = vmatpush1.msra.mxu0 %v2483
    %2523 = vmatprep.subr.mxu0 0.0
    %2524 = vmatpush1.msra.mxu0 0.0
    %2525 = vmatprep.subr.mxu0 0.0
    %2526 = vmatpush1.msra.mxu0 0.0
    %2527 = vmatprep.subr.mxu0 0.0
    %2528 = vmatpush1.msra.mxu0 0.0
    %2529 = vmatprep.subr.mxu0 0.0
    %2530 = vmatpush1.msra.mxu0 0.0
    %2531 = vmatprep.subr.mxu0 0.0
    %2532 = vmatpush1.msra.mxu0 0.0
    %2533 = vmatprep.subr.mxu0 0.0
    %2534 = vmatpush1.msra.mxu0 0.0
    %2535 = vmatprep.subr.mxu0 0.0
    %2536 = vmatpush1.msra.mxu0 0.0
    %2537 = vmatprep.subr.mxu0 0.0
    %2538 = vmatpush1.msra.mxu0 0.0
    %2539 = vmatprep.subr.mxu0 0.0
    %2540 = vmatpush1.msra.mxu0 0.0
    %2541 = vmatprep.subr.mxu0 0.0
    %2542 = vmatpush1.msra.mxu0 0.0
    %2543 = vmatprep.subr.mxu0 0.0
    %2544 = vmatpush1.msra.mxu0 0.0
    %2545 = vmatprep.subr.mxu0 0.0
    %2546 = vmatpush1.msra.mxu0 0.0
    %2547 = vmatprep.subr.mxu0 0.0
    %2548 = vmatpush1.msra.mxu0 0.0
    %2549 = vmatprep.subr.mxu0 0.0
    %2550 = vmatpush1.msra.mxu0 0.0
    %2551 = vmatprep.subr.mxu0 0.0
    %2552 = vmatpush1.msra.mxu0 0.0
    %2553 = vmatprep.subr.mxu0 0.0
    %2554 = vmatpush1.msra.mxu0 0.0
    %2555 = vmatprep.mubr.f32.mxu0 0.0
    %2556 = vmatmul.mubr.f32.gmra.mrb[0].mxu0 %v2460
    %v2557 = vpop.f32.mrb[0].mxu0
    %v2558 = vadd.f32 %v2489, %v2557
    %v2559 = vpop.f32.mrb[0].mxu0
    %2560 = vmatprep.mubr.f32.mxu0 0.0
    %2561 = vmatmul.mubr.f32.gmra.mrb[0].mxu0 %v2461
    %v2562 = vpop.f32.mrb[0].mxu0
    %v2563 = vadd.f32 %v2489, %v2562
    %v2564 = vpop.f32.mrb[0].mxu0
    %2565 = vmatprep.mubr.f32.mxu0 0.0
    %2566 = vmatmul.mubr.f32.gmra.mrb[0].mxu0 %v2462
    %v2567 = vpop.f32.mrb[0].mxu0
    %v2568 = vadd.f32 %v2489, %v2567
    %v2569 = vpop.f32.mrb[0].mxu0
    %2570 = vmatprep.mubr.f32.mxu0 0.0
    %2571 = vmatmul.mubr.f32.gmra.mrb[0].mxu0 %v2463
    %v2572 = vpop.f32.mrb[0].mxu0
    %v2573 = vadd.f32 %v2489, %v2572
    %v2574 = vpop.f32.mrb[0].mxu0
    %2575 = vmatprep.mubr.f32.mxu0 0.0
    %2576 = vmatmul.mubr.f32.gmra.mrb[0].mxu0 %v2464
    %v2577 = vpop.f32.mrb[0].mxu0
    %v2578 = vadd.f32 %v2489, %v2577
    %v2579 = vpop.f32.mrb[0].mxu0
    %2580 = vmatprep.mubr.f32.mxu0 0.0
    %2581 = vmatmul.mubr.f32.gmra.mrb[0].mxu0 %v2465
    %v2582 = vpop.f32.mrb[0].mxu0
    %v2583 = vadd.f32 %v2489, %v2582
    %v2584 = vpop.f32.mrb[0].mxu0
    %2585 = vmatprep.mubr.f32.mxu0 0.0
    %2586 = vmatmul.mubr.f32.gmra.mrb[0].mxu0 %v2466
    %v2587 = vpop.f32.mrb[0].mxu0
    %v2588 = vadd.f32 %v2489, %v2587
    %v2589 = vpop.f32.mrb[0].mxu0
    %2590 = vmatprep.mubr.f32.mxu0 0.0
    %2591 = vmatmul.mubr.f32.gmra.mrb[0].mxu0 %v2467
    %v2592 = vpop.f32.mrb[0].mxu0
    %v2593 = vadd.f32 %v2489, %v2592
    %v2594 = vpop.f32.mrb[0].mxu0
    %2595 = vdwg.mxu0
    %v2596 = vxor.u32 %v2558, 2147483648
    %v2597 = vxor.u32 %v2563, 2147483648
    %v2598 = vxor.u32 %v2568, 2147483648
    %v2599 = vxor.u32 %v2573, 2147483648
    %v2600 = vxor.u32 %v2578, 2147483648
    %v2601 = vxor.u32 %v2583, 2147483648
    %v2602 = vxor.u32 %v2588, 2147483648
    %v2603 = vxor.u32 %v2593, 2147483648
    %v2604 = vmul.f32 %v2596, 1.442695
    %v2605 = vpow.pop %v2604
    %v2606 = vmul.f32 %v2597, 1.442695
    %v2607 = vpow.pop %v2606
    %v2608 = vmul.f32 %v2598, 1.442695
    %v2609 = vpow.pop %v2608
    %v2610 = vmul.f32 %v2599, 1.442695
    %v2611 = vpow.pop %v2610
    %v2612 = vmul.f32 %v2600, 1.442695
    %v2613 = vpow.pop %v2612
    %v2614 = vmul.f32 %v2601, 1.442695
    %v2615 = vpow.pop %v2614
    %v2616 = vmul.f32 %v2602, 1.442695
    %v2617 = vpow.pop %v2616
    %v2618 = vmul.f32 %v2603, 1.442695
    %v2619 = vpow.pop %v2618
    %v2620 = vadd.f32 %v2605, 1.0
    %v2621 = vadd.f32 %v2607, 1.0
    %v2622 = vadd.f32 %v2609, 1.0
    %v2623 = vadd.f32 %v2611, 1.0
    %v2624 = vadd.f32 %v2613, 1.0
    %v2625 = vadd.f32 %v2615, 1.0
    %v2626 = vadd.f32 %v2617, 1.0
    %v2627 = vadd.f32 %v2619, 1.0
    %v2628 = vrcp.pop %v2620
    %v2629 = vmul.f32 1.0, %v2628
    %v2630 = vrcp.pop %v2621
    %v2631 = vmul.f32 1.0, %v2630
    %v2632 = vrcp.pop %v2622
    %v2633 = vmul.f32 1.0, %v2632
    %v2634 = vrcp.pop %v2623
    %v2635 = vmul.f32 1.0, %v2634
    %v2636 = vrcp.pop %v2624
    %v2637 = vmul.f32 1.0, %v2636
    %v2638 = vrcp.pop %v2625
    %v2639 = vmul.f32 1.0, %v2638
    %v2640 = vrcp.pop %v2626
    %v2641 = vmul.f32 1.0, %v2640
    %v2642 = vrcp.pop %v2627
    %v2643 = vmul.f32 1.0, %v2642
    %2644 = vst [vmem:[#allocation9] sm:$0xff] %v2629
    %2645 = vst [vmem:[#allocation9 + $0x8] sm:$0xff] %v2631
    %2646 = vst [vmem:[#allocation9 + $0x10] sm:$0xff] %v2633
    %2647 = vst [vmem:[#allocation9 + $0x18] sm:$0xff] %v2635
    %2648 = vst [vmem:[#allocation9 + $0x20] sm:$0xff] %v2637
    %2649 = vst [vmem:[#allocation9 + $0x28] sm:$0xff] %v2639
    %2650 = vst [vmem:[#allocation9 + $0x30] sm:$0xff] %v2641
    %2651 = vst [vmem:[#allocation9 + $0x38] sm:$0xff] %v2643
    // Predicated region
    $region42: #{tpu_custom_call.1} parent=1 // pred_check
      _
    $region43: #{tpu_custom_call.1} parent=1 // pred_check_branch
      %2653 = sbr.rel (0) target = $region45
    $region44: #{tpu_custom_call.1} parent=1 // pred_region
      %s2655 = ssub.s32 1024, 1024
      %2656 = vsyncadd [#allocation6], %s2655
      %s2657 = sshll.u32 [#allocation9], 4
      %s2658 = int_to_ptr.vmem [resolvable:$true] %s2657
      %2663 = dma.vmem_to_hbm [thread:$0]  %s2658, 1024, %s8, [#allocation6], 128, 128, 8
    $region45: #{tpu_custom_call.1} parent=1 // pred_fallthru
      _
    // Predicated region
    $region46: #{tpu_custom_call.1} parent=1 // pred_check
      _
    $region47: #{tpu_custom_call.1} parent=1 // pred_check_branch
      %2665 = sbr.rel (0) target = $region49
    $region48: #{tpu_custom_call.1} parent=1 // pred_region
      %2666 = dma.done [#allocation6], 1024
    $region49: #{tpu_custom_call.1} parent=1 // pred_fallthru
      _
    %2667 = vsyncpa [#allocation5], 1
    %2668 = vsyncpa [#allocation8], 1
    %2669 = vsyncpa [#allocation6], 1

</llo_original>
